<compile_context>
chip_gen: v7x
topology: tpu7x:2x2x1
jax: 0.10.0
libtpu: 0.0.40
codegen_flags: <defaults>
</compile_context>

<pallas_src>
import functools

import numpy as np
import jax
import jax.numpy as jnp
from jax.experimental import pallas as pl
from jax.experimental.pallas import tpu as pltpu


# -----------------------------------------------------------------------------
# Tiled matmul (+ optional bias) kernel
# -----------------------------------------------------------------------------
def _matmul_kernel(x_ref, w_ref, o_ref, acc_ref):
    @pl.when(pl.program_id(2) == 0)
    def _():
        acc_ref[...] = jnp.zeros_like(acc_ref)

    acc_ref[...] += jnp.dot(x_ref[...], w_ref[...],
                            preferred_element_type=jnp.float32)

    @pl.when(pl.program_id(2) == pl.num_programs(2) - 1)
    def _():
        o_ref[...] = acc_ref[...].astype(o_ref.dtype)


def _matmul_bias_kernel(x_ref, w_ref, b_ref, o_ref, acc_ref):
    @pl.when(pl.program_id(2) == 0)
    def _():
        acc_ref[...] = jnp.zeros_like(acc_ref)

    acc_ref[...] += jnp.dot(x_ref[...], w_ref[...],
                            preferred_element_type=jnp.float32)

    @pl.when(pl.program_id(2) == pl.num_programs(2) - 1)
    def _():
        o_ref[...] = (acc_ref[...] + b_ref[...].astype(jnp.float32)).astype(o_ref.dtype)


def _pick_tile(dim, target):
    """Return (tile, padded_dim).  Full-dim block for small dims, else tile+pad."""
    if dim <= target:
        return dim, dim
    padded = ((dim + target - 1) // target) * target
    return target, padded


def matmul_pallas(x, w, b=None, *, tm=256, tn=256, tk=512,
                  compute_dtype=jnp.bfloat16, out_dtype=None):
    """y = x @ w (+ b).  bf16 MXU inputs, f32 accumulation, tiled & pipelined."""
    M, K = x.shape
    Kw, N = w.shape
    assert K == Kw
    if out_dtype is None:
        out_dtype = x.dtype

    tm, Mp = _pick_tile(M, tm)
    tn, Np = _pick_tile(N, tn)
    tkk, Kp = _pick_tile(K, tk)

    xc = x.astype(compute_dtype)
    wc = w.astype(compute_dtype)
    if (Mp, Kp) != (M, K):
        xc = jnp.pad(xc, ((0, Mp - M), (0, Kp - K)))
    if (Kp, Np) != (K, N):
        wc = jnp.pad(wc, ((0, Kp - K), (0, Np - N)))

    grid = (Mp // tm, Np // tn, Kp // tkk)
    x_spec = pl.BlockSpec((tm, tkk), lambda i, j, k: (i, k))
    w_spec = pl.BlockSpec((tkk, tn), lambda i, j, k: (k, j))
    o_spec = pl.BlockSpec((tm, tn), lambda i, j, k: (i, j))
    cparams = pltpu.CompilerParams(
        dimension_semantics=("parallel", "parallel", "arbitrary"))
    scratch = [pltpu.VMEM((tm, tn), jnp.float32)]

    if b is None:
        out = pl.pallas_call(
            _matmul_kernel,
            grid=grid,
            out_shape=jax.ShapeDtypeStruct((Mp, Np), out_dtype),
            in_specs=[x_spec, w_spec],
            out_specs=o_spec,
            scratch_shapes=scratch,
            compiler_params=cparams,
        )(xc, wc)
    else:
        b2d = b.reshape(1, N).astype(jnp.float32)
        if Np != N:
            b2d = jnp.pad(b2d, ((0, 0), (0, Np - N)))
        b_spec = pl.BlockSpec((1, tn), lambda i, j, k: (0, j))
        out = pl.pallas_call(
            _matmul_bias_kernel,
            grid=grid,
            out_shape=jax.ShapeDtypeStruct((Mp, Np), out_dtype),
            in_specs=[x_spec, w_spec, b_spec],
            out_specs=o_spec,
            scratch_shapes=scratch,
            compiler_params=cparams,
        )(xc, wc, b2d)

    if (Mp, Np) != (M, N):
        out = out[:M, :N]
    return out


def _mm_ref(x, w, b=None, *, compute_dtype=jnp.bfloat16, out_dtype=None):
    if out_dtype is None:
        out_dtype = x.dtype
    acc = jnp.dot(x.astype(compute_dtype), w.astype(compute_dtype),
                  preferred_element_type=jnp.float32)
    if b is not None:
        acc = acc + b.astype(jnp.float32)
    return acc.astype(out_dtype)


# -----------------------------------------------------------------------------
# HLA rope: per-position 2x2 rotation in the (permuted) SVD basis (VPU work only)
# -----------------------------------------------------------------------------
def _rope_rotate_kernel(y_ref, ca_ref, cb_ref, o_ref):
    y = y_ref[0].astype(jnp.float32)                 # (ts, T)
    half = y.shape[-1] // 2
    y_sw = jnp.concatenate([y[:, half:], y[:, :half]], axis=-1)   # swap halves
    o_ref[0] = (y * ca_ref[...] + y_sw * cb_ref[...]).astype(o_ref.dtype)


def rope_rotate_pallas(y_bst, ca, cb):
    """y:(B,S,T), ca/cb:(S,T); out[b,s] = y[b,s]*ca[s] + swap_halves(y[b,s])*cb[s]."""
    B, S, T = y_bst.shape
    ts = 256 if S % 256 == 0 else S
    # TODO(synk): pad ragged long sequences instead of falling back to full-S tiles.
    return pl.pallas_call(
        _rope_rotate_kernel,
        grid=(B, S // ts),
        out_shape=jax.ShapeDtypeStruct((B, S, T), y_bst.dtype),
        in_specs=[
            pl.BlockSpec((1, ts, T), lambda b, si: (b, si, 0)),
            pl.BlockSpec((ts, T), lambda b, si: (si, 0)),
            pl.BlockSpec((ts, T), lambda b, si: (si, 0)),
        ],
        out_specs=pl.BlockSpec((1, ts, T), lambda b, si: (b, si, 0)),
        compiler_params=pltpu.CompilerParams(
            dimension_semantics=("parallel", "parallel")),
    )(y_bst, ca, cb)


def _rope_rotate_ref(y_bst, ca, cb):
    y = y_bst.astype(jnp.float32)
    half = y.shape[-1] // 2
    y_sw = jnp.concatenate([y[..., half:], y[..., :half]], axis=-1)
    return (y * ca[None] + y_sw * cb[None]).astype(y_bst.dtype)


def build_rope_coeffs(cos_size_matrix, num_heads, latent_head_dim):
    """Per-position rotation coefficient planes for the permuted basis layout.

    In the permuted basis the first T/2 lanes carry the j=0 component of each
    2-dim block and the last T/2 lanes the j=1 component.  The output is
        z = y * CA + swap_halves(y) * CB
    NOTE: torch reference casts cos to float16 inside the rope; kept f32 here.
    """
    hdh = latent_head_dim // 2
    cos = cos_size_matrix[:, :hdh].astype(jnp.float32)       # (S, hdh, 2, 2)
    r00 = jnp.tile(cos[..., 0, 0], (1, num_heads))
    r01 = jnp.tile(cos[..., 0, 1], (1, num_heads))
    r10 = jnp.tile(cos[..., 1, 0], (1, num_heads))
    r11 = jnp.tile(cos[..., 1, 1], (1, num_heads))
    ca = jnp.concatenate([r00, r11], axis=-1)                 # (S, T)
    cb = jnp.concatenate([r10, r01], axis=-1)                 # (S, T)
    return ca, cb


# -----------------------------------------------------------------------------
# Flash attention (grouped-query, online softmax, in-kernel causal mask)
# -----------------------------------------------------------------------------
def _flash_attn_kernel(q_ref, k_ref, v_ref, o_ref, m_sc, l_sc, acc_sc,
                       *, scaling, tq, tk, n_rep):
    qi = pl.program_id(2)
    ki = pl.program_id(3)

    @pl.when(ki == 0)
    def _():
        m_sc[...] = jnp.full_like(m_sc, -1e30)
        l_sc[...] = jnp.zeros_like(l_sc)
        acc_sc[...] = jnp.zeros_like(acc_sc)

    # Skip KV tiles that are entirely in the causal future of this query tile.
    @pl.when(ki * tk <= qi * tq + tq - 1)
    def _():
        D = q_ref.shape[-1]
        q = q_ref[0].reshape(n_rep * tq, D)           # group n_rep heads -> 1 matmul
        kt = k_ref[0, 0]                              # (tk, D)
        vt = v_ref[0, 0]                              # (tk, D)

        s = jax.lax.dot_general(q, kt, (((1,), (1,)), ((), ())),
                                preferred_element_type=jnp.float32) * scaling

        # causal mask generated in-VMEM (no SxS mask DMA)
        q_pos = qi * tq + jax.lax.broadcasted_iota(
            jnp.int32, (n_rep, tq, tk), 1).reshape(n_rep * tq, tk)
        k_pos = ki * tk + jax.lax.broadcasted_iota(
            jnp.int32, (n_rep * tq, tk), 1)
        s = jnp.where(k_pos <= q_pos, s, -1e30)

        m_prev = m_sc[...]
        m_new = jnp.maximum(m_prev, jnp.max(s, axis=-1, keepdims=True))
        alpha = jnp.exp(m_prev - m_new)
        p = jnp.exp(s - m_new)
        l_sc[...] = alpha * l_sc[...] + jnp.sum(p, axis=-1, keepdims=True)
        acc_sc[...] = alpha * acc_sc[...] + jnp.dot(
            p.astype(vt.dtype), vt, preferred_element_type=jnp.float32)
        m_sc[...] = m_new

    @pl.when(ki == pl.num_programs(3) - 1)
    def _():
        inv_l = pl.reciprocal(l_sc[...], approx=True)
        o_ref[...] = (acc_sc[...] * inv_l).astype(o_ref.dtype).reshape(o_ref.shape)


def flash_attention_pallas(q, k, v, scaling, *, compute_dtype=jnp.bfloat16,
                           out_dtype=None, tq=128, tk=128):
    """q:(B,Hq,S,D), k/v:(B,Hkv,S,D) -> (B,Hq,S,D); causal; KV repeat via index_map."""
    B, Hq, S, D = q.shape
    _, Hkv, _, _ = k.shape
    n_rep = Hq // Hkv
    if out_dtype is None:
        out_dtype = q.dtype
    tq = tq if S % tq == 0 else S
    tk = tk if S % tk == 0 else S
    # TODO(synk): pad ragged sequence lengths instead of full-S fallback tiles.

    kernel = functools.partial(_flash_attn_kernel, scaling=scaling,
                               tq=tq, tk=tk, n_rep=n_rep)
    return pl.pallas_call(
        kernel,
        grid=(B, Hkv, S // tq, S // tk),
        out_shape=jax.ShapeDtypeStruct((B, Hq, S, D), out_dtype),
        in_specs=[
            pl.BlockSpec((1, n_rep, tq, D), lambda b, g, qi, ki: (b, g, qi, 0)),
            pl.BlockSpec((1, 1, tk, D), lambda b, g, qi, ki: (b, g, ki, 0)),
            pl.BlockSpec((1, 1, tk, D), lambda b, g, qi, ki: (b, g, ki, 0)),
        ],
        out_specs=pl.BlockSpec((1, n_rep, tq, D), lambda b, g, qi, ki: (b, g, qi, 0)),
        scratch_shapes=[
            pltpu.VMEM((n_rep * tq, 1), jnp.float32),   # running max
            pltpu.VMEM((n_rep * tq, 1), jnp.float32),   # running sum
            pltpu.VMEM((n_rep * tq, D), jnp.float32),   # output accumulator
        ],
        compiler_params=pltpu.CompilerParams(
            dimension_semantics=("parallel", "parallel", "parallel", "arbitrary")),
    )(q.astype(compute_dtype), k.astype(compute_dtype), v.astype(compute_dtype))


def _attention_ref(q, k, v, scaling, n_rep, compute_dtype):
    k = jnp.repeat(k, n_rep, axis=1)
    v = jnp.repeat(v, n_rep, axis=1)
    s = jnp.einsum("bhqd,bhkd->bhqk", q.astype(compute_dtype), k.astype(compute_dtype),
                   preferred_element_type=jnp.float32) * scaling
    S = q.shape[2]
    causal = jnp.tril(jnp.ones((S, S), bool))
    s = jnp.where(causal[None, None], s, -1e30)
    p = jax.nn.softmax(s, axis=-1)
    o = jnp.einsum("bhqk,bhkd->bhqd", p.astype(compute_dtype), v.astype(compute_dtype),
                   preferred_element_type=jnp.float32)
    return o.astype(q.dtype), p


# -----------------------------------------------------------------------------
# Forward glue (shared by Pallas path and the jnp reference path)
# -----------------------------------------------------------------------------
def llama_hla_attention_forward(hidden_states, cos_size_matrix, prepared, cfg,
                                use_pallas=True, compute_dtype=jnp.bfloat16):
    # TODO(synk): past_key_value / KV-cache update and arbitrary additive
    # attention_mask (padding) are not implemented; the causal mask is
    # generated inside the attention kernel.
    B, S, H = hidden_states.shape
    D = cfg["head_dim"]
    Hq = cfg["num_attention_heads"]
    Hkv = cfg["num_key_value_heads"]
    Dh = D // 2
    Tq, Tk = Hq * Dh, Hkv * Dh
    n_rep = Hq // Hkv
    scaling = D ** -0.5

    def mm(x, w, b=None, out_dtype=compute_dtype):
        if use_pallas:
            return matmul_pallas(x, w, b, compute_dtype=compute_dtype,
                                 out_dtype=out_dtype)
        return _mm_ref(x, w, b, compute_dtype=compute_dtype, out_dtype=out_dtype)

    x2d = hidden_states.reshape(B * S, H)

    # Fused q/k/v down-projection: one pass over hidden_states, lane-dense output.
    qkv_h = mm(x2d, prepared["W_dqkv"], prepared["b_dqkv"])
    q_h = qkv_h[:, :Tq]
    k_h = qkv_h[:, Tq:Tq + Tk]
    v_h = qkv_h[:, Tq + Tk:]

    # HLA rope: one position-independent matmul into the permuted SVD basis,
    # then per-position 2x2 rotations applied elementwise (VPU).
    y_q = mm(q_h, prepared["BqT"])
    y_k = mm(k_h, prepared["BkT"])
    ca_q, cb_q = build_rope_coeffs(cos_size_matrix, Hq, Dh)
    ca_k, cb_k = build_rope_coeffs(cos_size_matrix, Hkv, Dh)
    if use_pallas:
        z_q = rope_rotate_pallas(y_q.reshape(B, S, Tq), ca_q, cb_q)
        z_k = rope_rotate_pallas(y_k.reshape(B, S, Tk), ca_k, cb_k)
    else:
        z_q = _rope_rotate_ref(y_q.reshape(B, S, Tq), ca_q, cb_q)
        z_k = _rope_rotate_ref(y_k.reshape(B, S, Tk), ca_k, cb_k)

    # Up-projection with the rope back-projection (B) and the C-projection /
    # leading-half splice folded into a single weight (exact identity).
    q_full = mm(z_q.reshape(B * S, Tq), prepared["W_q_fold"], prepared["b_q_fold"])
    k_full = mm(z_k.reshape(B * S, Tk), prepared["W_k_fold"], prepared["b_k_fold"])
    v_full = mm(v_h, prepared["W_v_up"], prepared["b_v_up"])

    query_states = q_full.reshape(B, S, Hq, D).transpose(0, 2, 1, 3)   # (B,Hq,S,D)
    key_states = k_full.reshape(B, S, Hkv, D).transpose(0, 2, 1, 3)    # (B,Hkv,S,D)
    value_states = v_full.reshape(B, S, Hkv, D).transpose(0, 2, 1, 3)  # (B,Hkv,S,D)

    if use_pallas:
        attn_out = flash_attention_pallas(
            query_states, key_states, value_states, scaling,
            compute_dtype=compute_dtype, out_dtype=compute_dtype)
        attn_weights = None
        # TODO(synk): (B,Hq,S,S) attn_weights are not materialized on the flash
        # path (perf review); use use_pallas=False when output_attentions is needed.
    else:
        attn_out, attn_weights = _attention_ref(
            query_states, key_states, value_states, scaling, n_rep, compute_dtype)

    attn2d = attn_out.transpose(0, 2, 1, 3).reshape(B * S, Hq * D)
    out = mm(attn2d, prepared["W_o"], None, out_dtype=hidden_states.dtype)
    return out.reshape(B, S, H), attn_weights


# -----------------------------------------------------------------------------
# Naive (torch-structured) f32 reference — validates the algebraic rework
# -----------------------------------------------------------------------------
def llama_hla_attention_naive(hidden_states, cos_size_matrix, params, cfg):
    B, S, H = hidden_states.shape
    D = cfg["head_dim"]
    Hq = cfg["num_attention_heads"]
    Hkv = cfg["num_key_value_heads"]
    Dh = D // 2
    n_rep = Hq // Hkv
    scaling = D ** -0.5
    x2d = hidden_states.reshape(B * S, H)

    q_h = x2d @ params["q_d_w"].T + params["q_d_b"]
    k_h = x2d @ params["k_d_w"].T + params["k_d_b"]
    v_h = x2d @ params["v_d_w"].T + params["v_d_b"]

    def mix(Bmat, nh):                               # M[s] = sum_n Bb[n]^T R[s,n] Bb[n]
        hdh = Dh // 2
        T = nh * Dh
        nb = nh * hdh
        Bb = Bmat.reshape(nb, 2, T)
        cos = cos_size_matrix[:, :hdh]
        cos = jnp.broadcast_to(cos[:, None], (S, nh, hdh, 2, 2)).reshape(S, nb, 2, 2)
        Brot = jnp.einsum("njt,snjk->sntk", Bb, cos)
        return jnp.einsum("sntk,nkj->stj", Brot, Bb)

    Mq, Mk = mix(params["B_q"], Hq), mix(params["B_k"], Hkv)
    q_rot = jnp.einsum("bsd,sdj->bsj", q_h.reshape(B, S, -1), Mq).reshape(B * S, -1)
    k_rot = jnp.einsum("bsd,sdj->bsj", k_h.reshape(B, S, -1), Mk).reshape(B * S, -1)

    q_up = q_rot @ params["q_u_w"].T + params["q_u_b"]
    k_up = k_rot @ params["k_u_w"].T + params["k_u_b"]
    v_up = v_h @ params["v_u_w"].T + params["v_u_b"]

    q_cu = q_up @ params["C_q"]
    k_cu = k_up @ params["C_k"]
    q_full = q_up.at[:, :q_cu.shape[1]].set(q_cu)
    k_full = k_up.at[:, :k_cu.shape[1]].set(k_cu)

    qs = q_full.reshape(B, S, Hq, D).transpose(0, 2, 1, 3)
    ks = k_full.reshape(B, S, Hkv, D).transpose(0, 2, 1, 3)
    vs = v_up.reshape(B, S, Hkv, D).transpose(0, 2, 1, 3)
    ks = jnp.repeat(ks, n_rep, axis=1)
    vs = jnp.repeat(vs, n_rep, axis=1)

    sc = jnp.einsum("bhqd,bhkd->bhqk", qs, ks) * scaling
    causal = jnp.tril(jnp.ones((S, S), bool))
    sc = jnp.where(causal[None, None], sc, -1e9)
    p = jax.nn.softmax(sc, axis=-1)
    ao = jnp.einsum("bhqk,bhkd->bhqd", p, vs)
    ao = ao.transpose(0, 2, 1, 3).reshape(B * S, Hq * D)
    out = (ao @ params["o_proj_w"].T).reshape(B, S, H)
    return out, p


# -----------------------------------------------------------------------------
# Parameter init (SVD, mirrors the torch module) + one-time weight folding
# -----------------------------------------------------------------------------
def init_params(cfg, key):
    H = cfg["hidden_size"]
    D = cfg["head_dim"]
    Hq = cfg["num_attention_heads"]
    Hkv = cfg["num_key_value_heads"]
    ks = jax.random.split(key, 10)

    def w(k, shape, scale=0.05):
        return scale * jax.random.normal(k, shape, jnp.float32)

    q_proj_w = w(ks[0], (Hq * D, H))
    k_proj_w = w(ks[1], (Hkv * D, H))
    v_proj_w = w(ks[2], (Hkv * D, H))
    o_proj_w = w(ks[3], (H, Hq * D))

    def svd_split(W):                       # get_up_down_matrix
        Wn = np.asarray(W, np.float32)
        U, S, Vh = np.linalg.svd(Wn, full_matrices=False)
        r = Wn.shape[0] // 2
        return jnp.asarray(U[:, :r]), jnp.asarray(np.diag(S[:r]) @ Vh[:r, :])

    q_u_w, q_d_w = svd_split(q_proj_w)
    k_u_w, k_d_w = svd_split(k_proj_w)
    v_u_w, v_d_w = svd_split(v_proj_w)

    def svd_bc(Wup):                        # get_up_cb_matrix: B = Vh, C = U
        U, _, Vh = np.linalg.svd(np.asarray(Wup, np.float32), full_matrices=False)
        return jnp.asarray(Vh), jnp.asarray(U)

    B_q, C_q = svd_bc(q_u_w)
    B_k, C_k = svd_bc(k_u_w)

    def b(k, n, scale=0.01):
        return scale * jax.random.normal(k, (n,), jnp.float32)

    return dict(
        o_proj_w=o_proj_w,
        q_d_w=q_d_w, q_u_w=q_u_w, k_d_w=k_d_w, k_u_w=k_u_w, v_d_w=v_d_w, v_u_w=v_u_w,
        q_d_b=b(ks[4], Hq * D // 2), q_u_b=b(ks[5], Hq * D),
        k_d_b=b(ks[6], Hkv * D // 2), k_u_b=b(ks[7], Hkv * D),
        v_d_b=b(ks[8], Hkv * D // 2), v_u_b=b(ks[9], Hkv * D),
        B_q=B_q, C_q=C_q, B_k=B_k, C_k=C_k,
    )


def prepare_params(params, cfg, compute_dtype=jnp.bfloat16):
    """One-time weight fusion / folding (exact algebra, done in f32)."""
    f32 = jnp.float32

    # fused q/k/v down-projection
    W_dqkv = jnp.concatenate(
        [params["q_d_w"], params["k_d_w"], params["v_d_w"]], axis=0).T        # (H, Nd)
    b_dqkv = jnp.concatenate([params["q_d_b"], params["k_d_b"], params["v_d_b"]])

    def perm_rows(Bm):      # group j=0 rows first, j=1 rows second (rotate-half layout)
        return jnp.concatenate([Bm[0::2], Bm[1::2]], axis=0)

    Bq_perm = perm_rows(params["B_q"].astype(f32))
    Bk_perm = perm_rows(params["B_k"].astype(f32))

    def fold_up(B_perm, W_u, b_u, C):
        # q_full = q_up @ [C | [0;I]]  with  q_up = (z @ B_perm) @ W_u^T + b_u
        out_dim, r = W_u.shape
        rest = out_dim - r
        pad = jnp.concatenate([jnp.zeros((r, rest), f32), jnp.eye(rest, dtype=f32)], 0)
        C_aug = jnp.concatenate([C.astype(f32), pad], axis=1)        # (out, out)
        W_fold = B_perm @ W_u.astype(f32).T @ C_aug                  # (r, out)
        b_fold = b_u.astype(f32) @ C_aug                             # (out,)
        return W_fold, b_fold

    W_q_fold, b_q_fold = fold_up(Bq_perm, params["q_u_w"], params["q_u_b"], params["C_q"])
    W_k_fold, b_k_fold = fold_up(Bk_perm, params["k_u_w"], params["k_u_b"], params["C_k"])

    return dict(
        W_dqkv=W_dqkv.astype(compute_dtype), b_dqkv=b_dqkv.astype(f32),
        BqT=Bq_perm.T.astype(compute_dtype), BkT=Bk_perm.T.astype(compute_dtype),
        W_q_fold=W_q_fold.astype(compute_dtype), b_q_fold=b_q_fold,
        W_k_fold=W_k_fold.astype(compute_dtype), b_k_fold=b_k_fold,
        W_v_up=params["v_u_w"].T.astype(compute_dtype), b_v_up=params["v_u_b"].astype(f32),
        W_o=params["o_proj_w"].T.astype(compute_dtype),
    )


# -----------------------------------------------------------------------------
# Main
# -----------------------------------------------------------------------------
if __name__ == "__main__":
    cfg = dict(hidden_size=64, num_attention_heads=4, num_key_value_heads=2,
               head_dim=16)
    B, S = 2, 8
    H, D = cfg["hidden_size"], cfg["head_dim"]

    key = jax.random.PRNGKey(0)
    k_param, k_x = jax.random.split(key)
    params = init_params(cfg, k_param)
    prepared = prepare_params(params, cfg, compute_dtype=jnp.bfloat16)

    hidden_states = jax.random.normal(k_x, (B, S, H), jnp.float32)

    # position embeddings: (S, D//2, 2, 2) rotation matrices [[cos,-sin],[sin,cos]]
    inv_freq = 1.0 / (10000.0 ** (jnp.arange(0, D, 2, dtype=jnp.float32) / D))
    ang = jnp.arange(S, dtype=jnp.float32)[:, None] * inv_freq[None, :]
    c, s_ = jnp.cos(ang), jnp.sin(ang)
    cos_size_matrix = jnp.stack(
        [jnp.stack([c, -s_], -1), jnp.stack([s_, c], -1)], -2)   # (S, D//2, 2, 2)

    run_pallas = jax.jit(lambda x, cos: llama_hla_attention_forward(
        x, cos, prepared, cfg, use_pallas=True)[0])
    out = jax.block_until_ready(run_pallas(hidden_states, cos_size_matrix))

    # jnp reference with identical glue / precision policy (no Pallas)
    out_ref, _ = llama_hla_attention_forward(
        hidden_states, cos_size_matrix, prepared, cfg, use_pallas=False)

    # torch-structured f32 reference (validates the algebraic rope/C-fold rework)
    out_naive, attn_naive = llama_hla_attention_naive(
        hidden_states, cos_size_matrix, params, cfg)

    np.testing.assert_allclose(np.asarray(out, np.float32),
                               np.asarray(out_ref, np.float32),
                               rtol=2e-2, atol=2e-2)
    np.testing.assert_allclose(np.asarray(out, np.float32),
                               np.asarray(out_naive, np.float32),
                               rtol=2e-2, atol=2e-2)
    assert out.shape == (B, S, H)
    assert attn_naive.shape == (B, cfg["num_attention_heads"], S, S)
    print("KERNEL_OK")
</pallas_src>

<mosaic_0001>
module attributes {stable_mosaic.version = 11 : i64} {
  func.func @_matmul_bias_kernel(%arg0: i32, %arg1: i32, %arg2: i32, %arg3: memref<16x64xbf16, #tpu.memory_space<vmem>>, %arg4: memref<64x64xbf16, #tpu.memory_space<vmem>>, %arg5: memref<1x64xf32, #tpu.memory_space<vmem>>, %arg6: memref<16x64xbf16, #tpu.memory_space<vmem>>, %arg7: memref<16x64xf32, #tpu.memory_space<vmem>>) attributes {dimension_semantics = [#tpu.dimension_semantics<parallel>, #tpu.dimension_semantics<parallel>, #tpu.dimension_semantics<arbitrary>], iteration_bounds = array<i64: 1, 1, 1>, scalar_prefetch = 0 : i64, scratch_operands = 1 : i64, tpu.core_type = #tpu.core_type<tc>, window_params = [{transform_indices = @transform_0, window_bounds = array<i64: 16, 64>}, {transform_indices = @transform_1, window_bounds = array<i64: 64, 64>}, {transform_indices = @transform_2, window_bounds = array<i64: 1, 64>}, {transform_indices = @transform_3, window_bounds = array<i64: 16, 64>}]} {
    %c0_i32 = arith.constant 0 : i32
    %0 = arith.cmpi eq, %arg2, %c0_i32 : i32
    %1 = arith.extui %0 : i1 to i32
    %c0_i32_0 = arith.constant 0 : i32
    %2 = arith.cmpi ne, %1, %c0_i32_0 : i32
    scf.if %2 {
      %cst_10 = arith.constant 0.000000e+00 : f32
      %12 = vector.broadcast %cst_10 : f32 to vector<16x64xf32>
      %c0_11 = arith.constant 0 : index
      %c0_12 = arith.constant 0 : index
      %13 = vector.load %arg7[%c0_11, %c0_12] : memref<16x64xf32, #tpu.memory_space<vmem>>, vector<16x64xf32>
      tpu.vector_store %arg7[%c0_11, %c0_12], %12 {strides = array<i32>} : memref<16x64xf32, #tpu.memory_space<vmem>>, vector<16x64xf32>,
    } else {
    }
    %c0 = arith.constant 0 : index
    %c0_1 = arith.constant 0 : index
    %3 = vector.load %arg7[%c0, %c0_1] : memref<16x64xf32, #tpu.memory_space<vmem>>, vector<16x64xf32>
    %c0_2 = arith.constant 0 : index
    %c0_3 = arith.constant 0 : index
    %4 = vector.load %arg3[%c0_2, %c0_3] : memref<16x64xbf16, #tpu.memory_space<vmem>>, vector<16x64xbf16>
    %c0_4 = arith.constant 0 : index
    %c0_5 = arith.constant 0 : index
    %5 = vector.load %arg4[%c0_4, %c0_5] : memref<64x64xbf16, #tpu.memory_space<vmem>>, vector<64x64xbf16>
    %cst = arith.constant dense<0.000000e+00> : vector<16x64xf32>
    %6 = tpu.matmul %4, %5, %cst {dimension_numbers = #tpu.dot_dimension_numbers<[1], [0], [0], [1], [0, 0, 1, 1], [], []>} : vector<16x64xbf16>, vector<64x64xbf16>, vector<16x64xf32> -> vector<16x64xf32>
    %7 = arith.addf %3, %6 : vector<16x64xf32>
    %c0_6 = arith.constant 0 : index
    %c0_7 = arith.constant 0 : index
    %8 = vector.load %arg7[%c0_6, %c0_7] : memref<16x64xf32, #tpu.memory_space<vmem>>, vector<16x64xf32>
    tpu.vector_store %arg7[%c0_6, %c0_7], %7 {strides = array<i32>} : memref<16x64xf32, #tpu.memory_space<vmem>>, vector<16x64xf32>,
    %c0_i32_8 = arith.constant 0 : i32
    %9 = arith.cmpi eq, %arg2, %c0_i32_8 : i32
    %10 = arith.extui %9 : i1 to i32
    %c0_i32_9 = arith.constant 0 : i32
    %11 = arith.cmpi ne, %10, %c0_i32_9 : i32
    scf.if %11 {
      %c0_10 = arith.constant 0 : index
      %c0_11 = arith.constant 0 : index
      %12 = vector.load %arg7[%c0_10, %c0_11] : memref<16x64xf32, #tpu.memory_space<vmem>>, vector<16x64xf32>
      %c0_12 = arith.constant 0 : index
      %c0_13 = arith.constant 0 : index
      %13 = vector.load %arg5[%c0_12, %c0_13] : memref<1x64xf32, #tpu.memory_space<vmem>>, vector<1x64xf32>
      %14 = vector.broadcast %13 : vector<1x64xf32> to vector<16x64xf32>
      %15 = arith.addf %12, %14 : vector<16x64xf32>
      %16 = arith.truncf %15 : vector<16x64xf32> to vector<16x64xbf16>
      %c0_14 = arith.constant 0 : index
      %c0_15 = arith.constant 0 : index
      %17 = vector.load %arg6[%c0_14, %c0_15] : memref<16x64xbf16, #tpu.memory_space<vmem>>, vector<16x64xbf16>
      tpu.vector_store %arg6[%c0_14, %c0_15], %16 {strides = array<i32>} : memref<16x64xbf16, #tpu.memory_space<vmem>>, vector<16x64xbf16>,
    } else {
    }
    return
  }
  func.func @transform_0(%arg0: i32, %arg1: i32, %arg2: i32) -> (i32, i32) {
    %c0_i32 = arith.constant 0 : i32
    return %arg0, %arg2 : i32, i32
  }
  func.func @transform_1(%arg0: i32, %arg1: i32, %arg2: i32) -> (i32, i32) {
    %c0_i32 = arith.constant 0 : i32
    return %arg2, %arg1 : i32, i32
  }
  func.func @transform_2(%arg0: i32, %arg1: i32, %arg2: i32) -> (i32, i32) {
    %c0_i32 = arith.constant 0 : i32
    %c0_i32_0 = arith.constant 0 : i32
    return %c0_i32, %arg1 : i32, i32
  }
  func.func @transform_3(%arg0: i32, %arg1: i32, %arg2: i32) -> (i32, i32) {
    %c0_i32 = arith.constant 0 : i32
    return %arg0, %arg1 : i32, i32
  }
}

module attributes {stable_mosaic.version = 11 : i64} {
  func.func @_matmul_kernel(%arg0: i32, %arg1: i32, %arg2: i32, %arg3: memref<16x16xbf16, #tpu.memory_space<vmem>>, %arg4: memref<16x16xbf16, #tpu.memory_space<vmem>>, %arg5: memref<16x16xbf16, #tpu.memory_space<vmem>>, %arg6: memref<16x16xf32, #tpu.memory_space<vmem>>) attributes {dimension_semantics = [#tpu.dimension_semantics<parallel>, #tpu.dimension_semantics<parallel>, #tpu.dimension_semantics<arbitrary>], iteration_bounds = array<i64: 1, 1, 1>, scalar_prefetch = 0 : i64, scratch_operands = 1 : i64, tpu.core_type = #tpu.core_type<tc>, window_params = [{transform_indices = @transform_0, window_bounds = array<i64: 16, 16>}, {transform_indices = @transform_1, window_bounds = array<i64: 16, 16>}, {transform_indices = @transform_2, window_bounds = array<i64: 16, 16>}]} {
    %c0_i32 = arith.constant 0 : i32
    %0 = arith.cmpi eq, %arg2, %c0_i32 : i32
    %1 = arith.extui %0 : i1 to i32
    %c0_i32_0 = arith.constant 0 : i32
    %2 = arith.cmpi ne, %1, %c0_i32_0 : i32
    scf.if %2 {
      %cst_10 = arith.constant 0.000000e+00 : f32
      %12 = vector.broadcast %cst_10 : f32 to vector<16x16xf32>
      %c0_11 = arith.constant 0 : index
      %c0_12 = arith.constant 0 : index
      %13 = vector.load %arg6[%c0_11, %c0_12] : memref<16x16xf32, #tpu.memory_space<vmem>>, vector<16x16xf32>
      tpu.vector_store %arg6[%c0_11, %c0_12], %12 {strides = array<i32>} : memref<16x16xf32, #tpu.memory_space<vmem>>, vector<16x16xf32>,
    } else {
    }
    %c0 = arith.constant 0 : index
    %c0_1 = arith.constant 0 : index
    %3 = vector.load %arg6[%c0, %c0_1] : memref<16x16xf32, #tpu.memory_space<vmem>>, vector<16x16xf32>
    %c0_2 = arith.constant 0 : index
    %c0_3 = arith.constant 0 : index
    %4 = vector.load %arg3[%c0_2, %c0_3] : memref<16x16xbf16, #tpu.memory_space<vmem>>, vector<16x16xbf16>
    %c0_4 = arith.constant 0 : index
    %c0_5 = arith.constant 0 : index
    %5 = vector.load %arg4[%c0_4, %c0_5] : memref<16x16xbf16, #tpu.memory_space<vmem>>, vector<16x16xbf16>
    %cst = arith.constant dense<0.000000e+00> : vector<16x16xf32>
    %6 = tpu.matmul %4, %5, %cst {dimension_numbers = #tpu.dot_dimension_numbers<[1], [0], [0], [1], [0, 0, 1, 1], [], []>} : vector<16x16xbf16>, vector<16x16xbf16>, vector<16x16xf32> -> vector<16x16xf32>
    %7 = arith.addf %3, %6 : vector<16x16xf32>
    %c0_6 = arith.constant 0 : index
    %c0_7 = arith.constant 0 : index
    %8 = vector.load %arg6[%c0_6, %c0_7] : memref<16x16xf32, #tpu.memory_space<vmem>>, vector<16x16xf32>
    tpu.vector_store %arg6[%c0_6, %c0_7], %7 {strides = array<i32>} : memref<16x16xf32, #tpu.memory_space<vmem>>, vector<16x16xf32>,
    %c0_i32_8 = arith.constant 0 : i32
    %9 = arith.cmpi eq, %arg2, %c0_i32_8 : i32
    %10 = arith.extui %9 : i1 to i32
    %c0_i32_9 = arith.constant 0 : i32
    %11 = arith.cmpi ne, %10, %c0_i32_9 : i32
    scf.if %11 {
      %c0_10 = arith.constant 0 : index
      %c0_11 = arith.constant 0 : index
      %12 = vector.load %arg6[%c0_10, %c0_11] : memref<16x16xf32, #tpu.memory_space<vmem>>, vector<16x16xf32>
      %13 = arith.truncf %12 : vector<16x16xf32> to vector<16x16xbf16>
      %c0_12 = arith.constant 0 : index
      %c0_13 = arith.constant 0 : index
      %14 = vector.load %arg5[%c0_12, %c0_13] : memref<16x16xbf16, #tpu.memory_space<vmem>>, vector<16x16xbf16>
      tpu.vector_store %arg5[%c0_12, %c0_13], %13 {strides = array<i32>} : memref<16x16xbf16, #tpu.memory_space<vmem>>, vector<16x16xbf16>,
    } else {
    }
    return
  }
  func.func @transform_0(%arg0: i32, %arg1: i32, %arg2: i32) -> (i32, i32) {
    %c0_i32 = arith.constant 0 : i32
    return %arg0, %arg2 : i32, i32
  }
  func.func @transform_1(%arg0: i32, %arg1: i32, %arg2: i32) -> (i32, i32) {
    %c0_i32 = arith.constant 0 : i32
    return %arg2, %arg1 : i32, i32
  }
  func.func @transform_2(%arg0: i32, %arg1: i32, %arg2: i32) -> (i32, i32) {
    %c0_i32 = arith.constant 0 : i32
    return %arg0, %arg1 : i32, i32
  }
}

module attributes {stable_mosaic.version = 11 : i64} {
  func.func @_rope_rotate_kernel(%arg0: i32, %arg1: i32, %arg2: memref<1x8x16xbf16, #tpu.memory_space<vmem>>, %arg3: memref<8x16xf32, #tpu.memory_space<vmem>>, %arg4: memref<8x16xf32, #tpu.memory_space<vmem>>, %arg5: memref<1x8x16xbf16, #tpu.memory_space<vmem>>) attributes {dimension_semantics = [#tpu.dimension_semantics<parallel>, #tpu.dimension_semantics<parallel>], iteration_bounds = array<i64: 2, 1>, scalar_prefetch = 0 : i64, scratch_operands = 0 : i64, tpu.core_type = #tpu.core_type<tc>, window_params = [{transform_indices = @transform_0, window_bounds = array<i64: 1, 8, 16>}, {transform_indices = @transform_1, window_bounds = array<i64: 8, 16>}, {transform_indices = @transform_2, window_bounds = array<i64: 8, 16>}, {transform_indices = @transform_3, window_bounds = array<i64: 1, 8, 16>}]} {
    %c0 = arith.constant 0 : index
    %c0_0 = arith.constant 0 : index
    %c0_1 = arith.constant 0 : index
    %0 = vector.load %arg2[%c0, %c0_0, %c0_1] : memref<1x8x16xbf16, #tpu.memory_space<vmem>>, vector<1x8x16xbf16>
    %1 = vector.shape_cast %0 : vector<1x8x16xbf16> to vector<8x16xbf16>
    %2 = arith.extf %1 : vector<8x16xbf16> to vector<8x16xf32>
    %3 = vector.extract_strided_slice %2 {offsets = [0, 8], sizes = [8, 8], strides = [1, 1]} : vector<8x16xf32> to vector<8x8xf32>
    %4 = vector.extract_strided_slice %2 {offsets = [0, 0], sizes = [8, 8], strides = [1, 1]} : vector<8x16xf32> to vector<8x8xf32>
    %5 = tpu.concatenate %3, %4 in 1 : vector<8x8xf32>, vector<8x8xf32> -> vector<8x16xf32>
    %c0_2 = arith.constant 0 : index
    %c0_3 = arith.constant 0 : index
    %6 = vector.load %arg3[%c0_2, %c0_3] : memref<8x16xf32, #tpu.memory_space<vmem>>, vector<8x16xf32>
    %7 = arith.mulf %2, %6 : vector<8x16xf32>
    %c0_4 = arith.constant 0 : index
    %c0_5 = arith.constant 0 : index
    %8 = vector.load %arg4[%c0_4, %c0_5] : memref<8x16xf32, #tpu.memory_space<vmem>>, vector<8x16xf32>
    %9 = arith.mulf %5, %8 : vector<8x16xf32>
    %10 = arith.addf %7, %9 : vector<8x16xf32>
    %11 = arith.truncf %10 : vector<8x16xf32> to vector<8x16xbf16>
    %c0_6 = arith.constant 0 : index
    %c0_7 = arith.constant 0 : index
    %c0_8 = arith.constant 0 : index
    %12 = vector.load %arg5[%c0_6, %c0_7, %c0_8] : memref<1x8x16xbf16, #tpu.memory_space<vmem>>, vector<1x8x16xbf16>
    %13 = vector.shape_cast %12 : vector<1x8x16xbf16> to vector<8x16xbf16>
    %14 = vector.shape_cast %11 : vector<8x16xbf16> to vector<1x8x16xbf16>
    tpu.vector_store %arg5[%c0_6, %c0_7, %c0_8], %14 {strides = array<i32>} : memref<1x8x16xbf16, #tpu.memory_space<vmem>>, vector<1x8x16xbf16>,
    return
  }
  func.func @transform_0(%arg0: i32, %arg1: i32) -> (i32, i32, i32) {
    %c0_i32 = arith.constant 0 : i32
    %c0_i32_0 = arith.constant 0 : i32
    return %arg0, %arg1, %c0_i32 : i32, i32, i32
  }
  func.func @transform_1(%arg0: i32, %arg1: i32) -> (i32, i32) {
    %c0_i32 = arith.constant 0 : i32
    %c0_i32_0 = arith.constant 0 : i32
    return %arg1, %c0_i32 : i32, i32
  }
  func.func @transform_2(%arg0: i32, %arg1: i32) -> (i32, i32) {
    %c0_i32 = arith.constant 0 : i32
    %c0_i32_0 = arith.constant 0 : i32
    return %arg1, %c0_i32 : i32, i32
  }
  func.func @transform_3(%arg0: i32, %arg1: i32) -> (i32, i32, i32) {
    %c0_i32 = arith.constant 0 : i32
    %c0_i32_0 = arith.constant 0 : i32
    return %arg0, %arg1, %c0_i32 : i32, i32, i32
  }
}

module attributes {stable_mosaic.version = 11 : i64} {
  func.func @_matmul_bias_kernel(%arg0: i32, %arg1: i32, %arg2: i32, %arg3: memref<16x16xbf16, #tpu.memory_space<vmem>>, %arg4: memref<16x32xbf16, #tpu.memory_space<vmem>>, %arg5: memref<1x32xf32, #tpu.memory_space<vmem>>, %arg6: memref<16x32xbf16, #tpu.memory_space<vmem>>, %arg7: memref<16x32xf32, #tpu.memory_space<vmem>>) attributes {dimension_semantics = [#tpu.dimension_semantics<parallel>, #tpu.dimension_semantics<parallel>, #tpu.dimension_semantics<arbitrary>], iteration_bounds = array<i64: 1, 1, 1>, scalar_prefetch = 0 : i64, scratch_operands = 1 : i64, tpu.core_type = #tpu.core_type<tc>, window_params = [{transform_indices = @transform_0, window_bounds = array<i64: 16, 16>}, {transform_indices = @transform_1, window_bounds = array<i64: 16, 32>}, {transform_indices = @transform_2, window_bounds = array<i64: 1, 32>}, {transform_indices = @transform_3, window_bounds = array<i64: 16, 32>}]} {
    %c0_i32 = arith.constant 0 : i32
    %0 = arith.cmpi eq, %arg2, %c0_i32 : i32
    %1 = arith.extui %0 : i1 to i32
    %c0_i32_0 = arith.constant 0 : i32
    %2 = arith.cmpi ne, %1, %c0_i32_0 : i32
    scf.if %2 {
      %cst_10 = arith.constant 0.000000e+00 : f32
      %12 = vector.broadcast %cst_10 : f32 to vector<16x32xf32>
      %c0_11 = arith.constant 0 : index
      %c0_12 = arith.constant 0 : index
      %13 = vector.load %arg7[%c0_11, %c0_12] : memref<16x32xf32, #tpu.memory_space<vmem>>, vector<16x32xf32>
      tpu.vector_store %arg7[%c0_11, %c0_12], %12 {strides = array<i32>} : memref<16x32xf32, #tpu.memory_space<vmem>>, vector<16x32xf32>,
    } else {
    }
    %c0 = arith.constant 0 : index
    %c0_1 = arith.constant 0 : index
    %3 = vector.load %arg7[%c0, %c0_1] : memref<16x32xf32, #tpu.memory_space<vmem>>, vector<16x32xf32>
    %c0_2 = arith.constant 0 : index
    %c0_3 = arith.constant 0 : index
    %4 = vector.load %arg3[%c0_2, %c0_3] : memref<16x16xbf16, #tpu.memory_space<vmem>>, vector<16x16xbf16>
    %c0_4 = arith.constant 0 : index
    %c0_5 = arith.constant 0 : index
    %5 = vector.load %arg4[%c0_4, %c0_5] : memref<16x32xbf16, #tpu.memory_space<vmem>>, vector<16x32xbf16>
    %cst = arith.constant dense<0.000000e+00> : vector<16x32xf32>
    %6 = tpu.matmul %4, %5, %cst {dimension_numbers = #tpu.dot_dimension_numbers<[1], [0], [0], [1], [0, 0, 1, 1], [], []>} : vector<16x16xbf16>, vector<16x32xbf16>, vector<16x32xf32> -> vector<16x32xf32>
    %7 = arith.addf %3, %6 : vector<16x32xf32>
    %c0_6 = arith.constant 0 : index
    %c0_7 = arith.constant 0 : index
    %8 = vector.load %arg7[%c0_6, %c0_7] : memref<16x32xf32, #tpu.memory_space<vmem>>, vector<16x32xf32>
    tpu.vector_store %arg7[%c0_6, %c0_7], %7 {strides = array<i32>} : memref<16x32xf32, #tpu.memory_space<vmem>>, vector<16x32xf32>,
    %c0_i32_8 = arith.constant 0 : i32
    %9 = arith.cmpi eq, %arg2, %c0_i32_8 : i32
    %10 = arith.extui %9 : i1 to i32
    %c0_i32_9 = arith.constant 0 : i32
    %11 = arith.cmpi ne, %10, %c0_i32_9 : i32
    scf.if %11 {
      %c0_10 = arith.constant 0 : index
      %c0_11 = arith.constant 0 : index
      %12 = vector.load %arg7[%c0_10, %c0_11] : memref<16x32xf32, #tpu.memory_space<vmem>>, vector<16x32xf32>
      %c0_12 = arith.constant 0 : index
      %c0_13 = arith.constant 0 : index
      %13 = vector.load %arg5[%c0_12, %c0_13] : memref<1x32xf32, #tpu.memory_space<vmem>>, vector<1x32xf32>
      %14 = vector.broadcast %13 : vector<1x32xf32> to vector<16x32xf32>
      %15 = arith.addf %12, %14 : vector<16x32xf32>
      %16 = arith.truncf %15 : vector<16x32xf32> to vector<16x32xbf16>
      %c0_14 = arith.constant 0 : index
      %c0_15 = arith.constant 0 : index
      %17 = vector.load %arg6[%c0_14, %c0_15] : memref<16x32xbf16, #tpu.memory_space<vmem>>, vector<16x32xbf16>
      tpu.vector_store %arg6[%c0_14, %c0_15], %16 {strides = array<i32>} : memref<16x32xbf16, #tpu.memory_space<vmem>>, vector<16x32xbf16>,
    } else {
    }
    return
  }
  func.func @transform_0(%arg0: i32, %arg1: i32, %arg2: i32) -> (i32, i32) {
    %c0_i32 = arith.constant 0 : i32
    return %arg0, %arg2 : i32, i32
  }
  func.func @transform_1(%arg0: i32, %arg1: i32, %arg2: i32) -> (i32, i32) {
    %c0_i32 = arith.constant 0 : i32
    return %arg2, %arg1 : i32, i32
  }
  func.func @transform_2(%arg0: i32, %arg1: i32, %arg2: i32) -> (i32, i32) {
    %c0_i32 = arith.constant 0 : i32
    %c0_i32_0 = arith.constant 0 : i32
    return %c0_i32, %arg1 : i32, i32
  }
  func.func @transform_3(%arg0: i32, %arg1: i32, %arg2: i32) -> (i32, i32) {
    %c0_i32 = arith.constant 0 : i32
    return %arg0, %arg1 : i32, i32
  }
}

module attributes {stable_mosaic.version = 11 : i64} {
  func.func @_rope_rotate_kernel(%arg0: i32, %arg1: i32, %arg2: memref<1x8x32xbf16, #tpu.memory_space<vmem>>, %arg3: memref<8x32xf32, #tpu.memory_space<vmem>>, %arg4: memref<8x32xf32, #tpu.memory_space<vmem>>, %arg5: memref<1x8x32xbf16, #tpu.memory_space<vmem>>) attributes {dimension_semantics = [#tpu.dimension_semantics<parallel>, #tpu.dimension_semantics<parallel>], iteration_bounds = array<i64: 2, 1>, scalar_prefetch = 0 : i64, scratch_operands = 0 : i64, tpu.core_type = #tpu.core_type<tc>, window_params = [{transform_indices = @transform_0, window_bounds = array<i64: 1, 8, 32>}, {transform_indices = @transform_1, window_bounds = array<i64: 8, 32>}, {transform_indices = @transform_2, window_bounds = array<i64: 8, 32>}, {transform_indices = @transform_3, window_bounds = array<i64: 1, 8, 32>}]} {
    %c0 = arith.constant 0 : index
    %c0_0 = arith.constant 0 : index
    %c0_1 = arith.constant 0 : index
    %0 = vector.load %arg2[%c0, %c0_0, %c0_1] : memref<1x8x32xbf16, #tpu.memory_space<vmem>>, vector<1x8x32xbf16>
    %1 = vector.shape_cast %0 : vector<1x8x32xbf16> to vector<8x32xbf16>
    %2 = arith.extf %1 : vector<8x32xbf16> to vector<8x32xf32>
    %3 = vector.extract_strided_slice %2 {offsets = [0, 16], sizes = [8, 16], strides = [1, 1]} : vector<8x32xf32> to vector<8x16xf32>
    %4 = vector.extract_strided_slice %2 {offsets = [0, 0], sizes = [8, 16], strides = [1, 1]} : vector<8x32xf32> to vector<8x16xf32>
    %5 = tpu.concatenate %3, %4 in 1 : vector<8x16xf32>, vector<8x16xf32> -> vector<8x32xf32>
    %c0_2 = arith.constant 0 : index
    %c0_3 = arith.constant 0 : index
    %6 = vector.load %arg3[%c0_2, %c0_3] : memref<8x32xf32, #tpu.memory_space<vmem>>, vector<8x32xf32>
    %7 = arith.mulf %2, %6 : vector<8x32xf32>
    %c0_4 = arith.constant 0 : index
    %c0_5 = arith.constant 0 : index
    %8 = vector.load %arg4[%c0_4, %c0_5] : memref<8x32xf32, #tpu.memory_space<vmem>>, vector<8x32xf32>
    %9 = arith.mulf %5, %8 : vector<8x32xf32>
    %10 = arith.addf %7, %9 : vector<8x32xf32>
    %11 = arith.truncf %10 : vector<8x32xf32> to vector<8x32xbf16>
    %c0_6 = arith.constant 0 : index
    %c0_7 = arith.constant 0 : index
    %c0_8 = arith.constant 0 : index
    %12 = vector.load %arg5[%c0_6, %c0_7, %c0_8] : memref<1x8x32xbf16, #tpu.memory_space<vmem>>, vector<1x8x32xbf16>
    %13 = vector.shape_cast %12 : vector<1x8x32xbf16> to vector<8x32xbf16>
    %14 = vector.shape_cast %11 : vector<8x32xbf16> to vector<1x8x32xbf16>
    tpu.vector_store %arg5[%c0_6, %c0_7, %c0_8], %14 {strides = array<i32>} : memref<1x8x32xbf16, #tpu.memory_space<vmem>>, vector<1x8x32xbf16>,
    return
  }
  func.func @transform_0(%arg0: i32, %arg1: i32) -> (i32, i32, i32) {
    %c0_i32 = arith.constant 0 : i32
    %c0_i32_0 = arith.constant 0 : i32
    return %arg0, %arg1, %c0_i32 : i32, i32, i32
  }
  func.func @transform_1(%arg0: i32, %arg1: i32) -> (i32, i32) {
    %c0_i32 = arith.constant 0 : i32
    %c0_i32_0 = arith.constant 0 : i32
    return %arg1, %c0_i32 : i32, i32
  }
  func.func @transform_2(%arg0: i32, %arg1: i32) -> (i32, i32) {
    %c0_i32 = arith.constant 0 : i32
    %c0_i32_0 = arith.constant 0 : i32
    return %arg1, %c0_i32 : i32, i32
  }
  func.func @transform_3(%arg0: i32, %arg1: i32) -> (i32, i32, i32) {
    %c0_i32 = arith.constant 0 : i32
    %c0_i32_0 = arith.constant 0 : i32
    return %arg0, %arg1, %c0_i32 : i32, i32, i32
  }
}

module attributes {stable_mosaic.version = 11 : i64} {
  func.func @_matmul_kernel(%arg0: i32, %arg1: i32, %arg2: i32, %arg3: memref<16x32xbf16, #tpu.memory_space<vmem>>, %arg4: memref<32x32xbf16, #tpu.memory_space<vmem>>, %arg5: memref<16x32xbf16, #tpu.memory_space<vmem>>, %arg6: memref<16x32xf32, #tpu.memory_space<vmem>>) attributes {dimension_semantics = [#tpu.dimension_semantics<parallel>, #tpu.dimension_semantics<parallel>, #tpu.dimension_semantics<arbitrary>], iteration_bounds = array<i64: 1, 1, 1>, scalar_prefetch = 0 : i64, scratch_operands = 1 : i64, tpu.core_type = #tpu.core_type<tc>, window_params = [{transform_indices = @transform_0, window_bounds = array<i64: 16, 32>}, {transform_indices = @transform_1, window_bounds = array<i64: 32, 32>}, {transform_indices = @transform_2, window_bounds = array<i64: 16, 32>}]} {
    %c0_i32 = arith.constant 0 : i32
    %0 = arith.cmpi eq, %arg2, %c0_i32 : i32
    %1 = arith.extui %0 : i1 to i32
    %c0_i32_0 = arith.constant 0 : i32
    %2 = arith.cmpi ne, %1, %c0_i32_0 : i32
    scf.if %2 {
      %cst_10 = arith.constant 0.000000e+00 : f32
      %12 = vector.broadcast %cst_10 : f32 to vector<16x32xf32>
      %c0_11 = arith.constant 0 : index
      %c0_12 = arith.constant 0 : index
      %13 = vector.load %arg6[%c0_11, %c0_12] : memref<16x32xf32, #tpu.memory_space<vmem>>, vector<16x32xf32>
      tpu.vector_store %arg6[%c0_11, %c0_12], %12 {strides = array<i32>} : memref<16x32xf32, #tpu.memory_space<vmem>>, vector<16x32xf32>,
    } else {
    }
    %c0 = arith.constant 0 : index
    %c0_1 = arith.constant 0 : index
    %3 = vector.load %arg6[%c0, %c0_1] : memref<16x32xf32, #tpu.memory_space<vmem>>, vector<16x32xf32>
    %c0_2 = arith.constant 0 : index
    %c0_3 = arith.constant 0 : index
    %4 = vector.load %arg3[%c0_2, %c0_3] : memref<16x32xbf16, #tpu.memory_space<vmem>>, vector<16x32xbf16>
    %c0_4 = arith.constant 0 : index
    %c0_5 = arith.constant 0 : index
    %5 = vector.load %arg4[%c0_4, %c0_5] : memref<32x32xbf16, #tpu.memory_space<vmem>>, vector<32x32xbf16>
    %cst = arith.constant dense<0.000000e+00> : vector<16x32xf32>
    %6 = tpu.matmul %4, %5, %cst {dimension_numbers = #tpu.dot_dimension_numbers<[1], [0], [0], [1], [0, 0, 1, 1], [], []>} : vector<16x32xbf16>, vector<32x32xbf16>, vector<16x32xf32> -> vector<16x32xf32>
    %7 = arith.addf %3, %6 : vector<16x32xf32>
    %c0_6 = arith.constant 0 : index
    %c0_7 = arith.constant 0 : index
    %8 = vector.load %arg6[%c0_6, %c0_7] : memref<16x32xf32, #tpu.memory_space<vmem>>, vector<16x32xf32>
    tpu.vector_store %arg6[%c0_6, %c0_7], %7 {strides = array<i32>} : memref<16x32xf32, #tpu.memory_space<vmem>>, vector<16x32xf32>,
    %c0_i32_8 = arith.constant 0 : i32
    %9 = arith.cmpi eq, %arg2, %c0_i32_8 : i32
    %10 = arith.extui %9 : i1 to i32
    %c0_i32_9 = arith.constant 0 : i32
    %11 = arith.cmpi ne, %10, %c0_i32_9 : i32
    scf.if %11 {
      %c0_10 = arith.constant 0 : index
      %c0_11 = arith.constant 0 : index
      %12 = vector.load %arg6[%c0_10, %c0_11] : memref<16x32xf32, #tpu.memory_space<vmem>>, vector<16x32xf32>
      %13 = arith.truncf %12 : vector<16x32xf32> to vector<16x32xbf16>
      %c0_12 = arith.constant 0 : index
      %c0_13 = arith.constant 0 : index
      %14 = vector.load %arg5[%c0_12, %c0_13] : memref<16x32xbf16, #tpu.memory_space<vmem>>, vector<16x32xbf16>
      tpu.vector_store %arg5[%c0_12, %c0_13], %13 {strides = array<i32>} : memref<16x32xbf16, #tpu.memory_space<vmem>>, vector<16x32xbf16>,
    } else {
    }
    return
  }
  func.func @transform_0(%arg0: i32, %arg1: i32, %arg2: i32) -> (i32, i32) {
    %c0_i32 = arith.constant 0 : i32
    return %arg0, %arg2 : i32, i32
  }
  func.func @transform_1(%arg0: i32, %arg1: i32, %arg2: i32) -> (i32, i32) {
    %c0_i32 = arith.constant 0 : i32
    return %arg2, %arg1 : i32, i32
  }
  func.func @transform_2(%arg0: i32, %arg1: i32, %arg2: i32) -> (i32, i32) {
    %c0_i32 = arith.constant 0 : i32
    return %arg0, %arg1 : i32, i32
  }
}

module attributes {stable_mosaic.version = 11 : i64} {
  func.func @_matmul_bias_kernel(%arg0: i32, %arg1: i32, %arg2: i32, %arg3: memref<16x32xbf16, #tpu.memory_space<vmem>>, %arg4: memref<32x64xbf16, #tpu.memory_space<vmem>>, %arg5: memref<1x64xf32, #tpu.memory_space<vmem>>, %arg6: memref<16x64xbf16, #tpu.memory_space<vmem>>, %arg7: memref<16x64xf32, #tpu.memory_space<vmem>>) attributes {dimension_semantics = [#tpu.dimension_semantics<parallel>, #tpu.dimension_semantics<parallel>, #tpu.dimension_semantics<arbitrary>], iteration_bounds = array<i64: 1, 1, 1>, scalar_prefetch = 0 : i64, scratch_operands = 1 : i64, tpu.core_type = #tpu.core_type<tc>, window_params = [{transform_indices = @transform_0, window_bounds = array<i64: 16, 32>}, {transform_indices = @transform_1, window_bounds = array<i64: 32, 64>}, {transform_indices = @transform_2, window_bounds = array<i64: 1, 64>}, {transform_indices = @transform_3, window_bounds = array<i64: 16, 64>}]} {
    %c0_i32 = arith.constant 0 : i32
    %0 = arith.cmpi eq, %arg2, %c0_i32 : i32
    %1 = arith.extui %0 : i1 to i32
    %c0_i32_0 = arith.constant 0 : i32
    %2 = arith.cmpi ne, %1, %c0_i32_0 : i32
    scf.if %2 {
      %cst_10 = arith.constant 0.000000e+00 : f32
      %12 = vector.broadcast %cst_10 : f32 to vector<16x64xf32>
      %c0_11 = arith.constant 0 : index
      %c0_12 = arith.constant 0 : index
      %13 = vector.load %arg7[%c0_11, %c0_12] : memref<16x64xf32, #tpu.memory_space<vmem>>, vector<16x64xf32>
      tpu.vector_store %arg7[%c0_11, %c0_12], %12 {strides = array<i32>} : memref<16x64xf32, #tpu.memory_space<vmem>>, vector<16x64xf32>,
    } else {
    }
    %c0 = arith.constant 0 : index
    %c0_1 = arith.constant 0 : index
    %3 = vector.load %arg7[%c0, %c0_1] : memref<16x64xf32, #tpu.memory_space<vmem>>, vector<16x64xf32>
    %c0_2 = arith.constant 0 : index
    %c0_3 = arith.constant 0 : index
    %4 = vector.load %arg3[%c0_2, %c0_3] : memref<16x32xbf16, #tpu.memory_space<vmem>>, vector<16x32xbf16>
    %c0_4 = arith.constant 0 : index
    %c0_5 = arith.constant 0 : index
    %5 = vector.load %arg4[%c0_4, %c0_5] : memref<32x64xbf16, #tpu.memory_space<vmem>>, vector<32x64xbf16>
    %cst = arith.constant dense<0.000000e+00> : vector<16x64xf32>
    %6 = tpu.matmul %4, %5, %cst {dimension_numbers = #tpu.dot_dimension_numbers<[1], [0], [0], [1], [0, 0, 1, 1], [], []>} : vector<16x32xbf16>, vector<32x64xbf16>, vector<16x64xf32> -> vector<16x64xf32>
    %7 = arith.addf %3, %6 : vector<16x64xf32>
    %c0_6 = arith.constant 0 : index
    %c0_7 = arith.constant 0 : index
    %8 = vector.load %arg7[%c0_6, %c0_7] : memref<16x64xf32, #tpu.memory_space<vmem>>, vector<16x64xf32>
    tpu.vector_store %arg7[%c0_6, %c0_7], %7 {strides = array<i32>} : memref<16x64xf32, #tpu.memory_space<vmem>>, vector<16x64xf32>,
    %c0_i32_8 = arith.constant 0 : i32
    %9 = arith.cmpi eq, %arg2, %c0_i32_8 : i32
    %10 = arith.extui %9 : i1 to i32
    %c0_i32_9 = arith.constant 0 : i32
    %11 = arith.cmpi ne, %10, %c0_i32_9 : i32
    scf.if %11 {
      %c0_10 = arith.constant 0 : index
      %c0_11 = arith.constant 0 : index
      %12 = vector.load %arg7[%c0_10, %c0_11] : memref<16x64xf32, #tpu.memory_space<vmem>>, vector<16x64xf32>
      %c0_12 = arith.constant 0 : index
      %c0_13 = arith.constant 0 : index
      %13 = vector.load %arg5[%c0_12, %c0_13] : memref<1x64xf32, #tpu.memory_space<vmem>>, vector<1x64xf32>
      %14 = vector.broadcast %13 : vector<1x64xf32> to vector<16x64xf32>
      %15 = arith.addf %12, %14 : vector<16x64xf32>
      %16 = arith.truncf %15 : vector<16x64xf32> to vector<16x64xbf16>
      %c0_14 = arith.constant 0 : index
      %c0_15 = arith.constant 0 : index
      %17 = vector.load %arg6[%c0_14, %c0_15] : memref<16x64xbf16, #tpu.memory_space<vmem>>, vector<16x64xbf16>
      tpu.vector_store %arg6[%c0_14, %c0_15], %16 {strides = array<i32>} : memref<16x64xbf16, #tpu.memory_space<vmem>>, vector<16x64xbf16>,
    } else {
    }
    return
  }
  func.func @transform_0(%arg0: i32, %arg1: i32, %arg2: i32) -> (i32, i32) {
    %c0_i32 = arith.constant 0 : i32
    return %arg0, %arg2 : i32, i32
  }
  func.func @transform_1(%arg0: i32, %arg1: i32, %arg2: i32) -> (i32, i32) {
    %c0_i32 = arith.constant 0 : i32
    return %arg2, %arg1 : i32, i32
  }
  func.func @transform_2(%arg0: i32, %arg1: i32, %arg2: i32) -> (i32, i32) {
    %c0_i32 = arith.constant 0 : i32
    %c0_i32_0 = arith.constant 0 : i32
    return %c0_i32, %arg1 : i32, i32
  }
  func.func @transform_3(%arg0: i32, %arg1: i32, %arg2: i32) -> (i32, i32) {
    %c0_i32 = arith.constant 0 : i32
    return %arg0, %arg1 : i32, i32
  }
}

module attributes {stable_mosaic.version = 11 : i64} {
  func.func @_flash_attn_kernel(%arg0: i32, %arg1: i32, %arg2: i32, %arg3: i32, %arg4: memref<1x2x8x16xbf16, #tpu.memory_space<vmem>>, %arg5: memref<1x1x8x16xbf16, #tpu.memory_space<vmem>>, %arg6: memref<1x1x8x16xbf16, #tpu.memory_space<vmem>>, %arg7: memref<1x2x8x16xbf16, #tpu.memory_space<vmem>>, %arg8: memref<16x1xf32, #tpu.memory_space<vmem>>, %arg9: memref<16x1xf32, #tpu.memory_space<vmem>>, %arg10: memref<16x16xf32, #tpu.memory_space<vmem>>) attributes {dimension_semantics = [#tpu.dimension_semantics<parallel>, #tpu.dimension_semantics<parallel>, #tpu.dimension_semantics<parallel>, #tpu.dimension_semantics<arbitrary>], iteration_bounds = array<i64: 2, 2, 1, 1>, scalar_prefetch = 0 : i64, scratch_operands = 3 : i64, tpu.core_type = #tpu.core_type<tc>, window_params = [{transform_indices = @transform_0, window_bounds = array<i64: 1, 2, 8, 16>}, {transform_indices = @transform_1, window_bounds = array<i64: 1, 1, 8, 16>}, {transform_indices = @transform_2, window_bounds = array<i64: 1, 1, 8, 16>}, {transform_indices = @transform_3, window_bounds = array<i64: 1, 2, 8, 16>}]} {
    %c0_i32 = arith.constant 0 : i32
    %0 = arith.cmpi eq, %arg3, %c0_i32 : i32
    %1 = arith.extui %0 : i1 to i32
    %c0_i32_0 = arith.constant 0 : i32
    %2 = arith.cmpi ne, %1, %c0_i32_0 : i32
    scf.if %2 {
      %cst = arith.constant -1.000000e+30 : f32
      %13 = vector.broadcast %cst : f32 to vector<16x1xf32>
      %c0 = arith.constant 0 : index
      %c0_6 = arith.constant 0 : index
      %14 = vector.load %arg8[%c0, %c0_6] : memref<16x1xf32, #tpu.memory_space<vmem>>, vector<16x1xf32>
      tpu.vector_store %arg8[%c0, %c0_6], %13 {strides = array<i32>} : memref<16x1xf32, #tpu.memory_space<vmem>>, vector<16x1xf32>,
      %cst_7 = arith.constant 0.000000e+00 : f32
      %15 = vector.broadcast %cst_7 : f32 to vector<16x1xf32>
      %c0_8 = arith.constant 0 : index
      %c0_9 = arith.constant 0 : index
      %16 = vector.load %arg9[%c0_8, %c0_9] : memref<16x1xf32, #tpu.memory_space<vmem>>, vector<16x1xf32>
      tpu.vector_store %arg9[%c0_8, %c0_9], %15 {strides = array<i32>} : memref<16x1xf32, #tpu.memory_space<vmem>>, vector<16x1xf32>,
      %cst_10 = arith.constant 0.000000e+00 : f32
      %17 = vector.broadcast %cst_10 : f32 to vector<16x16xf32>
      %c0_11 = arith.constant 0 : index
      %c0_12 = arith.constant 0 : index
      %18 = vector.load %arg10[%c0_11, %c0_12] : memref<16x16xf32, #tpu.memory_space<vmem>>, vector<16x16xf32>
      tpu.vector_store %arg10[%c0_11, %c0_12], %17 {strides = array<i32>} : memref<16x16xf32, #tpu.memory_space<vmem>>, vector<16x16xf32>,
    } else {
    }
    %c8_i32 = arith.constant 8 : i32
    %3 = arith.muli %arg3, %c8_i32 : i32
    %c8_i32_1 = arith.constant 8 : i32
    %4 = arith.muli %arg2, %c8_i32_1 : i32
    %c8_i32_2 = arith.constant 8 : i32
    %5 = arith.addi %4, %c8_i32_2 : i32
    %c1_i32 = arith.constant 1 : i32
    %6 = arith.subi %5, %c1_i32 : i32
    %7 = arith.cmpi sle, %3, %6 : i32
    %8 = arith.extui %7 : i1 to i32
    %c0_i32_3 = arith.constant 0 : i32
    %9 = arith.cmpi ne, %8, %c0_i32_3 : i32
    scf.if %9 {
      %c0 = arith.constant 0 : index
      %c0_6 = arith.constant 0 : index
      %c0_7 = arith.constant 0 : index
      %c0_8 = arith.constant 0 : index
      %13 = vector.load %arg4[%c0, %c0_6, %c0_7, %c0_8] : memref<1x2x8x16xbf16, #tpu.memory_space<vmem>>, vector<1x2x8x16xbf16>
      %14 = vector.shape_cast %13 : vector<1x2x8x16xbf16> to vector<2x8x16xbf16>
      %15 = vector.shape_cast %14 : vector<2x8x16xbf16> to vector<16x16xbf16>
      %c0_9 = arith.constant 0 : index
      %c0_10 = arith.constant 0 : index
      %c0_11 = arith.constant 0 : index
      %c0_12 = arith.constant 0 : index
      %16 = vector.load %arg5[%c0_9, %c0_10, %c0_11, %c0_12] : memref<1x1x8x16xbf16, #tpu.memory_space<vmem>>, vector<1x1x8x16xbf16>
      %17 = vector.shape_cast %16 : vector<1x1x8x16xbf16> to vector<8x16xbf16>
      %c0_13 = arith.constant 0 : index
      %c0_14 = arith.constant 0 : index
      %c0_15 = arith.constant 0 : index
      %c0_16 = arith.constant 0 : index
      %18 = vector.load %arg6[%c0_13, %c0_14, %c0_15, %c0_16] : memref<1x1x8x16xbf16, #tpu.memory_space<vmem>>, vector<1x1x8x16xbf16>
      %19 = vector.shape_cast %18 : vector<1x1x8x16xbf16> to vector<8x16xbf16>
      %cst = arith.constant dense<0.000000e+00> : vector<16x8xf32>
      %20 = tpu.matmul %15, %17, %cst {dimension_numbers = #tpu.dot_dimension_numbers<[1], [1], [0], [0], [0, 0, 1, 0], [], []>} : vector<16x16xbf16>, vector<8x16xbf16>, vector<16x8xf32> -> vector<16x8xf32>
      %cst_17 = arith.constant 2.500000e-01 : f32
      %21 = vector.broadcast %cst_17 : f32 to vector<16x8xf32>
      %22 = arith.mulf %20, %21 : vector<16x8xf32>
      %c8_i32_18 = arith.constant 8 : i32
      %23 = arith.muli %arg2, %c8_i32_18 : i32
      %24 = tpu.iota {dimensions = array<i32: 1>} : vector<2x8x8xi32>
      %25 = vector.shape_cast %24 : vector<2x8x8xi32> to vector<16x8xi32>
      %26 = vector.broadcast %23 : i32 to vector<16x8xi32>
      %27 = arith.addi %26, %25 : vector<16x8xi32>
      %c8_i32_19 = arith.constant 8 : i32
      %28 = arith.muli %arg3, %c8_i32_19 : i32
      %29 = tpu.iota {dimensions = array<i32: 1>} : vector<16x8xi32>
      %30 = vector.broadcast %28 : i32 to vector<16x8xi32>
      %31 = arith.addi %30, %29 : vector<16x8xi32>
      %32 = arith.cmpi sle, %31, %27 : vector<16x8xi32>
      %cst_20 = arith.constant -1.000000e+30 : f32
      %33 = vector.broadcast %cst_20 : f32 to vector<16x8xf32>
      %34 = arith.select %32, %22, %33 : vector<16x8xi1>, vector<16x8xf32>
      %c0_21 = arith.constant 0 : index
      %c0_22 = arith.constant 0 : index
      %35 = vector.load %arg8[%c0_21, %c0_22] : memref<16x1xf32, #tpu.memory_space<vmem>>, vector<16x1xf32>
      %cst_23 = arith.constant dense<0xFF800000> : vector<16xf32>
      %36 = vector.multi_reduction <maximumf>, %34, %cst_23 [1] : vector<16x8xf32> to vector<16xf32>
      %37 = vector.shape_cast %36 : vector<16xf32> to vector<16x1xf32>
      %38 = arith.maximumf %35, %37 : vector<16x1xf32>
      %39 = arith.subf %35, %38 : vector<16x1xf32>
      %40 = math.exp %39 : vector<16x1xf32>
      %41 = vector.broadcast %38 : vector<16x1xf32> to vector<16x8xf32>
      %42 = arith.subf %34, %41 : vector<16x8xf32>
      %43 = math.exp %42 : vector<16x8xf32>
      %c0_24 = arith.constant 0 : index
      %c0_25 = arith.constant 0 : index
      %44 = vector.load %arg9[%c0_24, %c0_25] : memref<16x1xf32, #tpu.memory_space<vmem>>, vector<16x1xf32>
      %45 = arith.mulf %40, %44 : vector<16x1xf32>
      %cst_26 = arith.constant dense<0.000000e+00> : vector<16xf32>
      %46 = vector.multi_reduction <add>, %43, %cst_26 [1] : vector<16x8xf32> to vector<16xf32>
      %47 = vector.shape_cast %46 : vector<16xf32> to vector<16x1xf32>
      %48 = arith.addf %45, %47 : vector<16x1xf32>
      %c0_27 = arith.constant 0 : index
      %c0_28 = arith.constant 0 : index
      %49 = vector.load %arg9[%c0_27, %c0_28] : memref<16x1xf32, #tpu.memory_space<vmem>>, vector<16x1xf32>
      tpu.vector_store %arg9[%c0_27, %c0_28], %48 {strides = array<i32>} : memref<16x1xf32, #tpu.memory_space<vmem>>, vector<16x1xf32>,
      %c0_29 = arith.constant 0 : index
      %c0_30 = arith.constant 0 : index
      %50 = vector.load %arg10[%c0_29, %c0_30] : memref<16x16xf32, #tpu.memory_space<vmem>>, vector<16x16xf32>
      %51 = vector.broadcast %40 : vector<16x1xf32> to vector<16x16xf32>
      %52 = arith.mulf %51, %50 : vector<16x16xf32>
      %53 = arith.truncf %43 : vector<16x8xf32> to vector<16x8xbf16>
      %cst_31 = arith.constant dense<0.000000e+00> : vector<16x16xf32>
      %54 = tpu.matmul %53, %19, %cst_31 {dimension_numbers = #tpu.dot_dimension_numbers<[1], [0], [0], [1], [0, 0, 1, 1], [], []>} : vector<16x8xbf16>, vector<8x16xbf16>, vector<16x16xf32> -> vector<16x16xf32>
      %55 = arith.addf %52, %54 : vector<16x16xf32>
      %c0_32 = arith.constant 0 : index
      %c0_33 = arith.constant 0 : index
      %56 = vector.load %arg10[%c0_32, %c0_33] : memref<16x16xf32, #tpu.memory_space<vmem>>, vector<16x16xf32>
      tpu.vector_store %arg10[%c0_32, %c0_33], %55 {strides = array<i32>} : memref<16x16xf32, #tpu.memory_space<vmem>>, vector<16x16xf32>,
      %c0_34 = arith.constant 0 : index
      %c0_35 = arith.constant 0 : index
      %57 = vector.load %arg8[%c0_34, %c0_35] : memref<16x1xf32, #tpu.memory_space<vmem>>, vector<16x1xf32>
      tpu.vector_store %arg8[%c0_34, %c0_35], %38 {strides = array<i32>} : memref<16x1xf32, #tpu.memory_space<vmem>>, vector<16x1xf32>,
    } else {
    }
    %c0_i32_4 = arith.constant 0 : i32
    %10 = arith.cmpi eq, %arg3, %c0_i32_4 : i32
    %11 = arith.extui %10 : i1 to i32
    %c0_i32_5 = arith.constant 0 : i32
    %12 = arith.cmpi ne, %11, %c0_i32_5 : i32
    scf.if %12 {
      %c0 = arith.constant 0 : index
      %c0_6 = arith.constant 0 : index
      %13 = vector.load %arg9[%c0, %c0_6] : memref<16x1xf32, #tpu.memory_space<vmem>>, vector<16x1xf32>
      %14 = tpu.reciprocal %13 {approx = true} : vector<16x1xf32> -> vector<16x1xf32>
      %c0_7 = arith.constant 0 : index
      %c0_8 = arith.constant 0 : index
      %15 = vector.load %arg10[%c0_7, %c0_8] : memref<16x16xf32, #tpu.memory_space<vmem>>, vector<16x16xf32>
      %16 = vector.broadcast %14 : vector<16x1xf32> to vector<16x16xf32>
      %17 = arith.mulf %15, %16 : vector<16x16xf32>
      %18 = arith.truncf %17 : vector<16x16xf32> to vector<16x16xbf16>
      %19 = vector.shape_cast %18 : vector<16x16xbf16> to vector<1x2x8x16xbf16>
      %c0_9 = arith.constant 0 : index
      %c0_10 = arith.constant 0 : index
      %c0_11 = arith.constant 0 : index
      %c0_12 = arith.constant 0 : index
      %20 = vector.load %arg7[%c0_9, %c0_10, %c0_11, %c0_12] : memref<1x2x8x16xbf16, #tpu.memory_space<vmem>>, vector<1x2x8x16xbf16>
      tpu.vector_store %arg7[%c0_9, %c0_10, %c0_11, %c0_12], %19 {strides = array<i32>} : memref<1x2x8x16xbf16, #tpu.memory_space<vmem>>, vector<1x2x8x16xbf16>,
    } else {
    }
    return
  }
  func.func @transform_0(%arg0: i32, %arg1: i32, %arg2: i32, %arg3: i32) -> (i32, i32, i32, i32) {
    %c0_i32 = arith.constant 0 : i32
    %c0_i32_0 = arith.constant 0 : i32
    return %arg0, %arg1, %arg2, %c0_i32 : i32, i32, i32, i32
  }
  func.func @transform_1(%arg0: i32, %arg1: i32, %arg2: i32, %arg3: i32) -> (i32, i32, i32, i32) {
    %c0_i32 = arith.constant 0 : i32
    %c0_i32_0 = arith.constant 0 : i32
    return %arg0, %arg1, %arg3, %c0_i32 : i32, i32, i32, i32
  }
  func.func @transform_2(%arg0: i32, %arg1: i32, %arg2: i32, %arg3: i32) -> (i32, i32, i32, i32) {
    %c0_i32 = arith.constant 0 : i32
    %c0_i32_0 = arith.constant 0 : i32
    return %arg0, %arg1, %arg3, %c0_i32 : i32, i32, i32, i32
  }
  func.func @transform_3(%arg0: i32, %arg1: i32, %arg2: i32, %arg3: i32) -> (i32, i32, i32, i32) {
    %c0_i32 = arith.constant 0 : i32
    %c0_i32_0 = arith.constant 0 : i32
    return %arg0, %arg1, %arg2, %c0_i32 : i32, i32, i32, i32
  }
}

module attributes {stable_mosaic.version = 11 : i64} {
  func.func @_matmul_kernel(%arg0: i32, %arg1: i32, %arg2: i32, %arg3: memref<16x64xbf16, #tpu.memory_space<vmem>>, %arg4: memref<64x64xbf16, #tpu.memory_space<vmem>>, %arg5: memref<16x64xf32, #tpu.memory_space<vmem>>, %arg6: memref<16x64xf32, #tpu.memory_space<vmem>>) attributes {dimension_semantics = [#tpu.dimension_semantics<parallel>, #tpu.dimension_semantics<parallel>, #tpu.dimension_semantics<arbitrary>], iteration_bounds = array<i64: 1, 1, 1>, scalar_prefetch = 0 : i64, scratch_operands = 1 : i64, tpu.core_type = #tpu.core_type<tc>, window_params = [{transform_indices = @transform_0, window_bounds = array<i64: 16, 64>}, {transform_indices = @transform_1, window_bounds = array<i64: 64, 64>}, {transform_indices = @transform_2, window_bounds = array<i64: 16, 64>}]} {
    %c0_i32 = arith.constant 0 : i32
    %0 = arith.cmpi eq, %arg2, %c0_i32 : i32
    %1 = arith.extui %0 : i1 to i32
    %c0_i32_0 = arith.constant 0 : i32
    %2 = arith.cmpi ne, %1, %c0_i32_0 : i32
    scf.if %2 {
      %cst_10 = arith.constant 0.000000e+00 : f32
      %12 = vector.broadcast %cst_10 : f32 to vector<16x64xf32>
      %c0_11 = arith.constant 0 : index
      %c0_12 = arith.constant 0 : index
      %13 = vector.load %arg6[%c0_11, %c0_12] : memref<16x64xf32, #tpu.memory_space<vmem>>, vector<16x64xf32>
      tpu.vector_store %arg6[%c0_11, %c0_12], %12 {strides = array<i32>} : memref<16x64xf32, #tpu.memory_space<vmem>>, vector<16x64xf32>,
    } else {
    }
    %c0 = arith.constant 0 : index
    %c0_1 = arith.constant 0 : index
    %3 = vector.load %arg6[%c0, %c0_1] : memref<16x64xf32, #tpu.memory_space<vmem>>, vector<16x64xf32>
    %c0_2 = arith.constant 0 : index
    %c0_3 = arith.constant 0 : index
    %4 = vector.load %arg3[%c0_2, %c0_3] : memref<16x64xbf16, #tpu.memory_space<vmem>>, vector<16x64xbf16>
    %c0_4 = arith.constant 0 : index
    %c0_5 = arith.constant 0 : index
    %5 = vector.load %arg4[%c0_4, %c0_5] : memref<64x64xbf16, #tpu.memory_space<vmem>>, vector<64x64xbf16>
    %cst = arith.constant dense<0.000000e+00> : vector<16x64xf32>
    %6 = tpu.matmul %4, %5, %cst {dimension_numbers = #tpu.dot_dimension_numbers<[1], [0], [0], [1], [0, 0, 1, 1], [], []>} : vector<16x64xbf16>, vector<64x64xbf16>, vector<16x64xf32> -> vector<16x64xf32>
    %7 = arith.addf %3, %6 : vector<16x64xf32>
    %c0_6 = arith.constant 0 : index
    %c0_7 = arith.constant 0 : index
    %8 = vector.load %arg6[%c0_6, %c0_7] : memref<16x64xf32, #tpu.memory_space<vmem>>, vector<16x64xf32>
    tpu.vector_store %arg6[%c0_6, %c0_7], %7 {strides = array<i32>} : memref<16x64xf32, #tpu.memory_space<vmem>>, vector<16x64xf32>,
    %c0_i32_8 = arith.constant 0 : i32
    %9 = arith.cmpi eq, %arg2, %c0_i32_8 : i32
    %10 = arith.extui %9 : i1 to i32
    %c0_i32_9 = arith.constant 0 : i32
    %11 = arith.cmpi ne, %10, %c0_i32_9 : i32
    scf.if %11 {
      %c0_10 = arith.constant 0 : index
      %c0_11 = arith.constant 0 : index
      %12 = vector.load %arg6[%c0_10, %c0_11] : memref<16x64xf32, #tpu.memory_space<vmem>>, vector<16x64xf32>
      %c0_12 = arith.constant 0 : index
      %c0_13 = arith.constant 0 : index
      %13 = vector.load %arg5[%c0_12, %c0_13] : memref<16x64xf32, #tpu.memory_space<vmem>>, vector<16x64xf32>
      tpu.vector_store %arg5[%c0_12, %c0_13], %12 {strides = array<i32>} : memref<16x64xf32, #tpu.memory_space<vmem>>, vector<16x64xf32>,
    } else {
    }
    return
  }
  func.func @transform_0(%arg0: i32, %arg1: i32, %arg2: i32) -> (i32, i32) {
    %c0_i32 = arith.constant 0 : i32
    return %arg0, %arg2 : i32, i32
  }
  func.func @transform_1(%arg0: i32, %arg1: i32, %arg2: i32) -> (i32, i32) {
    %c0_i32 = arith.constant 0 : i32
    return %arg2, %arg1 : i32, i32
  }
  func.func @transform_2(%arg0: i32, %arg1: i32, %arg2: i32) -> (i32, i32) {
    %c0_i32 = arith.constant 0 : i32
    return %arg0, %arg1 : i32, i32
  }
}

</mosaic_0001>

<llo_original>
// kernel: _lambda_.10
$region0: #{_lambda_.10}
  #allocation0 [shape = 'u32[]', space=smem, size = 0x4, offset = 0x4, fixed_abs, tag = 'smem constant byte address 0x4 - core index']
  #allocation1 [shape = 'u32[144,128]{1,0:T(1,128)}', space=vmem, size = 0x12000, scoped, tag = 'internal scratch']
  #allocation2 [shape = 'f32[16,64]{1,0:T(8,128)}', space=vmem, size = 0x2000, scoped, tag = 'scratch operand']
  %s0 = inlined_call_operand.vmem [shape: bf16[16,64], index: 0, kind: input, shape index: {}]
  %s1 = inlined_call_operand.vmem [shape: bf16[64,64], index: 1, kind: input, shape index: {}]
  %s2 = inlined_call_operand.vmem [shape: f32[1,64], index: 2, kind: input, shape index: {}]
  %s3 = inlined_call_operand.vmem [shape: bf16[16,64], index: 3, kind: output, shape index: {}]
  %s4 = sld [smem:[#allocation0]]
  $region30: #{_lambda_.10} parent=0
    _
  %s6 = ssub.s32 1, %s4
  %s7 = scalar_select 0, %s6, %s4
  // Predicated region
  $region2: #{_lambda_.10} parent=0 // pred_check
    _
  $region3: #{_lambda_.10} parent=0 // pred_check_branch
    %9 = sbr.rel (0) target = $region5
  $region4: #{_lambda_.10} parent=0 // pred_region
    _
  $region5: #{_lambda_.10} parent=0 // pred_fallthru
    _
  // Predicated region
  $region6: #{_lambda_.10} parent=0 // pred_check
    _
  $region7: #{_lambda_.10} parent=0 // pred_check_branch
    %11 = sbr.rel (0) target = $region9
  $region8: #{_lambda_.10} parent=0 // pred_region
    _
  $region9: #{_lambda_.10} parent=0 // pred_fallthru
    _
  // Predicated region
  $region10: #{_lambda_.10} parent=0 // pred_check
    _
  $region11: #{_lambda_.10} parent=0 // pred_check_branch
    %13 = sbr.rel (0) target = $region13
  $region12: #{_lambda_.10} parent=0 // pred_region
    _
  $region13: #{_lambda_.10} parent=0 // pred_fallthru
    _
  %p15 = scmp.eq.s32.totalorder 0, 0
  // Predicated region
  $region14: #{_lambda_.10} parent=0 // pred_check
    %p16 = pneg %p15
  $region15: #{_lambda_.10} parent=0 // pred_check_branch
    %18 = sbr.rel (%p16) target = $region17
  $region16: #{_lambda_.10} parent=0 // pred_region
    %vm19 = vcmask 523264
    %20 = vst.msk [vmem:[#allocation2] sm:$0xff] %vm19, 0.0
    %21 = vst.msk [vmem:[#allocation2 + $0x8] sm:$0xff] %vm19, 0.0
  $region17: #{_lambda_.10} parent=0 // pred_fallthru
    _
  %v22 = vld [vmem:[#allocation2] sm:$0xff]
  %v23 = vld [vmem:[#allocation2 + $0x8] sm:$0xff]
  %v24 = vld [vmem:[%s0] sm:$0xf]
  %v25 = vld [vmem:[%s0 + $0x4] sm:$0xf]
  %v26 = vld [vmem:[%s1] sm:$0xf]
  %v27 = vld [vmem:[%s1 + $0x4] sm:$0xf]
  %v28 = vld [vmem:[%s1 + $0x8] sm:$0xf]
  %v29 = vld [vmem:[%s1 + $0xc] sm:$0xf]
  %v30 = vld [vmem:[%s1 + $0x10] sm:$0xf]
  %v31 = vld [vmem:[%s1 + $0x14] sm:$0xf]
  %v32 = vld [vmem:[%s1 + $0x18] sm:$0xf]
  %v33 = vld [vmem:[%s1 + $0x1c] sm:$0xf]
  %v36 = vunpack.c.l.b16 %v24
  %v37 = vunpack.c.l.b16 %v25
  %v38 = vpack.c.b16 %v37, %v36
  %v47 = vunpack.c.l.b16 %v26
  %v48 = vunpack.c.l.b16 %v27
  %v49 = vunpack.c.l.b16 %v28
  %v50 = vunpack.c.l.b16 %v29
  %v51 = vunpack.c.l.b16 %v30
  %v52 = vunpack.c.l.b16 %v31
  %v53 = vunpack.c.l.b16 %v32
  %v54 = vunpack.c.l.b16 %v33
  %v55 = vpack.c.b16 %v48, %v47
  %v56 = vpack.c.b16 %v50, %v49
  %v57 = vpack.c.b16 %v52, %v51
  %v58 = vpack.c.b16 %v54, %v53
  %vm63 = vcmask 523264
  %v65 = vsel %vm63, %v38, 0
  %67 = vmatprep.subr.bf16.mxu0 0
  %68 = vmatpush1.bf16.msra.mxu0 %v55
  %69 = vmatprep.subr.bf16.mxu0 0
  %70 = vmatpush1.bf16.msra.mxu0 %v56
  %71 = vmatprep.subr.bf16.mxu0 0
  %72 = vmatpush1.bf16.msra.mxu0 %v57
  %73 = vmatprep.subr.bf16.mxu0 0
  %74 = vmatpush1.bf16.msra.mxu0 %v58
  %75 = vmatprep.subr.bf16.mxu0 0
  %76 = vmatpush1.bf16.msra.mxu0 0
  %77 = vmatprep.subr.bf16.mxu0 0
  %78 = vmatpush1.bf16.msra.mxu0 0
  %79 = vmatprep.subr.bf16.mxu0 0
  %80 = vmatpush1.bf16.msra.mxu0 0
  %81 = vmatprep.subr.bf16.mxu0 0
  %82 = vmatpush1.bf16.msra.mxu0 0
  %83 = vmatprep.subr.bf16.mxu0 0
  %84 = vmatpush1.bf16.msra.mxu0 0
  %85 = vmatprep.subr.bf16.mxu0 0
  %86 = vmatpush1.bf16.msra.mxu0 0
  %87 = vmatprep.subr.bf16.mxu0 0
  %88 = vmatpush1.bf16.msra.mxu0 0
  %89 = vmatprep.subr.bf16.mxu0 0
  %90 = vmatpush1.bf16.msra.mxu0 0
  %91 = vmatprep.subr.bf16.mxu0 0
  %92 = vmatpush1.bf16.msra.mxu0 0
  %93 = vmatprep.subr.bf16.mxu0 0
  %94 = vmatpush1.bf16.msra.mxu0 0
  %95 = vmatprep.subr.bf16.mxu0 0
  %96 = vmatpush1.bf16.msra.mxu0 0
  %97 = vmatprep.subr.bf16.mxu0 0
  %98 = vmatpush1.bf16.msra.mxu0 0
  %99 = vmatprep.mubr.bf16.mxu0 0
  %100 = vmatmul.mubr.bf16.gmra.mrb[0].mxu0 %v65
  %v101 = vpop.f32.mrb[0].mxu0
  %v102 = vadd.f32 0.0, %v101
  %v103 = vpop.f32.mrb[0].mxu0
  %v104 = vpop.f32.mrb[0].mxu0
  %v105 = vadd.f32 0.0, %v104
  %v106 = vpop.f32.mrb[0].mxu0
  %107 = vdwg.mxu0
  %v108 = vadd.f32 %v22, %v102
  %v109 = vadd.f32 %v23, %v105
  %110 = vst.msk [vmem:[#allocation2] sm:$0xff] %vm63, %v108
  %111 = vst.msk [vmem:[#allocation2 + $0x8] sm:$0xff] %vm63, %v109
  // Predicated region
  $region18: #{_lambda_.10} parent=0 // pred_check
    %p112 = pneg %p15
  $region19: #{_lambda_.10} parent=0 // pred_check_branch
    %114 = sbr.rel (%p112) target = $region21
  $region20: #{_lambda_.10} parent=0 // pred_region
    %v115 = vld [vmem:[#allocation2] sm:$0xff]
    %v116 = vld [vmem:[#allocation2 + $0x8] sm:$0xff]
    %v117 = vld [vmem:[%s2] sm:$0x1]
    %v119 = vlaneseq
    %v120 = vshrl.u32 %v119, 7
    %v121 = vsub.s32 0, %v120
    %v122 = vrot.slane %v117, %v121
    %v124 = vadd.f32 %v115, %v122
    %v125 = vadd.f32 %v116, %v122
    %v126 = vpack.c.bf16 %v125, %v124
    %v128 = vunpack.c.l.b16 %v126
    %v129 = vunpack.c.h.b16 %v126
    %v130 = vpack.c.b16 %v128, %v128
    %v131 = vpack.c.b16 %v129, %v129
    %vm134 = vcmask 519168
    %135 = vst.msk [vmem:[%s3] sm:$0xf] %vm134, %v130
    %136 = vst.msk [vmem:[%s3 + $0x4] sm:$0xf] %vm134, %v131
  $region21: #{_lambda_.10} parent=0 // pred_fallthru
    _
  // Predicated region
  $region22: #{_lambda_.10} parent=0 // pred_check
    _
  $region23: #{_lambda_.10} parent=0 // pred_check_branch
    %138 = sbr.rel (0) target = $region25
  $region24: #{_lambda_.10} parent=0 // pred_region
    _
  $region25: #{_lambda_.10} parent=0 // pred_fallthru
    _
  // Predicated region
  $region26: #{_lambda_.10} parent=0 // pred_check
    _
  $region27: #{_lambda_.10} parent=0 // pred_check_branch
    %140 = sbr.rel (0) target = $region29
  $region28: #{_lambda_.10} parent=0 // pred_region
    _
  $region29: #{_lambda_.10} parent=0 // pred_fallthru
    _

// kernel: _lambda_.12
$region0: #{_lambda_.12}
  #allocation0 [shape = 'u32[]', space=smem, size = 0x4, offset = 0x4, fixed_abs, tag = 'smem constant byte address 0x4 - core index']
  #allocation1 [shape = 'u32[144,128]{1,0:T(1,128)}', space=vmem, size = 0x12000, scoped, tag = 'internal scratch']
  #allocation2 [shape = 'f32[16,16]{1,0:T(8,128)}', space=vmem, size = 0x2000, scoped, tag = 'scratch operand']
  %s0 = inlined_call_operand.vmem [shape: bf16[16,16], index: 0, kind: input, shape index: {}]
  %s1 = inlined_call_operand.vmem [shape: bf16[16,16], index: 1, kind: input, shape index: {}]
  %s2 = inlined_call_operand.vmem [shape: bf16[16,16], index: 2, kind: output, shape index: {}]
  %s3 = sld [smem:[#allocation0]]
  $region26: #{_lambda_.12} parent=0
    _
  %s5 = ssub.s32 1, %s3
  %s6 = scalar_select 0, %s5, %s3
  // Predicated region
  $region2: #{_lambda_.12} parent=0 // pred_check
    _
  $region3: #{_lambda_.12} parent=0 // pred_check_branch
    %8 = sbr.rel (0) target = $region5
  $region4: #{_lambda_.12} parent=0 // pred_region
    _
  $region5: #{_lambda_.12} parent=0 // pred_fallthru
    _
  // Predicated region
  $region6: #{_lambda_.12} parent=0 // pred_check
    _
  $region7: #{_lambda_.12} parent=0 // pred_check_branch
    %10 = sbr.rel (0) target = $region9
  $region8: #{_lambda_.12} parent=0 // pred_region
    _
  $region9: #{_lambda_.12} parent=0 // pred_fallthru
    _
  %p12 = scmp.eq.s32.totalorder 0, 0
  // Predicated region
  $region10: #{_lambda_.12} parent=0 // pred_check
    %p13 = pneg %p12
  $region11: #{_lambda_.12} parent=0 // pred_check_branch
    %15 = sbr.rel (%p13) target = $region13
  $region12: #{_lambda_.12} parent=0 // pred_region
    %vm16 = vcmask 130048
    %17 = vst.msk [vmem:[#allocation2] sm:$0xff] %vm16, 0.0
    %18 = vst.msk [vmem:[#allocation2 + $0x8] sm:$0xff] %vm16, 0.0
  $region13: #{_lambda_.12} parent=0 // pred_fallthru
    _
  %v19 = vld [vmem:[#allocation2] sm:$0xff]
  %v20 = vld [vmem:[#allocation2 + $0x8] sm:$0xff]
  %v21 = vld [vmem:[%s0] sm:$0xf]
  %v22 = vld [vmem:[%s0 + $0x4] sm:$0xf]
  %v23 = vld [vmem:[%s1] sm:$0xf]
  %v24 = vld [vmem:[%s1 + $0x4] sm:$0xf]
  %v27 = vunpack.c.l.b16 %v21
  %v28 = vunpack.c.l.b16 %v22
  %v29 = vpack.c.b16 %v28, %v27
  %v32 = vunpack.c.l.b16 %v23
  %v33 = vunpack.c.l.b16 %v24
  %v34 = vpack.c.b16 %v33, %v32
  %vm36 = vcmask 130048
  %v38 = vsel %vm36, %v29, 0
  %40 = vmatprep.subr.bf16.mxu0 0
  %41 = vmatpush1.bf16.msra.mxu0 %v34
  %42 = vmatprep.subr.bf16.mxu0 0
  %43 = vmatpush1.bf16.msra.mxu0 0
  %44 = vmatprep.subr.bf16.mxu0 0
  %45 = vmatpush1.bf16.msra.mxu0 0
  %46 = vmatprep.subr.bf16.mxu0 0
  %47 = vmatpush1.bf16.msra.mxu0 0
  %48 = vmatprep.subr.bf16.mxu0 0
  %49 = vmatpush1.bf16.msra.mxu0 0
  %50 = vmatprep.subr.bf16.mxu0 0
  %51 = vmatpush1.bf16.msra.mxu0 0
  %52 = vmatprep.subr.bf16.mxu0 0
  %53 = vmatpush1.bf16.msra.mxu0 0
  %54 = vmatprep.subr.bf16.mxu0 0
  %55 = vmatpush1.bf16.msra.mxu0 0
  %56 = vmatprep.subr.bf16.mxu0 0
  %57 = vmatpush1.bf16.msra.mxu0 0
  %58 = vmatprep.subr.bf16.mxu0 0
  %59 = vmatpush1.bf16.msra.mxu0 0
  %60 = vmatprep.subr.bf16.mxu0 0
  %61 = vmatpush1.bf16.msra.mxu0 0
  %62 = vmatprep.subr.bf16.mxu0 0
  %63 = vmatpush1.bf16.msra.mxu0 0
  %64 = vmatprep.subr.bf16.mxu0 0
  %65 = vmatpush1.bf16.msra.mxu0 0
  %66 = vmatprep.subr.bf16.mxu0 0
  %67 = vmatpush1.bf16.msra.mxu0 0
  %68 = vmatprep.subr.bf16.mxu0 0
  %69 = vmatpush1.bf16.msra.mxu0 0
  %70 = vmatprep.subr.bf16.mxu0 0
  %71 = vmatpush1.bf16.msra.mxu0 0
  %72 = vmatprep.mubr.bf16.mxu0 0
  %73 = vmatmul.mubr.bf16.gmra.mrb[0].mxu0 %v38
  %v74 = vpop.f32.mrb[0].mxu0
  %v75 = vadd.f32 0.0, %v74
  %v76 = vpop.f32.mrb[0].mxu0
  %v77 = vpop.f32.mrb[0].mxu0
  %v78 = vadd.f32 0.0, %v77
  %v79 = vpop.f32.mrb[0].mxu0
  %80 = vdwg.mxu0
  %v81 = vadd.f32 %v19, %v75
  %v82 = vadd.f32 %v20, %v78
  %83 = vst.msk [vmem:[#allocation2] sm:$0xff] %vm36, %v81
  %84 = vst.msk [vmem:[#allocation2 + $0x8] sm:$0xff] %vm36, %v82
  // Predicated region
  $region14: #{_lambda_.12} parent=0 // pred_check
    %p85 = pneg %p12
  $region15: #{_lambda_.12} parent=0 // pred_check_branch
    %87 = sbr.rel (%p85) target = $region17
  $region16: #{_lambda_.12} parent=0 // pred_region
    %v88 = vld [vmem:[#allocation2] sm:$0xff]
    %v89 = vld [vmem:[#allocation2 + $0x8] sm:$0xff]
    %v90 = vpack.c.bf16 %v89, %v88
    %v92 = vunpack.c.l.b16 %v90
    %v93 = vunpack.c.h.b16 %v90
    %v94 = vpack.c.b16 %v92, %v92
    %v95 = vpack.c.b16 %v93, %v93
    %vm98 = vcmask 125952
    %99 = vst.msk [vmem:[%s2] sm:$0xf] %vm98, %v94
    %100 = vst.msk [vmem:[%s2 + $0x4] sm:$0xf] %vm98, %v95
  $region17: #{_lambda_.12} parent=0 // pred_fallthru
    _
  // Predicated region
  $region18: #{_lambda_.12} parent=0 // pred_check
    _
  $region19: #{_lambda_.12} parent=0 // pred_check_branch
    %102 = sbr.rel (0) target = $region21
  $region20: #{_lambda_.12} parent=0 // pred_region
    _
  $region21: #{_lambda_.12} parent=0 // pred_fallthru
    _
  // Predicated region
  $region22: #{_lambda_.12} parent=0 // pred_check
    _
  $region23: #{_lambda_.12} parent=0 // pred_check_branch
    %104 = sbr.rel (0) target = $region25
  $region24: #{_lambda_.12} parent=0 // pred_region
    _
  $region25: #{_lambda_.12} parent=0 // pred_fallthru
    _

// kernel: _lambda_.16
$region0: #{_lambda_.16}
  #allocation0 [shape = 'u32[]', space=smem, size = 0x4, offset = 0x4, fixed_abs, tag = 'smem constant byte address 0x4 - core index']
  #allocation1 [shape = 'u32[144,128]{1,0:T(1,128)}', space=vmem, size = 0x12000, scoped, tag = 'internal scratch']
  #allocation2 [shape = 'f32[16,32]{1,0:T(8,128)}', space=vmem, size = 0x2000, scoped, tag = 'scratch operand']
  %s0 = inlined_call_operand.vmem [shape: bf16[16,16], index: 0, kind: input, shape index: {}]
  %s1 = inlined_call_operand.vmem [shape: bf16[16,32], index: 1, kind: input, shape index: {}]
  %s2 = inlined_call_operand.vmem [shape: f32[1,32], index: 2, kind: input, shape index: {}]
  %s3 = inlined_call_operand.vmem [shape: bf16[16,32], index: 3, kind: output, shape index: {}]
  %s4 = sld [smem:[#allocation0]]
  $region30: #{_lambda_.16} parent=0
    _
  %s6 = ssub.s32 1, %s4
  %s7 = scalar_select 0, %s6, %s4
  // Predicated region
  $region2: #{_lambda_.16} parent=0 // pred_check
    _
  $region3: #{_lambda_.16} parent=0 // pred_check_branch
    %9 = sbr.rel (0) target = $region5
  $region4: #{_lambda_.16} parent=0 // pred_region
    _
  $region5: #{_lambda_.16} parent=0 // pred_fallthru
    _
  // Predicated region
  $region6: #{_lambda_.16} parent=0 // pred_check
    _
  $region7: #{_lambda_.16} parent=0 // pred_check_branch
    %11 = sbr.rel (0) target = $region9
  $region8: #{_lambda_.16} parent=0 // pred_region
    _
  $region9: #{_lambda_.16} parent=0 // pred_fallthru
    _
  // Predicated region
  $region10: #{_lambda_.16} parent=0 // pred_check
    _
  $region11: #{_lambda_.16} parent=0 // pred_check_branch
    %13 = sbr.rel (0) target = $region13
  $region12: #{_lambda_.16} parent=0 // pred_region
    _
  $region13: #{_lambda_.16} parent=0 // pred_fallthru
    _
  %p15 = scmp.eq.s32.totalorder 0, 0
  // Predicated region
  $region14: #{_lambda_.16} parent=0 // pred_check
    %p16 = pneg %p15
  $region15: #{_lambda_.16} parent=0 // pred_check_branch
    %18 = sbr.rel (%p16) target = $region17
  $region16: #{_lambda_.16} parent=0 // pred_region
    %vm19 = vcmask 261120
    %20 = vst.msk [vmem:[#allocation2] sm:$0xff] %vm19, 0.0
    %21 = vst.msk [vmem:[#allocation2 + $0x8] sm:$0xff] %vm19, 0.0
  $region17: #{_lambda_.16} parent=0 // pred_fallthru
    _
  %v22 = vld [vmem:[#allocation2] sm:$0xff]
  %v23 = vld [vmem:[#allocation2 + $0x8] sm:$0xff]
  %v24 = vld [vmem:[%s0] sm:$0xf]
  %v25 = vld [vmem:[%s0 + $0x4] sm:$0xf]
  %v26 = vld [vmem:[%s1] sm:$0xf]
  %v27 = vld [vmem:[%s1 + $0x4] sm:$0xf]
  %v30 = vunpack.c.l.b16 %v24
  %v31 = vunpack.c.l.b16 %v25
  %v32 = vpack.c.b16 %v31, %v30
  %v35 = vunpack.c.l.b16 %v26
  %v36 = vunpack.c.l.b16 %v27
  %v37 = vpack.c.b16 %v36, %v35
  %vm39 = vcmask 130048
  %v41 = vsel %vm39, %v32, 0
  %43 = vmatprep.subr.bf16.mxu0 0
  %44 = vmatpush1.bf16.msra.mxu0 %v37
  %45 = vmatprep.subr.bf16.mxu0 0
  %46 = vmatpush1.bf16.msra.mxu0 0
  %47 = vmatprep.subr.bf16.mxu0 0
  %48 = vmatpush1.bf16.msra.mxu0 0
  %49 = vmatprep.subr.bf16.mxu0 0
  %50 = vmatpush1.bf16.msra.mxu0 0
  %51 = vmatprep.subr.bf16.mxu0 0
  %52 = vmatpush1.bf16.msra.mxu0 0
  %53 = vmatprep.subr.bf16.mxu0 0
  %54 = vmatpush1.bf16.msra.mxu0 0
  %55 = vmatprep.subr.bf16.mxu0 0
  %56 = vmatpush1.bf16.msra.mxu0 0
  %57 = vmatprep.subr.bf16.mxu0 0
  %58 = vmatpush1.bf16.msra.mxu0 0
  %59 = vmatprep.subr.bf16.mxu0 0
  %60 = vmatpush1.bf16.msra.mxu0 0
  %61 = vmatprep.subr.bf16.mxu0 0
  %62 = vmatpush1.bf16.msra.mxu0 0
  %63 = vmatprep.subr.bf16.mxu0 0
  %64 = vmatpush1.bf16.msra.mxu0 0
  %65 = vmatprep.subr.bf16.mxu0 0
  %66 = vmatpush1.bf16.msra.mxu0 0
  %67 = vmatprep.subr.bf16.mxu0 0
  %68 = vmatpush1.bf16.msra.mxu0 0
  %69 = vmatprep.subr.bf16.mxu0 0
  %70 = vmatpush1.bf16.msra.mxu0 0
  %71 = vmatprep.subr.bf16.mxu0 0
  %72 = vmatpush1.bf16.msra.mxu0 0
  %73 = vmatprep.subr.bf16.mxu0 0
  %74 = vmatpush1.bf16.msra.mxu0 0
  %75 = vmatprep.mubr.bf16.mxu0 0
  %76 = vmatmul.mubr.bf16.gmra.mrb[0].mxu0 %v41
  %v77 = vpop.f32.mrb[0].mxu0
  %v78 = vadd.f32 0.0, %v77
  %v79 = vpop.f32.mrb[0].mxu0
  %v80 = vpop.f32.mrb[0].mxu0
  %v81 = vadd.f32 0.0, %v80
  %v82 = vpop.f32.mrb[0].mxu0
  %83 = vdwg.mxu0
  %v84 = vadd.f32 %v22, %v78
  %v85 = vadd.f32 %v23, %v81
  %vm86 = vcmask 261120
  %87 = vst.msk [vmem:[#allocation2] sm:$0xff] %vm86, %v84
  %88 = vst.msk [vmem:[#allocation2 + $0x8] sm:$0xff] %vm86, %v85
  // Predicated region
  $region18: #{_lambda_.16} parent=0 // pred_check
    %p89 = pneg %p15
  $region19: #{_lambda_.16} parent=0 // pred_check_branch
    %91 = sbr.rel (%p89) target = $region21
  $region20: #{_lambda_.16} parent=0 // pred_region
    %v92 = vld [vmem:[#allocation2] sm:$0xff]
    %v93 = vld [vmem:[#allocation2 + $0x8] sm:$0xff]
    %v94 = vld [vmem:[%s2] sm:$0x1]
    %v96 = vlaneseq
    %v97 = vshrl.u32 %v96, 7
    %v98 = vsub.s32 0, %v97
    %v99 = vrot.slane %v94, %v98
    %v101 = vadd.f32 %v92, %v99
    %v102 = vadd.f32 %v93, %v99
    %v103 = vpack.c.bf16 %v102, %v101
    %v105 = vunpack.c.l.b16 %v103
    %v106 = vunpack.c.h.b16 %v103
    %v107 = vpack.c.b16 %v105, %v105
    %v108 = vpack.c.b16 %v106, %v106
    %vm111 = vcmask 257024
    %112 = vst.msk [vmem:[%s3] sm:$0xf] %vm111, %v107
    %113 = vst.msk [vmem:[%s3 + $0x4] sm:$0xf] %vm111, %v108
  $region21: #{_lambda_.16} parent=0 // pred_fallthru
    _
  // Predicated region
  $region22: #{_lambda_.16} parent=0 // pred_check
    _
  $region23: #{_lambda_.16} parent=0 // pred_check_branch
    %115 = sbr.rel (0) target = $region25
  $region24: #{_lambda_.16} parent=0 // pred_region
    _
  $region25: #{_lambda_.16} parent=0 // pred_fallthru
    _
  // Predicated region
  $region26: #{_lambda_.16} parent=0 // pred_check
    _
  $region27: #{_lambda_.16} parent=0 // pred_check_branch
    %117 = sbr.rel (0) target = $region29
  $region28: #{_lambda_.16} parent=0 // pred_region
    _
  $region29: #{_lambda_.16} parent=0 // pred_fallthru
    _

// kernel: _lambda_.14
$region0: #{_lambda_.14}
  #allocation0 [shape = 'u32[]', space=smem, size = 0x4, offset = 0x4, fixed_abs, tag = 'smem constant byte address 0x4 - core index']
  #allocation1 [shape = 'u32[144,128]{1,0:T(1,128)}', space=vmem, size = 0x12000, scoped, tag = 'internal scratch']
  %s0 = inlined_call_operand.vmem [shape: bf16[2,8,16], index: 0, kind: input, shape index: {}]
  %s1 = inlined_call_operand.vmem [shape: f32[8,16], index: 1, kind: input, shape index: {}]
  %s2 = inlined_call_operand.vmem [shape: f32[8,16], index: 2, kind: input, shape index: {}]
  %s3 = inlined_call_operand.vmem [shape: bf16[2,8,16], index: 3, kind: output, shape index: {}]
  %s4 = sld [smem:[#allocation0]]
  $region45: #{_lambda_.14} parent=0
    _
  %s6 = ssub.s32 1, %s4
  %s7 = scalar_select 0, %s6, %s4
  loop: start=0, step=1, limit=4
  $region2: #{_lambda_.14} parent=0 // loop_pre_header
    _
  $region3: #{_lambda_.14} parent=0 // loop_header
    %s9 = sphi 0, %s13
    %p10 = scmp.ge.s32.totalorder %s9, 4
    %s16 = sphi 0, %s28
    %s17 = sphi 0, %s24
    %s18 = sphi 0, %s16
    %s19 = sphi 0, %s17
    %s20 = sphi 0, %s18
    %s21 = sphi 0, %s19
    %s33 = sphi 0, %s35
    %s36 = sphi 0, %s33
    %s37 = sphi 0, %s36
    %s53 = sphi 0, %s37
    %s59 = sphi 0, %s61
    %s62 = sphi 0, %s59
    %s63 = sphi 0, %s62
    %s79 = sphi 0, %s63
    %s85 = sphi 0, %s87
    %s88 = sphi 0, %s85
    %s89 = sphi 0, %s88
    %s105 = sphi 0, %s89
    %s113 = sphi 0, %s115
    %s116 = sphi 0, %s113
    %s117 = sphi 0, %s116
    %s133 = sphi 0, %s117
  $region4: #{_lambda_.14} parent=0 // loop_header_branch
    %12 = sbr.rel (%p10) target = $region8
  $region5: #{_lambda_.14} parent=0 // loop_body
    %s14 = ssub.s32 %s9, 1
    %s15 = ssub.s32 %s9, 2
    %s22 = sadd.s32 1, %s17
    %p23 = scmp.ge.s32.totalorder %s22, 1
    %s24 = scalar_select %p23, 0, %s22
    %s25 = sadd.s32 1, %s16
    %s26 = scalar_select %p23, %s25, %s16
    %p27 = scmp.ge.s32.totalorder %s26, 2
    %s28 = scalar_select %p27, 0, %s26
    %s29 = ssub.s32 %s16, %s28
    %s30 = ssub.s32 %s17, %s24
    %s31 = sor.u32 %s29, %s30
    %p32 = scmp.eq.s32.totalorder %s31, 0
    %s34 = sadd.s32 %s33, 1
    %s35 = scalar_select %p32, %s33, %s34
    %p38 = pneg %p32
    %p39 = scmp.eq.s32.totalorder %s9, 1
    %p40 = por %p38, %p39
    %p41 = scmp.ne.s32.totalorder %s33, %s36
    %p42 = scmp.eq.s32.totalorder %s9, 0
    %p43 = por %p41, %p42
    %p44 = scmp.ne.s32.totalorder %s33, %s36
    %p45 = scmp.eq.s32.totalorder %s14, 1
    %p46 = por %p44, %p45
    %p47 = scmp.ne.s32.totalorder %s36, %s37
    %p48 = scmp.eq.s32.totalorder %s14, 0
    %p49 = por %p47, %p48
    %p50 = scmp.ne.s32.totalorder %s36, %s37
    %p51 = scmp.eq.s32.totalorder %s15, 1
    %p52 = por %p50, %p51
    %p54 = scmp.ne.s32.totalorder %s37, %s53
    %p55 = scmp.eq.s32.totalorder %s15, 0
    %p56 = por %p54, %p55
    %s57 = ssub.s32 %s17, %s24
    %p58 = scmp.eq.s32.totalorder %s57, 0
    %s60 = sadd.s32 %s59, 1
    %s61 = scalar_select %p58, %s59, %s60
    %p64 = pneg %p58
    %p65 = scmp.eq.s32.totalorder %s9, 1
    %p66 = por %p64, %p65
    %p67 = scmp.ne.s32.totalorder %s59, %s62
    %p68 = scmp.eq.s32.totalorder %s9, 0
    %p69 = por %p67, %p68
    %p70 = scmp.ne.s32.totalorder %s59, %s62
    %p71 = scmp.eq.s32.totalorder %s14, 1
    %p72 = por %p70, %p71
    %p73 = scmp.ne.s32.totalorder %s62, %s63
    %p74 = scmp.eq.s32.totalorder %s14, 0
    %p75 = por %p73, %p74
    %p76 = scmp.ne.s32.totalorder %s62, %s63
    %p77 = scmp.eq.s32.totalorder %s15, 1
    %p78 = por %p76, %p77
    %p80 = scmp.ne.s32.totalorder %s63, %s79
    %p81 = scmp.eq.s32.totalorder %s15, 0
    %p82 = por %p80, %p81
    %s83 = ssub.s32 %s17, %s24
    %p84 = scmp.eq.s32.totalorder %s83, 0
    %s86 = sadd.s32 %s85, 1
    %s87 = scalar_select %p84, %s85, %s86
    %p90 = pneg %p84
    %p91 = scmp.eq.s32.totalorder %s9, 1
    %p92 = por %p90, %p91
    %p93 = scmp.ne.s32.totalorder %s85, %s88
    %p94 = scmp.eq.s32.totalorder %s9, 0
    %p95 = por %p93, %p94
    %p96 = scmp.ne.s32.totalorder %s85, %s88
    %p97 = scmp.eq.s32.totalorder %s14, 1
    %p98 = por %p96, %p97
    %p99 = scmp.ne.s32.totalorder %s88, %s89
    %p100 = scmp.eq.s32.totalorder %s14, 0
    %p101 = por %p99, %p100
    %p102 = scmp.ne.s32.totalorder %s88, %s89
    %p103 = scmp.eq.s32.totalorder %s15, 1
    %p104 = por %p102, %p103
    %p106 = scmp.ne.s32.totalorder %s89, %s105
    %p107 = scmp.eq.s32.totalorder %s15, 0
    %p108 = por %p106, %p107
    %s109 = ssub.s32 %s16, %s28
    %s110 = ssub.s32 %s17, %s24
    %s111 = sor.u32 %s109, %s110
    %p112 = scmp.eq.s32.totalorder %s111, 0
    %s114 = sadd.s32 %s113, 1
    %s115 = scalar_select %p112, %s113, %s114
    %p118 = pneg %p112
    %p119 = scmp.eq.s32.totalorder %s9, 1
    %p120 = por %p118, %p119
    %p121 = scmp.ne.s32.totalorder %s113, %s116
    %p122 = scmp.eq.s32.totalorder %s9, 0
    %p123 = por %p121, %p122
    %p124 = scmp.ne.s32.totalorder %s113, %s116
    %p125 = scmp.eq.s32.totalorder %s14, 1
    %p126 = por %p124, %p125
    %p127 = scmp.ne.s32.totalorder %s116, %s117
    %p128 = scmp.eq.s32.totalorder %s14, 0
    %p129 = por %p127, %p128
    %p130 = scmp.ne.s32.totalorder %s116, %s117
    %p131 = scmp.eq.s32.totalorder %s15, 1
    %p132 = por %p130, %p131
    %p134 = scmp.ne.s32.totalorder %s117, %s133
    %p135 = scmp.eq.s32.totalorder %s15, 0
    %p136 = por %p134, %p135
    %p137 = scmp.le.s32.totalorder 1, %s9
    %p138 = scmp.lt.s32.totalorder %s9, 3
    %p139 = pnand %p137, %p138
    %p140 = pneg %p139
    // Predicated region
    $region9: #{_lambda_.14} parent=5 // pred_check
      _
    $region10: #{_lambda_.14} parent=5 // pred_check_branch
      %142 = sbr.rel (%p139) target = $region12
    $region11: #{_lambda_.14} parent=5 // pred_region
      %s143 = ssub.s32 %s9, 1
      // Predicated region
      $region13: #{_lambda_.14} parent=11 // pred_check
        %p144 = pneg %p75
      $region14: #{_lambda_.14} parent=11 // pred_check_branch
        %146 = sbr.rel (%p144) target = $region16
      $region15: #{_lambda_.14} parent=11 // pred_region
        %p147 = scmp.lt.s32.totalorder %s19, 0
        %s148 = scalar_select %p147, %s19, 0
        %s149 = smul.addr %s148, 8
        %s150 = scalar_lea.vmem %s1, %s149
      $region16: #{_lambda_.14} parent=11 // pred_fallthru
        _
      // Predicated region
      $region17: #{_lambda_.14} parent=11 // pred_check
        %p151 = pneg %p101
      $region18: #{_lambda_.14} parent=11 // pred_check_branch
        %153 = sbr.rel (%p151) target = $region20
      $region19: #{_lambda_.14} parent=11 // pred_region
        %p154 = scmp.lt.s32.totalorder %s19, 0
        %s155 = scalar_select %p154, %s19, 0
        %s156 = smul.addr %s155, 8
        %s157 = scalar_lea.vmem %s2, %s156
      $region20: #{_lambda_.14} parent=11 // pred_fallthru
        _
    $region12: #{_lambda_.14} parent=5 // pred_fallthru
      _
    %p158 = scmp.lt.s32.totalorder %s9, 2
    // Predicated region
    $region21: #{_lambda_.14} parent=5 // pred_check
      %p159 = pneg %p158
    $region22: #{_lambda_.14} parent=5 // pred_check_branch
      %161 = sbr.rel (%p159) target = $region24
    $region23: #{_lambda_.14} parent=5 // pred_region
      // Predicated region
      $region25: #{_lambda_.14} parent=23 // pred_check
        %p162 = pneg %p43
      $region26: #{_lambda_.14} parent=23 // pred_check_branch
        %164 = sbr.rel (%p162) target = $region28
      $region27: #{_lambda_.14} parent=23 // pred_region
        %p165 = scmp.lt.s32.totalorder %s16, 1
        %s166 = scalar_select %p165, %s16, 1
        %p167 = scmp.lt.s32.totalorder %s17, 0
        %s168 = scalar_select %p167, %s17, 0
        %s169 = sadd.s32 %s168, %s166
        %s170 = smul.addr %s169, 4
        %s171 = scalar_lea.vmem %s0, %s170
      $region28: #{_lambda_.14} parent=23 // pred_fallthru
        _
    $region24: #{_lambda_.14} parent=5 // pred_fallthru
      _
    %p172 = scmp.le.s32.totalorder 1, %s9
    %p173 = scmp.lt.s32.totalorder %s9, 3
    %p174 = pnand %p172, %p173
    %p175 = pneg %p174
    // Predicated region
    $region29: #{_lambda_.14} parent=5 // pred_check
      _
    $region30: #{_lambda_.14} parent=5 // pred_check_branch
      %177 = sbr.rel (%p174) target = $region32
    $region31: #{_lambda_.14} parent=5 // pred_region
      %s178 = ssub.s32 %s9, 1
      %p179 = scmp.lt.s32.totalorder %s18, 1
      %s180 = scalar_select %p179, %s18, 1
      %p181 = scmp.lt.s32.totalorder %s19, 0
      %s182 = scalar_select %p181, %s19, 0
      %s183 = sadd.s32 %s182, %s180
      %s184 = smul.addr %s183, 4
      %s185 = scalar_lea.vmem %s0, %s184
      %p186 = pneg %p49
      %p187 = pneg %p46
      %p188 = scmp.lt.s32.totalorder %s19, 0
      %s189 = scalar_select %p188, %s19, 0
      %s190 = smul.addr %s189, 8
      %s191 = scalar_lea.vmem %s1, %s190
      %p192 = pneg %p75
      %p193 = pneg %p72
      %p194 = scmp.lt.s32.totalorder %s19, 0
      %s195 = scalar_select %p194, %s19, 0
      %s196 = smul.addr %s195, 8
      %s197 = scalar_lea.vmem %s2, %s196
      %p198 = pneg %p101
      %p199 = pneg %p98
      %p200 = pneg %p129
      %p201 = pneg %p126
      %p202 = scmp.lt.s32.totalorder %s18, 1
      %s203 = scalar_select %p202, %s18, 1
      %p204 = scmp.lt.s32.totalorder %s19, 0
      %s205 = scalar_select %p204, %s19, 0
      %s206 = sadd.s32 %s205, %s203
      %s207 = smul.addr %s206, 4
      %s208 = scalar_lea.vmem %s3, %s207
      %p209 = scmp.lt.s32.totalorder %s18, 1
      %s210 = scalar_select %p209, %s18, 1
      %p211 = scmp.lt.s32.totalorder %s19, 0
      %s212 = scalar_select %p211, %s19, 0
      %s213 = sadd.s32 %s212, %s210
      %s214 = smul.addr %s213, 4
      %s215 = scalar_lea.vmem %s0, %s214
      %p216 = scmp.lt.s32.totalorder %s19, 0
      %s217 = scalar_select %p216, %s19, 0
      %s218 = smul.addr %s217, 8
      %s219 = scalar_lea.vmem %s1, %s218
      %p220 = scmp.lt.s32.totalorder %s19, 0
      %s221 = scalar_select %p220, %s19, 0
      %s222 = smul.addr %s221, 8
      %s223 = scalar_lea.vmem %s2, %s222
      %p224 = scmp.lt.s32.totalorder %s18, 1
      %s225 = scalar_select %p224, %s18, 1
      %p226 = scmp.lt.s32.totalorder %s19, 0
      %s227 = scalar_select %p226, %s19, 0
      %s228 = sadd.s32 %s227, %s225
      %s229 = smul.addr %s228, 4
      %s230 = scalar_lea.vmem %s3, %s229
      %v231 = vld [vmem:[%s215] sm:$0xf]
      %v232 = vunpack.c.l.bf16 %v231
      %234 = vrot.lane.b32.xlu0 %v232, 120
      %v235 = vpop.permute.xlu0 %234
      %237 = vrot.lane.b32.xlu0 %v232, 8
      %v238 = vpop.permute.xlu0 %237
      %vm240 = vcmask 64512
      %v241 = vsel %vm240, %v235, %v238
      %v242 = vld [vmem:[%s219] sm:$0xff]
      %v243 = vmul.f32 %v232, %v242
      %v244 = vld [vmem:[%s223] sm:$0xff]
      %v245 = vmul.f32 %v241, %v244
      %v246 = vadd.f32 %v243, %v245
      %v247 = vpack.c.bf16 %v246, %v246
      %vm248 = vcmask 125952
      %249 = vst.msk [vmem:[%s230] sm:$0xf] %vm248, %v247
      %p250 = scmp.lt.s32.totalorder %s18, 1
      %s251 = scalar_select %p250, %s18, 1
      %p252 = scmp.lt.s32.totalorder %s19, 0
      %s253 = scalar_select %p252, %s19, 0
      %s254 = sadd.s32 %s253, %s251
      %s255 = smul.addr %s254, 4
      %s256 = scalar_lea.vmem %s3, %s255
      // Predicated region
      $region33: #{_lambda_.14} parent=31 // pred_check
        %p257 = pneg %p126
      $region34: #{_lambda_.14} parent=31 // pred_check_branch
        %259 = sbr.rel (%p257) target = $region36
      $region35: #{_lambda_.14} parent=31 // pred_region
        _
      $region36: #{_lambda_.14} parent=31 // pred_fallthru
        _
    $region32: #{_lambda_.14} parent=5 // pred_fallthru
      _
    %p260 = scmp.le.s32.totalorder 2, %s9
    // Predicated region
    $region37: #{_lambda_.14} parent=5 // pred_check
      %p261 = pneg %p260
    $region38: #{_lambda_.14} parent=5 // pred_check_branch
      %263 = sbr.rel (%p261) target = $region40
    $region39: #{_lambda_.14} parent=5 // pred_region
      %s264 = ssub.s32 %s9, 2
      // Predicated region
      $region41: #{_lambda_.14} parent=39 // pred_check
        %p265 = pneg %p132
      $region42: #{_lambda_.14} parent=39 // pred_check_branch
        %267 = sbr.rel (%p265) target = $region44
      $region43: #{_lambda_.14} parent=39 // pred_region
        %p268 = scmp.lt.s32.totalorder %s20, 1
        %s269 = scalar_select %p268, %s20, 1
        %p270 = scmp.lt.s32.totalorder %s21, 0
        %s271 = scalar_select %p270, %s21, 0
        %s272 = sadd.s32 %s271, %s269
        %s273 = smul.addr %s272, 4
        %s274 = scalar_lea.vmem %s3, %s273
      $region44: #{_lambda_.14} parent=39 // pred_fallthru
        _
    $region40: #{_lambda_.14} parent=5 // pred_fallthru
      _
  $region6: #{_lambda_.14} parent=0 // loop_footer
    %s13 = sadd.s32 1, %s9
  $region7: #{_lambda_.14} parent=0 // loop_footer_branch
    %8 = sbr.rel target = $region3
  $region8: #{_lambda_.14} parent=0 // loop_exit
    _

// kernel: _lambda_.13
$region0: #{_lambda_.13}
  #allocation0 [shape = 'u32[]', space=smem, size = 0x4, offset = 0x4, fixed_abs, tag = 'smem constant byte address 0x4 - core index']
  #allocation1 [shape = 'u32[144,128]{1,0:T(1,128)}', space=vmem, size = 0x12000, scoped, tag = 'internal scratch']
  %s0 = inlined_call_operand.vmem [shape: bf16[2,8,32], index: 0, kind: input, shape index: {}]
  %s1 = inlined_call_operand.vmem [shape: f32[8,32], index: 1, kind: input, shape index: {}]
  %s2 = inlined_call_operand.vmem [shape: f32[8,32], index: 2, kind: input, shape index: {}]
  %s3 = inlined_call_operand.vmem [shape: bf16[2,8,32], index: 3, kind: output, shape index: {}]
  %s4 = sld [smem:[#allocation0]]
  $region45: #{_lambda_.13} parent=0
    _
  %s6 = ssub.s32 1, %s4
  %s7 = scalar_select 0, %s6, %s4
  loop: start=0, step=1, limit=4
  $region2: #{_lambda_.13} parent=0 // loop_pre_header
    _
  $region3: #{_lambda_.13} parent=0 // loop_header
    %s9 = sphi 0, %s13
    %p10 = scmp.ge.s32.totalorder %s9, 4
    %s16 = sphi 0, %s28
    %s17 = sphi 0, %s24
    %s18 = sphi 0, %s16
    %s19 = sphi 0, %s17
    %s20 = sphi 0, %s18
    %s21 = sphi 0, %s19
    %s33 = sphi 0, %s35
    %s36 = sphi 0, %s33
    %s37 = sphi 0, %s36
    %s53 = sphi 0, %s37
    %s59 = sphi 0, %s61
    %s62 = sphi 0, %s59
    %s63 = sphi 0, %s62
    %s79 = sphi 0, %s63
    %s85 = sphi 0, %s87
    %s88 = sphi 0, %s85
    %s89 = sphi 0, %s88
    %s105 = sphi 0, %s89
    %s113 = sphi 0, %s115
    %s116 = sphi 0, %s113
    %s117 = sphi 0, %s116
    %s133 = sphi 0, %s117
  $region4: #{_lambda_.13} parent=0 // loop_header_branch
    %12 = sbr.rel (%p10) target = $region8
  $region5: #{_lambda_.13} parent=0 // loop_body
    %s14 = ssub.s32 %s9, 1
    %s15 = ssub.s32 %s9, 2
    %s22 = sadd.s32 1, %s17
    %p23 = scmp.ge.s32.totalorder %s22, 1
    %s24 = scalar_select %p23, 0, %s22
    %s25 = sadd.s32 1, %s16
    %s26 = scalar_select %p23, %s25, %s16
    %p27 = scmp.ge.s32.totalorder %s26, 2
    %s28 = scalar_select %p27, 0, %s26
    %s29 = ssub.s32 %s16, %s28
    %s30 = ssub.s32 %s17, %s24
    %s31 = sor.u32 %s29, %s30
    %p32 = scmp.eq.s32.totalorder %s31, 0
    %s34 = sadd.s32 %s33, 1
    %s35 = scalar_select %p32, %s33, %s34
    %p38 = pneg %p32
    %p39 = scmp.eq.s32.totalorder %s9, 1
    %p40 = por %p38, %p39
    %p41 = scmp.ne.s32.totalorder %s33, %s36
    %p42 = scmp.eq.s32.totalorder %s9, 0
    %p43 = por %p41, %p42
    %p44 = scmp.ne.s32.totalorder %s33, %s36
    %p45 = scmp.eq.s32.totalorder %s14, 1
    %p46 = por %p44, %p45
    %p47 = scmp.ne.s32.totalorder %s36, %s37
    %p48 = scmp.eq.s32.totalorder %s14, 0
    %p49 = por %p47, %p48
    %p50 = scmp.ne.s32.totalorder %s36, %s37
    %p51 = scmp.eq.s32.totalorder %s15, 1
    %p52 = por %p50, %p51
    %p54 = scmp.ne.s32.totalorder %s37, %s53
    %p55 = scmp.eq.s32.totalorder %s15, 0
    %p56 = por %p54, %p55
    %s57 = ssub.s32 %s17, %s24
    %p58 = scmp.eq.s32.totalorder %s57, 0
    %s60 = sadd.s32 %s59, 1
    %s61 = scalar_select %p58, %s59, %s60
    %p64 = pneg %p58
    %p65 = scmp.eq.s32.totalorder %s9, 1
    %p66 = por %p64, %p65
    %p67 = scmp.ne.s32.totalorder %s59, %s62
    %p68 = scmp.eq.s32.totalorder %s9, 0
    %p69 = por %p67, %p68
    %p70 = scmp.ne.s32.totalorder %s59, %s62
    %p71 = scmp.eq.s32.totalorder %s14, 1
    %p72 = por %p70, %p71
    %p73 = scmp.ne.s32.totalorder %s62, %s63
    %p74 = scmp.eq.s32.totalorder %s14, 0
    %p75 = por %p73, %p74
    %p76 = scmp.ne.s32.totalorder %s62, %s63
    %p77 = scmp.eq.s32.totalorder %s15, 1
    %p78 = por %p76, %p77
    %p80 = scmp.ne.s32.totalorder %s63, %s79
    %p81 = scmp.eq.s32.totalorder %s15, 0
    %p82 = por %p80, %p81
    %s83 = ssub.s32 %s17, %s24
    %p84 = scmp.eq.s32.totalorder %s83, 0
    %s86 = sadd.s32 %s85, 1
    %s87 = scalar_select %p84, %s85, %s86
    %p90 = pneg %p84
    %p91 = scmp.eq.s32.totalorder %s9, 1
    %p92 = por %p90, %p91
    %p93 = scmp.ne.s32.totalorder %s85, %s88
    %p94 = scmp.eq.s32.totalorder %s9, 0
    %p95 = por %p93, %p94
    %p96 = scmp.ne.s32.totalorder %s85, %s88
    %p97 = scmp.eq.s32.totalorder %s14, 1
    %p98 = por %p96, %p97
    %p99 = scmp.ne.s32.totalorder %s88, %s89
    %p100 = scmp.eq.s32.totalorder %s14, 0
    %p101 = por %p99, %p100
    %p102 = scmp.ne.s32.totalorder %s88, %s89
    %p103 = scmp.eq.s32.totalorder %s15, 1
    %p104 = por %p102, %p103
    %p106 = scmp.ne.s32.totalorder %s89, %s105
    %p107 = scmp.eq.s32.totalorder %s15, 0
    %p108 = por %p106, %p107
    %s109 = ssub.s32 %s16, %s28
    %s110 = ssub.s32 %s17, %s24
    %s111 = sor.u32 %s109, %s110
    %p112 = scmp.eq.s32.totalorder %s111, 0
    %s114 = sadd.s32 %s113, 1
    %s115 = scalar_select %p112, %s113, %s114
    %p118 = pneg %p112
    %p119 = scmp.eq.s32.totalorder %s9, 1
    %p120 = por %p118, %p119
    %p121 = scmp.ne.s32.totalorder %s113, %s116
    %p122 = scmp.eq.s32.totalorder %s9, 0
    %p123 = por %p121, %p122
    %p124 = scmp.ne.s32.totalorder %s113, %s116
    %p125 = scmp.eq.s32.totalorder %s14, 1
    %p126 = por %p124, %p125
    %p127 = scmp.ne.s32.totalorder %s116, %s117
    %p128 = scmp.eq.s32.totalorder %s14, 0
    %p129 = por %p127, %p128
    %p130 = scmp.ne.s32.totalorder %s116, %s117
    %p131 = scmp.eq.s32.totalorder %s15, 1
    %p132 = por %p130, %p131
    %p134 = scmp.ne.s32.totalorder %s117, %s133
    %p135 = scmp.eq.s32.totalorder %s15, 0
    %p136 = por %p134, %p135
    %p137 = scmp.le.s32.totalorder 1, %s9
    %p138 = scmp.lt.s32.totalorder %s9, 3
    %p139 = pnand %p137, %p138
    %p140 = pneg %p139
    // Predicated region
    $region9: #{_lambda_.13} parent=5 // pred_check
      _
    $region10: #{_lambda_.13} parent=5 // pred_check_branch
      %142 = sbr.rel (%p139) target = $region12
    $region11: #{_lambda_.13} parent=5 // pred_region
      %s143 = ssub.s32 %s9, 1
      // Predicated region
      $region13: #{_lambda_.13} parent=11 // pred_check
        %p144 = pneg %p75
      $region14: #{_lambda_.13} parent=11 // pred_check_branch
        %146 = sbr.rel (%p144) target = $region16
      $region15: #{_lambda_.13} parent=11 // pred_region
        %p147 = scmp.lt.s32.totalorder %s19, 0
        %s148 = scalar_select %p147, %s19, 0
        %s149 = smul.addr %s148, 8
        %s150 = scalar_lea.vmem %s1, %s149
      $region16: #{_lambda_.13} parent=11 // pred_fallthru
        _
      // Predicated region
      $region17: #{_lambda_.13} parent=11 // pred_check
        %p151 = pneg %p101
      $region18: #{_lambda_.13} parent=11 // pred_check_branch
        %153 = sbr.rel (%p151) target = $region20
      $region19: #{_lambda_.13} parent=11 // pred_region
        %p154 = scmp.lt.s32.totalorder %s19, 0
        %s155 = scalar_select %p154, %s19, 0
        %s156 = smul.addr %s155, 8
        %s157 = scalar_lea.vmem %s2, %s156
      $region20: #{_lambda_.13} parent=11 // pred_fallthru
        _
    $region12: #{_lambda_.13} parent=5 // pred_fallthru
      _
    %p158 = scmp.lt.s32.totalorder %s9, 2
    // Predicated region
    $region21: #{_lambda_.13} parent=5 // pred_check
      %p159 = pneg %p158
    $region22: #{_lambda_.13} parent=5 // pred_check_branch
      %161 = sbr.rel (%p159) target = $region24
    $region23: #{_lambda_.13} parent=5 // pred_region
      // Predicated region
      $region25: #{_lambda_.13} parent=23 // pred_check
        %p162 = pneg %p43
      $region26: #{_lambda_.13} parent=23 // pred_check_branch
        %164 = sbr.rel (%p162) target = $region28
      $region27: #{_lambda_.13} parent=23 // pred_region
        %p165 = scmp.lt.s32.totalorder %s16, 1
        %s166 = scalar_select %p165, %s16, 1
        %p167 = scmp.lt.s32.totalorder %s17, 0
        %s168 = scalar_select %p167, %s17, 0
        %s169 = sadd.s32 %s168, %s166
        %s170 = smul.addr %s169, 4
        %s171 = scalar_lea.vmem %s0, %s170
      $region28: #{_lambda_.13} parent=23 // pred_fallthru
        _
    $region24: #{_lambda_.13} parent=5 // pred_fallthru
      _
    %p172 = scmp.le.s32.totalorder 1, %s9
    %p173 = scmp.lt.s32.totalorder %s9, 3
    %p174 = pnand %p172, %p173
    %p175 = pneg %p174
    // Predicated region
    $region29: #{_lambda_.13} parent=5 // pred_check
      _
    $region30: #{_lambda_.13} parent=5 // pred_check_branch
      %177 = sbr.rel (%p174) target = $region32
    $region31: #{_lambda_.13} parent=5 // pred_region
      %s178 = ssub.s32 %s9, 1
      %p179 = scmp.lt.s32.totalorder %s18, 1
      %s180 = scalar_select %p179, %s18, 1
      %p181 = scmp.lt.s32.totalorder %s19, 0
      %s182 = scalar_select %p181, %s19, 0
      %s183 = sadd.s32 %s182, %s180
      %s184 = smul.addr %s183, 4
      %s185 = scalar_lea.vmem %s0, %s184
      %p186 = pneg %p49
      %p187 = pneg %p46
      %p188 = scmp.lt.s32.totalorder %s19, 0
      %s189 = scalar_select %p188, %s19, 0
      %s190 = smul.addr %s189, 8
      %s191 = scalar_lea.vmem %s1, %s190
      %p192 = pneg %p75
      %p193 = pneg %p72
      %p194 = scmp.lt.s32.totalorder %s19, 0
      %s195 = scalar_select %p194, %s19, 0
      %s196 = smul.addr %s195, 8
      %s197 = scalar_lea.vmem %s2, %s196
      %p198 = pneg %p101
      %p199 = pneg %p98
      %p200 = pneg %p129
      %p201 = pneg %p126
      %p202 = scmp.lt.s32.totalorder %s18, 1
      %s203 = scalar_select %p202, %s18, 1
      %p204 = scmp.lt.s32.totalorder %s19, 0
      %s205 = scalar_select %p204, %s19, 0
      %s206 = sadd.s32 %s205, %s203
      %s207 = smul.addr %s206, 4
      %s208 = scalar_lea.vmem %s3, %s207
      %p209 = scmp.lt.s32.totalorder %s18, 1
      %s210 = scalar_select %p209, %s18, 1
      %p211 = scmp.lt.s32.totalorder %s19, 0
      %s212 = scalar_select %p211, %s19, 0
      %s213 = sadd.s32 %s212, %s210
      %s214 = smul.addr %s213, 4
      %s215 = scalar_lea.vmem %s0, %s214
      %p216 = scmp.lt.s32.totalorder %s19, 0
      %s217 = scalar_select %p216, %s19, 0
      %s218 = smul.addr %s217, 8
      %s219 = scalar_lea.vmem %s1, %s218
      %p220 = scmp.lt.s32.totalorder %s19, 0
      %s221 = scalar_select %p220, %s19, 0
      %s222 = smul.addr %s221, 8
      %s223 = scalar_lea.vmem %s2, %s222
      %p224 = scmp.lt.s32.totalorder %s18, 1
      %s225 = scalar_select %p224, %s18, 1
      %p226 = scmp.lt.s32.totalorder %s19, 0
      %s227 = scalar_select %p226, %s19, 0
      %s228 = sadd.s32 %s227, %s225
      %s229 = smul.addr %s228, 4
      %s230 = scalar_lea.vmem %s3, %s229
      %v231 = vld [vmem:[%s215] sm:$0xf]
      %v232 = vunpack.c.l.bf16 %v231
      %234 = vrot.lane.b32.xlu0 %v232, 112
      %v235 = vpop.permute.xlu0 %234
      %237 = vrot.lane.b32.xlu0 %v232, 16
      %v238 = vpop.permute.xlu0 %237
      %vm240 = vcmask 130048
      %v241 = vsel %vm240, %v235, %v238
      %v242 = vld [vmem:[%s219] sm:$0xff]
      %v243 = vmul.f32 %v232, %v242
      %v244 = vld [vmem:[%s223] sm:$0xff]
      %v245 = vmul.f32 %v241, %v244
      %v246 = vadd.f32 %v243, %v245
      %v247 = vpack.c.bf16 %v246, %v246
      %vm248 = vcmask 257024
      %249 = vst.msk [vmem:[%s230] sm:$0xf] %vm248, %v247
      %p250 = scmp.lt.s32.totalorder %s18, 1
      %s251 = scalar_select %p250, %s18, 1
      %p252 = scmp.lt.s32.totalorder %s19, 0
      %s253 = scalar_select %p252, %s19, 0
      %s254 = sadd.s32 %s253, %s251
      %s255 = smul.addr %s254, 4
      %s256 = scalar_lea.vmem %s3, %s255
      // Predicated region
      $region33: #{_lambda_.13} parent=31 // pred_check
        %p257 = pneg %p126
      $region34: #{_lambda_.13} parent=31 // pred_check_branch
        %259 = sbr.rel (%p257) target = $region36
      $region35: #{_lambda_.13} parent=31 // pred_region
        _
      $region36: #{_lambda_.13} parent=31 // pred_fallthru
        _
    $region32: #{_lambda_.13} parent=5 // pred_fallthru
      _
    %p260 = scmp.le.s32.totalorder 2, %s9
    // Predicated region
    $region37: #{_lambda_.13} parent=5 // pred_check
      %p261 = pneg %p260
    $region38: #{_lambda_.13} parent=5 // pred_check_branch
      %263 = sbr.rel (%p261) target = $region40
    $region39: #{_lambda_.13} parent=5 // pred_region
      %s264 = ssub.s32 %s9, 2
      // Predicated region
      $region41: #{_lambda_.13} parent=39 // pred_check
        %p265 = pneg %p132
      $region42: #{_lambda_.13} parent=39 // pred_check_branch
        %267 = sbr.rel (%p265) target = $region44
      $region43: #{_lambda_.13} parent=39 // pred_region
        %p268 = scmp.lt.s32.totalorder %s20, 1
        %s269 = scalar_select %p268, %s20, 1
        %p270 = scmp.lt.s32.totalorder %s21, 0
        %s271 = scalar_select %p270, %s21, 0
        %s272 = sadd.s32 %s271, %s269
        %s273 = smul.addr %s272, 4
        %s274 = scalar_lea.vmem %s3, %s273
      $region44: #{_lambda_.13} parent=39 // pred_fallthru
        _
    $region40: #{_lambda_.13} parent=5 // pred_fallthru
      _
  $region6: #{_lambda_.13} parent=0 // loop_footer
    %s13 = sadd.s32 1, %s9
  $region7: #{_lambda_.13} parent=0 // loop_footer_branch
    %8 = sbr.rel target = $region3
  $region8: #{_lambda_.13} parent=0 // loop_exit
    _

// kernel: _lambda_.11
$region0: #{_lambda_.11}
  #allocation0 [shape = 'u32[]', space=smem, size = 0x4, offset = 0x4, fixed_abs, tag = 'smem constant byte address 0x4 - core index']
  #allocation1 [shape = 'u32[144,128]{1,0:T(1,128)}', space=vmem, size = 0x12000, scoped, tag = 'internal scratch']
  #allocation2 [shape = 'f32[16,32]{1,0:T(8,128)}', space=vmem, size = 0x2000, scoped, tag = 'scratch operand']
  %s0 = inlined_call_operand.vmem [shape: bf16[16,32], index: 0, kind: input, shape index: {}]
  %s1 = inlined_call_operand.vmem [shape: bf16[32,32], index: 1, kind: input, shape index: {}]
  %s2 = inlined_call_operand.vmem [shape: bf16[16,32], index: 2, kind: output, shape index: {}]
  %s3 = sld [smem:[#allocation0]]
  $region26: #{_lambda_.11} parent=0
    _
  %s5 = ssub.s32 1, %s3
  %s6 = scalar_select 0, %s5, %s3
  // Predicated region
  $region2: #{_lambda_.11} parent=0 // pred_check
    _
  $region3: #{_lambda_.11} parent=0 // pred_check_branch
    %8 = sbr.rel (0) target = $region5
  $region4: #{_lambda_.11} parent=0 // pred_region
    _
  $region5: #{_lambda_.11} parent=0 // pred_fallthru
    _
  // Predicated region
  $region6: #{_lambda_.11} parent=0 // pred_check
    _
  $region7: #{_lambda_.11} parent=0 // pred_check_branch
    %10 = sbr.rel (0) target = $region9
  $region8: #{_lambda_.11} parent=0 // pred_region
    _
  $region9: #{_lambda_.11} parent=0 // pred_fallthru
    _
  %p12 = scmp.eq.s32.totalorder 0, 0
  // Predicated region
  $region10: #{_lambda_.11} parent=0 // pred_check
    %p13 = pneg %p12
  $region11: #{_lambda_.11} parent=0 // pred_check_branch
    %15 = sbr.rel (%p13) target = $region13
  $region12: #{_lambda_.11} parent=0 // pred_region
    %vm16 = vcmask 261120
    %17 = vst.msk [vmem:[#allocation2] sm:$0xff] %vm16, 0.0
    %18 = vst.msk [vmem:[#allocation2 + $0x8] sm:$0xff] %vm16, 0.0
  $region13: #{_lambda_.11} parent=0 // pred_fallthru
    _
  %v19 = vld [vmem:[#allocation2] sm:$0xff]
  %v20 = vld [vmem:[#allocation2 + $0x8] sm:$0xff]
  %v21 = vld [vmem:[%s0] sm:$0xf]
  %v22 = vld [vmem:[%s0 + $0x4] sm:$0xf]
  %v23 = vld [vmem:[%s1] sm:$0xf]
  %v24 = vld [vmem:[%s1 + $0x4] sm:$0xf]
  %v25 = vld [vmem:[%s1 + $0x8] sm:$0xf]
  %v26 = vld [vmem:[%s1 + $0xc] sm:$0xf]
  %v29 = vunpack.c.l.b16 %v21
  %v30 = vunpack.c.l.b16 %v22
  %v31 = vpack.c.b16 %v30, %v29
  %v36 = vunpack.c.l.b16 %v23
  %v37 = vunpack.c.l.b16 %v24
  %v38 = vunpack.c.l.b16 %v25
  %v39 = vunpack.c.l.b16 %v26
  %v40 = vpack.c.b16 %v37, %v36
  %v41 = vpack.c.b16 %v39, %v38
  %vm44 = vcmask 261120
  %v46 = vsel %vm44, %v31, 0
  %48 = vmatprep.subr.bf16.mxu0 0
  %49 = vmatpush1.bf16.msra.mxu0 %v40
  %50 = vmatprep.subr.bf16.mxu0 0
  %51 = vmatpush1.bf16.msra.mxu0 %v41
  %52 = vmatprep.subr.bf16.mxu0 0
  %53 = vmatpush1.bf16.msra.mxu0 0
  %54 = vmatprep.subr.bf16.mxu0 0
  %55 = vmatpush1.bf16.msra.mxu0 0
  %56 = vmatprep.subr.bf16.mxu0 0
  %57 = vmatpush1.bf16.msra.mxu0 0
  %58 = vmatprep.subr.bf16.mxu0 0
  %59 = vmatpush1.bf16.msra.mxu0 0
  %60 = vmatprep.subr.bf16.mxu0 0
  %61 = vmatpush1.bf16.msra.mxu0 0
  %62 = vmatprep.subr.bf16.mxu0 0
  %63 = vmatpush1.bf16.msra.mxu0 0
  %64 = vmatprep.subr.bf16.mxu0 0
  %65 = vmatpush1.bf16.msra.mxu0 0
  %66 = vmatprep.subr.bf16.mxu0 0
  %67 = vmatpush1.bf16.msra.mxu0 0
  %68 = vmatprep.subr.bf16.mxu0 0
  %69 = vmatpush1.bf16.msra.mxu0 0
  %70 = vmatprep.subr.bf16.mxu0 0
  %71 = vmatpush1.bf16.msra.mxu0 0
  %72 = vmatprep.subr.bf16.mxu0 0
  %73 = vmatpush1.bf16.msra.mxu0 0
  %74 = vmatprep.subr.bf16.mxu0 0
  %75 = vmatpush1.bf16.msra.mxu0 0
  %76 = vmatprep.subr.bf16.mxu0 0
  %77 = vmatpush1.bf16.msra.mxu0 0
  %78 = vmatprep.subr.bf16.mxu0 0
  %79 = vmatpush1.bf16.msra.mxu0 0
  %80 = vmatprep.mubr.bf16.mxu0 0
  %81 = vmatmul.mubr.bf16.gmra.mrb[0].mxu0 %v46
  %v82 = vpop.f32.mrb[0].mxu0
  %v83 = vadd.f32 0.0, %v82
  %v84 = vpop.f32.mrb[0].mxu0
  %v85 = vpop.f32.mrb[0].mxu0
  %v86 = vadd.f32 0.0, %v85
  %v87 = vpop.f32.mrb[0].mxu0
  %88 = vdwg.mxu0
  %v89 = vadd.f32 %v19, %v83
  %v90 = vadd.f32 %v20, %v86
  %91 = vst.msk [vmem:[#allocation2] sm:$0xff] %vm44, %v89
  %92 = vst.msk [vmem:[#allocation2 + $0x8] sm:$0xff] %vm44, %v90
  // Predicated region
  $region14: #{_lambda_.11} parent=0 // pred_check
    %p93 = pneg %p12
  $region15: #{_lambda_.11} parent=0 // pred_check_branch
    %95 = sbr.rel (%p93) target = $region17
  $region16: #{_lambda_.11} parent=0 // pred_region
    %v96 = vld [vmem:[#allocation2] sm:$0xff]
    %v97 = vld [vmem:[#allocation2 + $0x8] sm:$0xff]
    %v98 = vpack.c.bf16 %v97, %v96
    %v100 = vunpack.c.l.b16 %v98
    %v101 = vunpack.c.h.b16 %v98
    %v102 = vpack.c.b16 %v100, %v100
    %v103 = vpack.c.b16 %v101, %v101
    %vm106 = vcmask 257024
    %107 = vst.msk [vmem:[%s2] sm:$0xf] %vm106, %v102
    %108 = vst.msk [vmem:[%s2 + $0x4] sm:$0xf] %vm106, %v103
  $region17: #{_lambda_.11} parent=0 // pred_fallthru
    _
  // Predicated region
  $region18: #{_lambda_.11} parent=0 // pred_check
    _
  $region19: #{_lambda_.11} parent=0 // pred_check_branch
    %110 = sbr.rel (0) target = $region21
  $region20: #{_lambda_.11} parent=0 // pred_region
    _
  $region21: #{_lambda_.11} parent=0 // pred_fallthru
    _
  // Predicated region
  $region22: #{_lambda_.11} parent=0 // pred_check
    _
  $region23: #{_lambda_.11} parent=0 // pred_check_branch
    %112 = sbr.rel (0) target = $region25
  $region24: #{_lambda_.11} parent=0 // pred_region
    _
  $region25: #{_lambda_.11} parent=0 // pred_fallthru
    _

// kernel: _lambda_.15
$region0: #{_lambda_.15}
  #allocation0 [shape = 'u32[]', space=smem, size = 0x4, offset = 0x4, fixed_abs, tag = 'smem constant byte address 0x4 - core index']
  #allocation1 [shape = 'u32[144,128]{1,0:T(1,128)}', space=vmem, size = 0x12000, scoped, tag = 'internal scratch']
  #allocation2 [shape = 'f32[16,64]{1,0:T(8,128)}', space=vmem, size = 0x2000, scoped, tag = 'scratch operand']
  %s0 = inlined_call_operand.vmem [shape: bf16[16,32], index: 0, kind: input, shape index: {}]
  %s1 = inlined_call_operand.vmem [shape: bf16[32,64], index: 1, kind: input, shape index: {}]
  %s2 = inlined_call_operand.vmem [shape: f32[1,64], index: 2, kind: input, shape index: {}]
  %s3 = inlined_call_operand.vmem [shape: bf16[16,64], index: 3, kind: output, shape index: {}]
  %s4 = sld [smem:[#allocation0]]
  $region30: #{_lambda_.15} parent=0
    _
  %s6 = ssub.s32 1, %s4
  %s7 = scalar_select 0, %s6, %s4
  // Predicated region
  $region2: #{_lambda_.15} parent=0 // pred_check
    _
  $region3: #{_lambda_.15} parent=0 // pred_check_branch
    %9 = sbr.rel (0) target = $region5
  $region4: #{_lambda_.15} parent=0 // pred_region
    _
  $region5: #{_lambda_.15} parent=0 // pred_fallthru
    _
  // Predicated region
  $region6: #{_lambda_.15} parent=0 // pred_check
    _
  $region7: #{_lambda_.15} parent=0 // pred_check_branch
    %11 = sbr.rel (0) target = $region9
  $region8: #{_lambda_.15} parent=0 // pred_region
    _
  $region9: #{_lambda_.15} parent=0 // pred_fallthru
    _
  // Predicated region
  $region10: #{_lambda_.15} parent=0 // pred_check
    _
  $region11: #{_lambda_.15} parent=0 // pred_check_branch
    %13 = sbr.rel (0) target = $region13
  $region12: #{_lambda_.15} parent=0 // pred_region
    _
  $region13: #{_lambda_.15} parent=0 // pred_fallthru
    _
  %p15 = scmp.eq.s32.totalorder 0, 0
  // Predicated region
  $region14: #{_lambda_.15} parent=0 // pred_check
    %p16 = pneg %p15
  $region15: #{_lambda_.15} parent=0 // pred_check_branch
    %18 = sbr.rel (%p16) target = $region17
  $region16: #{_lambda_.15} parent=0 // pred_region
    %vm19 = vcmask 523264
    %20 = vst.msk [vmem:[#allocation2] sm:$0xff] %vm19, 0.0
    %21 = vst.msk [vmem:[#allocation2 + $0x8] sm:$0xff] %vm19, 0.0
  $region17: #{_lambda_.15} parent=0 // pred_fallthru
    _
  %v22 = vld [vmem:[#allocation2] sm:$0xff]
  %v23 = vld [vmem:[#allocation2 + $0x8] sm:$0xff]
  %v24 = vld [vmem:[%s0] sm:$0xf]
  %v25 = vld [vmem:[%s0 + $0x4] sm:$0xf]
  %v26 = vld [vmem:[%s1] sm:$0xf]
  %v27 = vld [vmem:[%s1 + $0x4] sm:$0xf]
  %v28 = vld [vmem:[%s1 + $0x8] sm:$0xf]
  %v29 = vld [vmem:[%s1 + $0xc] sm:$0xf]
  %v32 = vunpack.c.l.b16 %v24
  %v33 = vunpack.c.l.b16 %v25
  %v34 = vpack.c.b16 %v33, %v32
  %v39 = vunpack.c.l.b16 %v26
  %v40 = vunpack.c.l.b16 %v27
  %v41 = vunpack.c.l.b16 %v28
  %v42 = vunpack.c.l.b16 %v29
  %v43 = vpack.c.b16 %v40, %v39
  %v44 = vpack.c.b16 %v42, %v41
  %vm47 = vcmask 261120
  %v49 = vsel %vm47, %v34, 0
  %51 = vmatprep.subr.bf16.mxu0 0
  %52 = vmatpush1.bf16.msra.mxu0 %v43
  %53 = vmatprep.subr.bf16.mxu0 0
  %54 = vmatpush1.bf16.msra.mxu0 %v44
  %55 = vmatprep.subr.bf16.mxu0 0
  %56 = vmatpush1.bf16.msra.mxu0 0
  %57 = vmatprep.subr.bf16.mxu0 0
  %58 = vmatpush1.bf16.msra.mxu0 0
  %59 = vmatprep.subr.bf16.mxu0 0
  %60 = vmatpush1.bf16.msra.mxu0 0
  %61 = vmatprep.subr.bf16.mxu0 0
  %62 = vmatpush1.bf16.msra.mxu0 0
  %63 = vmatprep.subr.bf16.mxu0 0
  %64 = vmatpush1.bf16.msra.mxu0 0
  %65 = vmatprep.subr.bf16.mxu0 0
  %66 = vmatpush1.bf16.msra.mxu0 0
  %67 = vmatprep.subr.bf16.mxu0 0
  %68 = vmatpush1.bf16.msra.mxu0 0
  %69 = vmatprep.subr.bf16.mxu0 0
  %70 = vmatpush1.bf16.msra.mxu0 0
  %71 = vmatprep.subr.bf16.mxu0 0
  %72 = vmatpush1.bf16.msra.mxu0 0
  %73 = vmatprep.subr.bf16.mxu0 0
  %74 = vmatpush1.bf16.msra.mxu0 0
  %75 = vmatprep.subr.bf16.mxu0 0
  %76 = vmatpush1.bf16.msra.mxu0 0
  %77 = vmatprep.subr.bf16.mxu0 0
  %78 = vmatpush1.bf16.msra.mxu0 0
  %79 = vmatprep.subr.bf16.mxu0 0
  %80 = vmatpush1.bf16.msra.mxu0 0
  %81 = vmatprep.subr.bf16.mxu0 0
  %82 = vmatpush1.bf16.msra.mxu0 0
  %83 = vmatprep.mubr.bf16.mxu0 0
  %84 = vmatmul.mubr.bf16.gmra.mrb[0].mxu0 %v49
  %v85 = vpop.f32.mrb[0].mxu0
  %v86 = vadd.f32 0.0, %v85
  %v87 = vpop.f32.mrb[0].mxu0
  %v88 = vpop.f32.mrb[0].mxu0
  %v89 = vadd.f32 0.0, %v88
  %v90 = vpop.f32.mrb[0].mxu0
  %91 = vdwg.mxu0
  %v92 = vadd.f32 %v22, %v86
  %v93 = vadd.f32 %v23, %v89
  %vm94 = vcmask 523264
  %95 = vst.msk [vmem:[#allocation2] sm:$0xff] %vm94, %v92
  %96 = vst.msk [vmem:[#allocation2 + $0x8] sm:$0xff] %vm94, %v93
  // Predicated region
  $region18: #{_lambda_.15} parent=0 // pred_check
    %p97 = pneg %p15
  $region19: #{_lambda_.15} parent=0 // pred_check_branch
    %99 = sbr.rel (%p97) target = $region21
  $region20: #{_lambda_.15} parent=0 // pred_region
    %v100 = vld [vmem:[#allocation2] sm:$0xff]
    %v101 = vld [vmem:[#allocation2 + $0x8] sm:$0xff]
    %v102 = vld [vmem:[%s2] sm:$0x1]
    %v104 = vlaneseq
    %v105 = vshrl.u32 %v104, 7
    %v106 = vsub.s32 0, %v105
    %v107 = vrot.slane %v102, %v106
    %v109 = vadd.f32 %v100, %v107
    %v110 = vadd.f32 %v101, %v107
    %v111 = vpack.c.bf16 %v110, %v109
    %v113 = vunpack.c.l.b16 %v111
    %v114 = vunpack.c.h.b16 %v111
    %v115 = vpack.c.b16 %v113, %v113
    %v116 = vpack.c.b16 %v114, %v114
    %vm119 = vcmask 519168
    %120 = vst.msk [vmem:[%s3] sm:$0xf] %vm119, %v115
    %121 = vst.msk [vmem:[%s3 + $0x4] sm:$0xf] %vm119, %v116
  $region21: #{_lambda_.15} parent=0 // pred_fallthru
    _
  // Predicated region
  $region22: #{_lambda_.15} parent=0 // pred_check
    _
  $region23: #{_lambda_.15} parent=0 // pred_check_branch
    %123 = sbr.rel (0) target = $region25
  $region24: #{_lambda_.15} parent=0 // pred_region
    _
  $region25: #{_lambda_.15} parent=0 // pred_fallthru
    _
  // Predicated region
  $region26: #{_lambda_.15} parent=0 // pred_check
    _
  $region27: #{_lambda_.15} parent=0 // pred_check_branch
    %125 = sbr.rel (0) target = $region29
  $region28: #{_lambda_.15} parent=0 // pred_region
    _
  $region29: #{_lambda_.15} parent=0 // pred_fallthru
    _

// kernel: _lambda_.19
$region0: #{_lambda_.19}
  #allocation0 [shape = 'u32[]', space=smem, size = 0x4, offset = 0x4, fixed_abs, tag = 'smem constant byte address 0x4 - core index']
  #allocation1 [shape = 'u32[144,128]{1,0:T(1,128)}', space=vmem, size = 0x12000, scoped, tag = 'internal scratch']
  #allocation2 [shape = 'f32[16,64]{1,0:T(8,128)}', space=vmem, size = 0x2000, scoped, tag = 'scratch operand']
  %s0 = inlined_call_operand.vmem [shape: bf16[16,64], index: 0, kind: input, shape index: {}]
  %s1 = inlined_call_operand.vmem [shape: bf16[64,64], index: 1, kind: input, shape index: {}]
  %s2 = inlined_call_operand.hbm [shape: f32[16,64], index: 2, kind: output, shape index: {}]
  %s3 = sld [smem:[#allocation0]]
  $region26: #{_lambda_.19} parent=0
    _
  %s5 = ssub.s32 1, %s3
  %s6 = scalar_select 0, %s5, %s3
  $region1: #{_lambda_.19} parent=0
    #allocation3 [shape = 'u8[8192]{0}', space=vmem, size = 0x2000, scoped, tag = 'output window, operand 0, single buffered']
    #allocation4 [shape = 's32[1]{0}', space=sflag, size = 0x4, scoped, tag = 'scoped memory for _lambda_.19']
    %7 = vsyncpa [#allocation4], 0
    // Predicated region
    $region2: #{_lambda_.19} parent=1 // pred_check
      _
    $region3: #{_lambda_.19} parent=1 // pred_check_branch
      %9 = sbr.rel (0) target = $region5
    $region4: #{_lambda_.19} parent=1 // pred_region
      _
    $region5: #{_lambda_.19} parent=1 // pred_fallthru
      _
    // Predicated region
    $region6: #{_lambda_.19} parent=1 // pred_check
      _
    $region7: #{_lambda_.19} parent=1 // pred_check_branch
      %11 = sbr.rel (0) target = $region9
    $region8: #{_lambda_.19} parent=1 // pred_region
      _
    $region9: #{_lambda_.19} parent=1 // pred_fallthru
      _
    %p13 = scmp.eq.s32.totalorder 0, 0
    // Predicated region
    $region10: #{_lambda_.19} parent=1 // pred_check
      %p14 = pneg %p13
    $region11: #{_lambda_.19} parent=1 // pred_check_branch
      %16 = sbr.rel (%p14) target = $region13
    $region12: #{_lambda_.19} parent=1 // pred_region
      %vm17 = vcmask 523264
      %18 = vst.msk [vmem:[#allocation2] sm:$0xff] %vm17, 0.0
      %19 = vst.msk [vmem:[#allocation2 + $0x8] sm:$0xff] %vm17, 0.0
    $region13: #{_lambda_.19} parent=1 // pred_fallthru
      _
    %v20 = vld [vmem:[#allocation2] sm:$0xff]
    %v21 = vld [vmem:[#allocation2 + $0x8] sm:$0xff]
    %v22 = vld [vmem:[%s0] sm:$0xf]
    %v23 = vld [vmem:[%s0 + $0x4] sm:$0xf]
    %v24 = vld [vmem:[%s1] sm:$0xf]
    %v25 = vld [vmem:[%s1 + $0x4] sm:$0xf]
    %v26 = vld [vmem:[%s1 + $0x8] sm:$0xf]
    %v27 = vld [vmem:[%s1 + $0xc] sm:$0xf]
    %v28 = vld [vmem:[%s1 + $0x10] sm:$0xf]
    %v29 = vld [vmem:[%s1 + $0x14] sm:$0xf]
    %v30 = vld [vmem:[%s1 + $0x18] sm:$0xf]
    %v31 = vld [vmem:[%s1 + $0x1c] sm:$0xf]
    %v34 = vunpack.c.l.b16 %v22
    %v35 = vunpack.c.l.b16 %v23
    %v36 = vpack.c.b16 %v35, %v34
    %v45 = vunpack.c.l.b16 %v24
    %v46 = vunpack.c.l.b16 %v25
    %v47 = vunpack.c.l.b16 %v26
    %v48 = vunpack.c.l.b16 %v27
    %v49 = vunpack.c.l.b16 %v28
    %v50 = vunpack.c.l.b16 %v29
    %v51 = vunpack.c.l.b16 %v30
    %v52 = vunpack.c.l.b16 %v31
    %v53 = vpack.c.b16 %v46, %v45
    %v54 = vpack.c.b16 %v48, %v47
    %v55 = vpack.c.b16 %v50, %v49
    %v56 = vpack.c.b16 %v52, %v51
    %vm61 = vcmask 523264
    %v63 = vsel %vm61, %v36, 0
    %65 = vmatprep.subr.bf16.mxu0 0
    %66 = vmatpush1.bf16.msra.mxu0 %v53
    %67 = vmatprep.subr.bf16.mxu0 0
    %68 = vmatpush1.bf16.msra.mxu0 %v54
    %69 = vmatprep.subr.bf16.mxu0 0
    %70 = vmatpush1.bf16.msra.mxu0 %v55
    %71 = vmatprep.subr.bf16.mxu0 0
    %72 = vmatpush1.bf16.msra.mxu0 %v56
    %73 = vmatprep.subr.bf16.mxu0 0
    %74 = vmatpush1.bf16.msra.mxu0 0
    %75 = vmatprep.subr.bf16.mxu0 0
    %76 = vmatpush1.bf16.msra.mxu0 0
    %77 = vmatprep.subr.bf16.mxu0 0
    %78 = vmatpush1.bf16.msra.mxu0 0
    %79 = vmatprep.subr.bf16.mxu0 0
    %80 = vmatpush1.bf16.msra.mxu0 0
    %81 = vmatprep.subr.bf16.mxu0 0
    %82 = vmatpush1.bf16.msra.mxu0 0
    %83 = vmatprep.subr.bf16.mxu0 0
    %84 = vmatpush1.bf16.msra.mxu0 0
    %85 = vmatprep.subr.bf16.mxu0 0
    %86 = vmatpush1.bf16.msra.mxu0 0
    %87 = vmatprep.subr.bf16.mxu0 0
    %88 = vmatpush1.bf16.msra.mxu0 0
    %89 = vmatprep.subr.bf16.mxu0 0
    %90 = vmatpush1.bf16.msra.mxu0 0
    %91 = vmatprep.subr.bf16.mxu0 0
    %92 = vmatpush1.bf16.msra.mxu0 0
    %93 = vmatprep.subr.bf16.mxu0 0
    %94 = vmatpush1.bf16.msra.mxu0 0
    %95 = vmatprep.subr.bf16.mxu0 0
    %96 = vmatpush1.bf16.msra.mxu0 0
    %97 = vmatprep.mubr.bf16.mxu0 0
    %98 = vmatmul.mubr.bf16.gmra.mrb[0].mxu0 %v63
    %v99 = vpop.f32.mrb[0].mxu0
    %v100 = vadd.f32 0.0, %v99
    %v101 = vpop.f32.mrb[0].mxu0
    %v102 = vpop.f32.mrb[0].mxu0
    %v103 = vadd.f32 0.0, %v102
    %v104 = vpop.f32.mrb[0].mxu0
    %105 = vdwg.mxu0
    %v106 = vadd.f32 %v20, %v100
    %v107 = vadd.f32 %v21, %v103
    %108 = vst.msk [vmem:[#allocation2] sm:$0xff] %vm61, %v106
    %109 = vst.msk [vmem:[#allocation2 + $0x8] sm:$0xff] %vm61, %v107
    // Predicated region
    $region14: #{_lambda_.19} parent=1 // pred_check
      %p110 = pneg %p13
    $region15: #{_lambda_.19} parent=1 // pred_check_branch
      %112 = sbr.rel (%p110) target = $region17
    $region16: #{_lambda_.19} parent=1 // pred_region
      %v113 = vld [vmem:[#allocation2] sm:$0xff]
      %v114 = vld [vmem:[#allocation2 + $0x8] sm:$0xff]
      %115 = vst.msk [vmem:[#allocation3] sm:$0xff] %vm61, %v113
      %116 = vst.msk [vmem:[#allocation3 + $0x8] sm:$0xff] %vm61, %v114
    $region17: #{_lambda_.19} parent=1 // pred_fallthru
      _
    // Predicated region
    $region18: #{_lambda_.19} parent=1 // pred_check
      _
    $region19: #{_lambda_.19} parent=1 // pred_check_branch
      %118 = sbr.rel (0) target = $region21
    $region20: #{_lambda_.19} parent=1 // pred_region
      %s120 = ssub.s32 256, 256
      %121 = vsyncadd [#allocation4], %s120
      %s122 = sshll.u32 [#allocation3], 4
      %s123 = int_to_ptr.vmem [resolvable:$true] %s122
      %128 = dma.vmem_to_hbm [thread:$0]  %s123, 256, %s2, [#allocation4], 128, 128, 8
    $region21: #{_lambda_.19} parent=1 // pred_fallthru
      _
    // Predicated region
    $region22: #{_lambda_.19} parent=1 // pred_check
      _
    $region23: #{_lambda_.19} parent=1 // pred_check_branch
      %130 = sbr.rel (0) target = $region25
    $region24: #{_lambda_.19} parent=1 // pred_region
      %131 = dma.done [#allocation4], 256
    $region25: #{_lambda_.19} parent=1 // pred_fallthru
      _
    %132 = vsyncpa [#allocation4], 1

// kernel: _lambda_.18
$region0: #{_lambda_.18}
  #allocation0 [shape = 'u32[]', space=smem, size = 0x4, offset = 0x4, fixed_abs, tag = 'smem constant byte address 0x4 - core index']
  #allocation1 [shape = 'u32[144,128]{1,0:T(1,128)}', space=vmem, size = 0x12000, scoped, tag = 'internal scratch']
  #allocation2 [shape = 'f32[16,1]{1,0:T(8,128)}', space=vmem, size = 0x2000, scoped, tag = 'scratch operand']
  #allocation3 [shape = 'f32[16,1]{1,0:T(8,128)}', space=vmem, size = 0x2000, scoped, tag = 'scratch operand']
  #allocation4 [shape = 'f32[16,16]{1,0:T(8,128)}', space=vmem, size = 0x2000, scoped, tag = 'scratch operand']
  %s0 = inlined_call_operand.vmem [shape: bf16[2,4,8,16], index: 0, kind: input, shape index: {}]
  %s1 = inlined_call_operand.vmem [shape: bf16[2,2,8,16], index: 1, kind: input, shape index: {}]
  %s2 = inlined_call_operand.vmem [shape: bf16[2,2,8,16], index: 2, kind: input, shape index: {}]
  %s3 = inlined_call_operand.vmem [shape: bf16[2,4,8,16], index: 3, kind: output, shape index: {}]
  %s4 = sld [smem:[#allocation0]]
  $region57: #{_lambda_.18} parent=0
    _
  %s6 = ssub.s32 1, %s4
  %s7 = scalar_select 0, %s6, %s4
  loop: start=0, step=1, limit=6
  $region2: #{_lambda_.18} parent=0 // loop_pre_header
    _
  $region3: #{_lambda_.18} parent=0 // loop_header
    %s9 = sphi 0, %s13
    %p10 = scmp.ge.s32.totalorder %s9, 6
    %s16 = sphi 0, %s42
    %s17 = sphi 0, %s38
    %s18 = sphi 0, %s34
    %s19 = sphi 0, %s30
    %s20 = sphi 0, %s16
    %s21 = sphi 0, %s17
    %s22 = sphi 0, %s18
    %s23 = sphi 0, %s19
    %s24 = sphi 0, %s20
    %s25 = sphi 0, %s21
    %s26 = sphi 0, %s22
    %s27 = sphi 0, %s23
    %s49 = sphi 0, %s51
    %s52 = sphi 0, %s49
    %s53 = sphi 0, %s52
    %s69 = sphi 0, %s53
    %s79 = sphi 0, %s81
    %s82 = sphi 0, %s79
    %s83 = sphi 0, %s82
    %s99 = sphi 0, %s83
    %s109 = sphi 0, %s111
    %s112 = sphi 0, %s109
    %s113 = sphi 0, %s112
    %s129 = sphi 0, %s113
    %s139 = sphi 0, %s141
    %s142 = sphi 0, %s139
    %s143 = sphi 0, %s142
    %s159 = sphi 0, %s143
  $region4: #{_lambda_.18} parent=0 // loop_header_branch
    %12 = sbr.rel (%p10) target = $region8
  $region5: #{_lambda_.18} parent=0 // loop_body
    %s14 = ssub.s32 %s9, 1
    %s15 = ssub.s32 %s9, 2
    %s28 = sadd.s32 1, %s19
    %p29 = scmp.ge.s32.totalorder %s28, 1
    %s30 = scalar_select %p29, 0, %s28
    %s31 = sadd.s32 1, %s18
    %s32 = scalar_select %p29, %s31, %s18
    %p33 = scmp.ge.s32.totalorder %s32, 1
    %s34 = scalar_select %p33, 0, %s32
    %s35 = sadd.s32 1, %s17
    %s36 = scalar_select %p33, %s35, %s17
    %p37 = scmp.ge.s32.totalorder %s36, 2
    %s38 = scalar_select %p37, 0, %s36
    %s39 = sadd.s32 1, %s16
    %s40 = scalar_select %p37, %s39, %s16
    %p41 = scmp.ge.s32.totalorder %s40, 2
    %s42 = scalar_select %p41, 0, %s40
    %s43 = ssub.s32 %s16, %s42
    %s44 = ssub.s32 %s17, %s38
    %s45 = sor.u32 %s43, %s44
    %s46 = ssub.s32 %s18, %s34
    %s47 = sor.u32 %s45, %s46
    %p48 = scmp.eq.s32.totalorder %s47, 0
    %s50 = sadd.s32 %s49, 1
    %s51 = scalar_select %p48, %s49, %s50
    %p54 = pneg %p48
    %p55 = scmp.eq.s32.totalorder %s9, 3
    %p56 = por %p54, %p55
    %p57 = scmp.ne.s32.totalorder %s49, %s52
    %p58 = scmp.eq.s32.totalorder %s9, 0
    %p59 = por %p57, %p58
    %p60 = scmp.ne.s32.totalorder %s49, %s52
    %p61 = scmp.eq.s32.totalorder %s14, 3
    %p62 = por %p60, %p61
    %p63 = scmp.ne.s32.totalorder %s52, %s53
    %p64 = scmp.eq.s32.totalorder %s14, 0
    %p65 = por %p63, %p64
    %p66 = scmp.ne.s32.totalorder %s52, %s53
    %p67 = scmp.eq.s32.totalorder %s15, 3
    %p68 = por %p66, %p67
    %p70 = scmp.ne.s32.totalorder %s53, %s69
    %p71 = scmp.eq.s32.totalorder %s15, 0
    %p72 = por %p70, %p71
    %s73 = ssub.s32 %s16, %s42
    %s74 = ssub.s32 %s17, %s38
    %s75 = sor.u32 %s73, %s74
    %s76 = ssub.s32 %s19, %s30
    %s77 = sor.u32 %s75, %s76
    %p78 = scmp.eq.s32.totalorder %s77, 0
    %s80 = sadd.s32 %s79, 1
    %s81 = scalar_select %p78, %s79, %s80
    %p84 = pneg %p78
    %p85 = scmp.eq.s32.totalorder %s9, 3
    %p86 = por %p84, %p85
    %p87 = scmp.ne.s32.totalorder %s79, %s82
    %p88 = scmp.eq.s32.totalorder %s9, 0
    %p89 = por %p87, %p88
    %p90 = scmp.ne.s32.totalorder %s79, %s82
    %p91 = scmp.eq.s32.totalorder %s14, 3
    %p92 = por %p90, %p91
    %p93 = scmp.ne.s32.totalorder %s82, %s83
    %p94 = scmp.eq.s32.totalorder %s14, 0
    %p95 = por %p93, %p94
    %p96 = scmp.ne.s32.totalorder %s82, %s83
    %p97 = scmp.eq.s32.totalorder %s15, 3
    %p98 = por %p96, %p97
    %p100 = scmp.ne.s32.totalorder %s83, %s99
    %p101 = scmp.eq.s32.totalorder %s15, 0
    %p102 = por %p100, %p101
    %s103 = ssub.s32 %s16, %s42
    %s104 = ssub.s32 %s17, %s38
    %s105 = sor.u32 %s103, %s104
    %s106 = ssub.s32 %s19, %s30
    %s107 = sor.u32 %s105, %s106
    %p108 = scmp.eq.s32.totalorder %s107, 0
    %s110 = sadd.s32 %s109, 1
    %s111 = scalar_select %p108, %s109, %s110
    %p114 = pneg %p108
    %p115 = scmp.eq.s32.totalorder %s9, 3
    %p116 = por %p114, %p115
    %p117 = scmp.ne.s32.totalorder %s109, %s112
    %p118 = scmp.eq.s32.totalorder %s9, 0
    %p119 = por %p117, %p118
    %p120 = scmp.ne.s32.totalorder %s109, %s112
    %p121 = scmp.eq.s32.totalorder %s14, 3
    %p122 = por %p120, %p121
    %p123 = scmp.ne.s32.totalorder %s112, %s113
    %p124 = scmp.eq.s32.totalorder %s14, 0
    %p125 = por %p123, %p124
    %p126 = scmp.ne.s32.totalorder %s112, %s113
    %p127 = scmp.eq.s32.totalorder %s15, 3
    %p128 = por %p126, %p127
    %p130 = scmp.ne.s32.totalorder %s113, %s129
    %p131 = scmp.eq.s32.totalorder %s15, 0
    %p132 = por %p130, %p131
    %s133 = ssub.s32 %s16, %s42
    %s134 = ssub.s32 %s17, %s38
    %s135 = sor.u32 %s133, %s134
    %s136 = ssub.s32 %s18, %s34
    %s137 = sor.u32 %s135, %s136
    %p138 = scmp.eq.s32.totalorder %s137, 0
    %s140 = sadd.s32 %s139, 1
    %s141 = scalar_select %p138, %s139, %s140
    %p144 = pneg %p138
    %p145 = scmp.eq.s32.totalorder %s9, 3
    %p146 = por %p144, %p145
    %p147 = scmp.ne.s32.totalorder %s139, %s142
    %p148 = scmp.eq.s32.totalorder %s9, 0
    %p149 = por %p147, %p148
    %p150 = scmp.ne.s32.totalorder %s139, %s142
    %p151 = scmp.eq.s32.totalorder %s14, 3
    %p152 = por %p150, %p151
    %p153 = scmp.ne.s32.totalorder %s142, %s143
    %p154 = scmp.eq.s32.totalorder %s14, 0
    %p155 = por %p153, %p154
    %p156 = scmp.ne.s32.totalorder %s142, %s143
    %p157 = scmp.eq.s32.totalorder %s15, 3
    %p158 = por %p156, %p157
    %p160 = scmp.ne.s32.totalorder %s143, %s159
    %p161 = scmp.eq.s32.totalorder %s15, 0
    %p162 = por %p160, %p161
    %p163 = scmp.le.s32.totalorder 1, %s9
    %p164 = scmp.lt.s32.totalorder %s9, 5
    %p165 = pnand %p163, %p164
    %p166 = pneg %p165
    // Predicated region
    $region9: #{_lambda_.18} parent=5 // pred_check
      _
    $region10: #{_lambda_.18} parent=5 // pred_check_branch
      %168 = sbr.rel (%p165) target = $region12
    $region11: #{_lambda_.18} parent=5 // pred_region
      %s169 = ssub.s32 %s9, 1
    $region12: #{_lambda_.18} parent=5 // pred_fallthru
      _
    %p170 = scmp.lt.s32.totalorder %s9, 4
    // Predicated region
    $region13: #{_lambda_.18} parent=5 // pred_check
      %p171 = pneg %p170
    $region14: #{_lambda_.18} parent=5 // pred_check_branch
      %173 = sbr.rel (%p171) target = $region16
    $region15: #{_lambda_.18} parent=5 // pred_region
      // Predicated region
      $region17: #{_lambda_.18} parent=15 // pred_check
        %p174 = pneg %p59
      $region18: #{_lambda_.18} parent=15 // pred_check_branch
        %176 = sbr.rel (%p174) target = $region20
      $region19: #{_lambda_.18} parent=15 // pred_region
        %s177 = smul.u32 2, %s17
        %p178 = scmp.lt.s32.totalorder %s16, 1
        %s179 = scalar_select %p178, %s16, 1
        %p180 = scmp.lt.s32.totalorder %s177, 3
        %s181 = scalar_select %p180, %s177, 3
        %p182 = scmp.lt.s32.totalorder %s18, 0
        %s183 = scalar_select %p182, %s18, 0
        %s184 = sadd.s32 %s183, %s181
        %s185 = smul.addr %s179, 4
        %s186 = sadd.s32 %s184, %s185
        %s187 = smul.addr %s186, 4
        %s188 = scalar_lea.vmem %s0, %s187
        %s189 = smul.u32 2, %s17
      $region20: #{_lambda_.18} parent=15 // pred_fallthru
        _
      // Predicated region
      $region21: #{_lambda_.18} parent=15 // pred_check
        %p190 = pneg %p89
      $region22: #{_lambda_.18} parent=15 // pred_check_branch
        %192 = sbr.rel (%p190) target = $region24
      $region23: #{_lambda_.18} parent=15 // pred_region
        %p193 = scmp.lt.s32.totalorder %s16, 1
        %s194 = scalar_select %p193, %s16, 1
        %p195 = scmp.lt.s32.totalorder %s17, 1
        %s196 = scalar_select %p195, %s17, 1
        %p197 = scmp.lt.s32.totalorder %s19, 0
        %s198 = scalar_select %p197, %s19, 0
        %s199 = sadd.s32 %s198, %s196
        %s200 = smul.addr %s194, 2
        %s201 = sadd.s32 %s199, %s200
        %s202 = smul.addr %s201, 4
        %s203 = scalar_lea.vmem %s1, %s202
      $region24: #{_lambda_.18} parent=15 // pred_fallthru
        _
      // Predicated region
      $region25: #{_lambda_.18} parent=15 // pred_check
        %p204 = pneg %p119
      $region26: #{_lambda_.18} parent=15 // pred_check_branch
        %206 = sbr.rel (%p204) target = $region28
      $region27: #{_lambda_.18} parent=15 // pred_region
        %p207 = scmp.lt.s32.totalorder %s16, 1
        %s208 = scalar_select %p207, %s16, 1
        %p209 = scmp.lt.s32.totalorder %s17, 1
        %s210 = scalar_select %p209, %s17, 1
        %p211 = scmp.lt.s32.totalorder %s19, 0
        %s212 = scalar_select %p211, %s19, 0
        %s213 = sadd.s32 %s212, %s210
        %s214 = smul.addr %s208, 2
        %s215 = sadd.s32 %s213, %s214
        %s216 = smul.addr %s215, 4
        %s217 = scalar_lea.vmem %s2, %s216
      $region28: #{_lambda_.18} parent=15 // pred_fallthru
        _
    $region16: #{_lambda_.18} parent=5 // pred_fallthru
      _
    %p218 = scmp.le.s32.totalorder 1, %s9
    %p219 = scmp.lt.s32.totalorder %s9, 5
    %p220 = pnand %p218, %p219
    %p221 = pneg %p220
    // Predicated region
    $region29: #{_lambda_.18} parent=5 // pred_check
      _
    $region30: #{_lambda_.18} parent=5 // pred_check_branch
      %223 = sbr.rel (%p220) target = $region32
    $region31: #{_lambda_.18} parent=5 // pred_region
      %s224 = ssub.s32 %s9, 1
      %s225 = smul.u32 2, %s21
      %p226 = scmp.lt.s32.totalorder %s20, 1
      %s227 = scalar_select %p226, %s20, 1
      %p228 = scmp.lt.s32.totalorder %s225, 3
      %s229 = scalar_select %p228, %s225, 3
      %p230 = scmp.lt.s32.totalorder %s22, 0
      %s231 = scalar_select %p230, %s22, 0
      %s232 = sadd.s32 %s231, %s229
      %s233 = smul.addr %s227, 4
      %s234 = sadd.s32 %s232, %s233
      %s235 = smul.addr %s234, 4
      %s236 = scalar_lea.vmem %s0, %s235
      %p237 = pneg %p65
      %p238 = pneg %p62
      %p239 = scmp.lt.s32.totalorder %s20, 1
      %s240 = scalar_select %p239, %s20, 1
      %p241 = scmp.lt.s32.totalorder %s21, 1
      %s242 = scalar_select %p241, %s21, 1
      %p243 = scmp.lt.s32.totalorder %s23, 0
      %s244 = scalar_select %p243, %s23, 0
      %s245 = sadd.s32 %s244, %s242
      %s246 = smul.addr %s240, 2
      %s247 = sadd.s32 %s245, %s246
      %s248 = smul.addr %s247, 4
      %s249 = scalar_lea.vmem %s1, %s248
      %p250 = pneg %p95
      %p251 = pneg %p92
      %p252 = scmp.lt.s32.totalorder %s20, 1
      %s253 = scalar_select %p252, %s20, 1
      %p254 = scmp.lt.s32.totalorder %s21, 1
      %s255 = scalar_select %p254, %s21, 1
      %p256 = scmp.lt.s32.totalorder %s23, 0
      %s257 = scalar_select %p256, %s23, 0
      %s258 = sadd.s32 %s257, %s255
      %s259 = smul.addr %s253, 2
      %s260 = sadd.s32 %s258, %s259
      %s261 = smul.addr %s260, 4
      %s262 = scalar_lea.vmem %s2, %s261
      %p263 = pneg %p125
      %p264 = pneg %p122
      %p265 = pneg %p155
      %p266 = pneg %p152
      %s267 = smul.u32 2, %s21
      %p268 = scmp.lt.s32.totalorder %s20, 1
      %s269 = scalar_select %p268, %s20, 1
      %p270 = scmp.lt.s32.totalorder %s267, 3
      %s271 = scalar_select %p270, %s267, 3
      %p272 = scmp.lt.s32.totalorder %s22, 0
      %s273 = scalar_select %p272, %s22, 0
      %s274 = sadd.s32 %s273, %s271
      %s275 = smul.addr %s269, 4
      %s276 = sadd.s32 %s274, %s275
      %s277 = smul.addr %s276, 4
      %s278 = scalar_lea.vmem %s3, %s277
      %s279 = smul.u32 2, %s21
      %p280 = scmp.lt.s32.totalorder %s20, 1
      %s281 = scalar_select %p280, %s20, 1
      %p282 = scmp.lt.s32.totalorder %s279, 3
      %s283 = scalar_select %p282, %s279, 3
      %p284 = scmp.lt.s32.totalorder %s22, 0
      %s285 = scalar_select %p284, %s22, 0
      %s286 = sadd.s32 %s285, %s283
      %s287 = smul.addr %s281, 4
      %s288 = sadd.s32 %s286, %s287
      %s289 = smul.addr %s288, 4
      %s290 = scalar_lea.vmem %s0, %s289
      %s291 = smul.u32 2, %s21
      %p292 = scmp.lt.s32.totalorder %s20, 1
      %s293 = scalar_select %p292, %s20, 1
      %p294 = scmp.lt.s32.totalorder %s21, 1
      %s295 = scalar_select %p294, %s21, 1
      %p296 = scmp.lt.s32.totalorder %s23, 0
      %s297 = scalar_select %p296, %s23, 0
      %s298 = sadd.s32 %s297, %s295
      %s299 = smul.addr %s293, 2
      %s300 = sadd.s32 %s298, %s299
      %s301 = smul.addr %s300, 4
      %s302 = scalar_lea.vmem %s1, %s301
      %p303 = scmp.lt.s32.totalorder %s20, 1
      %s304 = scalar_select %p303, %s20, 1
      %p305 = scmp.lt.s32.totalorder %s21, 1
      %s306 = scalar_select %p305, %s21, 1
      %p307 = scmp.lt.s32.totalorder %s23, 0
      %s308 = scalar_select %p307, %s23, 0
      %s309 = sadd.s32 %s308, %s306
      %s310 = smul.addr %s304, 2
      %s311 = sadd.s32 %s309, %s310
      %s312 = smul.addr %s311, 4
      %s313 = scalar_lea.vmem %s2, %s312
      %s314 = smul.u32 2, %s21
      %p315 = scmp.lt.s32.totalorder %s20, 1
      %s316 = scalar_select %p315, %s20, 1
      %p317 = scmp.lt.s32.totalorder %s314, 3
      %s318 = scalar_select %p317, %s314, 3
      %p319 = scmp.lt.s32.totalorder %s22, 0
      %s320 = scalar_select %p319, %s22, 0
      %s321 = sadd.s32 %s320, %s318
      %s322 = smul.addr %s316, 4
      %s323 = sadd.s32 %s321, %s322
      %s324 = smul.addr %s323, 4
      %s325 = scalar_lea.vmem %s3, %s324
      %s326 = smul.u32 2, %s21
      %p328 = scmp.eq.s32.totalorder %s23, 0
      // Predicated region
      $region33: #{_lambda_.18} parent=31 // pred_check
        %p329 = pneg %p328
      $region34: #{_lambda_.18} parent=31 // pred_check_branch
        %331 = sbr.rel (%p329) target = $region36
      $region35: #{_lambda_.18} parent=31 // pred_region
        %vm332 = vcmask 7168
        %333 = vst.msk [vmem:[#allocation2] sm:$0xff] %vm332, -1e+30
        %334 = vst.msk [vmem:[#allocation2 + $0x8] sm:$0xff] %vm332, -1e+30
        %335 = vst.msk [vmem:[#allocation3] sm:$0xff] %vm332, 0.0
        %336 = vst.msk [vmem:[#allocation3 + $0x8] sm:$0xff] %vm332, 0.0
        %vm337 = vcmask 130048
        %338 = vst.msk [vmem:[#allocation4] sm:$0xff] %vm337, 0.0
        %339 = vst.msk [vmem:[#allocation4 + $0x8] sm:$0xff] %vm337, 0.0
      $region36: #{_lambda_.18} parent=31 // pred_fallthru
        _
      %s340 = smul.u32 %s23, 8
      %s341 = smul.u32 %s22, 8
      %s342 = sadd.s32 %s341, 7
      %p343 = scmp.le.s32.totalorder %s340, %s342
      // Predicated region
      $region37: #{_lambda_.18} parent=31 // pred_check
        %p344 = pneg %p343
      $region38: #{_lambda_.18} parent=31 // pred_check_branch
        %346 = sbr.rel (%p344) target = $region40
      $region39: #{_lambda_.18} parent=31 // pred_region
        %v347 = vld [vmem:[%s290] sm:$0xf]
        %v348 = vld [vmem:[%s290 + $0x4] sm:$0xf]
        %v349 = vld [vmem:[%s302] sm:$0xf]
        %v350 = vld [vmem:[%s313] sm:$0xf]
        %v353 = vunpack.c.l.b16 %v347
        %v354 = vunpack.c.l.b16 %v348
        %v355 = vpack.c.b16 %v354, %v353
        %vm356 = vcmask 130048
        %v358 = vsel %vm356, %v355, 0
        %v361 = vsel %vm356, %v349, 0
        %363 = vmatprep.subr.bf16.mxu0 0
        %364 = vmatpush1.bf16.xpose.msra.mxu0 %v361
        %365 = vmatprep.subr.bf16.mxu0 0
        %366 = vmatpush1.bf16.xpose.msra.mxu0 0
        %367 = vmatprep.subr.bf16.mxu0 0
        %368 = vmatpush1.bf16.xpose.msra.mxu0 0
        %369 = vmatprep.subr.bf16.mxu0 0
        %370 = vmatpush1.bf16.xpose.msra.mxu0 0
        %371 = vmatprep.subr.bf16.mxu0 0
        %372 = vmatpush1.bf16.xpose.msra.mxu0 0
        %373 = vmatprep.subr.bf16.mxu0 0
        %374 = vmatpush1.bf16.xpose.msra.mxu0 0
        %375 = vmatprep.subr.bf16.mxu0 0
        %376 = vmatpush1.bf16.xpose.msra.mxu0 0
        %377 = vmatprep.subr.bf16.mxu0 0
        %378 = vmatpush1.bf16.xpose.msra.mxu0 0
        %379 = vmatprep.subr.bf16.mxu0 0
        %380 = vmatpush1.bf16.xpose.msra.mxu0 0
        %381 = vmatprep.subr.bf16.mxu0 0
        %382 = vmatpush1.bf16.xpose.msra.mxu0 0
        %383 = vmatprep.subr.bf16.mxu0 0
        %384 = vmatpush1.bf16.xpose.msra.mxu0 0
        %385 = vmatprep.subr.bf16.mxu0 0
        %386 = vmatpush1.bf16.xpose.msra.mxu0 0
        %387 = vmatprep.subr.bf16.mxu0 0
        %388 = vmatpush1.bf16.xpose.msra.mxu0 0
        %389 = vmatprep.subr.bf16.mxu0 0
        %390 = vmatpush1.bf16.xpose.msra.mxu0 0
        %391 = vmatprep.subr.bf16.mxu0 0
        %392 = vmatpush1.bf16.xpose.msra.mxu0 0
        %393 = vmatprep.subr.bf16.mxu0 0
        %394 = vmatpush1.bf16.xpose.msra.mxu0 0
        %395 = vmatprep.mubr.bf16.mxu0 0
        %396 = vmatmul.mubr.bf16.gmra.mrb[0].mxu0 %v358
        %v397 = vpop.f32.mrb[0].mxu0
        %v398 = vadd.f32 0.0, %v397
        %v399 = vpop.f32.mrb[0].mxu0
        %v400 = vpop.f32.mrb[0].mxu0
        %v401 = vadd.f32 0.0, %v400
        %v402 = vpop.f32.mrb[0].mxu0
        %403 = vdwg.mxu0
        %v404 = vmul.f32 %v398, 0.25
        %v405 = vmul.f32 %v401, 0.25
        %v406 = vlaneseq
        %v407 = vshrl.u32 %v406, 7
        %v408 = vstv %s341
        %v409 = vadd.s32 %v408, %v407
        %v410 = vlaneseq
        %v411 = vand.u32 %v410, 127
        %v412 = vstv %s340
        %v413 = vadd.s32 %v412, %v411
        %vm414 = vcmp.le.s32.totalorder %v413, %v409
        %v415 = vsel %vm414, %v404, -1e+30
        %v416 = vsel %vm414, %v405, -1e+30
        %v417 = vld [vmem:[#allocation2] sm:$0xff]
        %v418 = vld [vmem:[#allocation2 + $0x8] sm:$0xff]
        %vm419 = vcmask 64512
        %v420 = vsel %vm419, %v415, -inf
        %421 = vmax.xlane.f32.xlu0 %v420
        %v422 = vpop.xlane.xlu0 %421
        %v423 = vsel %vm419, %v416, -inf
        %424 = vmax.xlane.f32.xlu0 %v423
        %v425 = vpop.xlane.xlu0 %424
        %v426 = vmax.f32 %v417, %v422
        %v427 = vmax.f32 %v418, %v425
        %v428 = vsub.f32 %v417, %v426
        %v429 = vsub.f32 %v418, %v427
        %v430 = vmul.f32 %v428, 1.442695
        %v431 = vpow.pop %v430
        %v432 = vmul.f32 %v429, 1.442695
        %v433 = vpow.pop %v432
        %435 = vset.pattern.permute.xlu0 0
        %436 = vperm.xlu0 %435, %v426
        %v437 = vpop.permute.xlu0 %436
        %440 = vset.pattern.permute.xlu0 0
        %441 = vperm.xlu0 %440, %v427
        %v442 = vpop.permute.xlu0 %441
        %v444 = vsub.f32 %v415, %v437
        %v445 = vsub.f32 %v416, %v442
        %v446 = vmul.f32 %v444, 1.442695
        %v447 = vpow.pop %v446
        %v448 = vmul.f32 %v445, 1.442695
        %v449 = vpow.pop %v448
        %v450 = vld [vmem:[#allocation3] sm:$0xff]
        %v451 = vld [vmem:[#allocation3 + $0x8] sm:$0xff]
        %v452 = vmul.f32 %v431, %v450
        %v453 = vmul.f32 %v433, %v451
        %v454 = vsel %vm419, %v447, 0.0
        %455 = vadd.xlane.f32.xlu0 %v454
        %v456 = vpop.xlane.xlu0 %455
        %v457 = vsel %vm419, %v449, 0.0
        %458 = vadd.xlane.f32.xlu0 %v457
        %v459 = vpop.xlane.xlu0 %458
        %v460 = vadd.f32 %v452, %v456
        %v461 = vadd.f32 %v453, %v459
        %vm462 = vcmask 7168
        %463 = vst.msk [vmem:[#allocation3] sm:$0xff] %vm462, %v460
        %464 = vst.msk [vmem:[#allocation3 + $0x8] sm:$0xff] %vm462, %v461
        %v465 = vld [vmem:[#allocation4] sm:$0xff]
        %v466 = vld [vmem:[#allocation4 + $0x8] sm:$0xff]
        %468 = vset.pattern.permute.xlu0 0
        %469 = vperm.xlu0 %468, %v431
        %v470 = vpop.permute.xlu0 %469
        %473 = vset.pattern.permute.xlu0 0
        %474 = vperm.xlu0 %473, %v433
        %v475 = vpop.permute.xlu0 %474
        %v477 = vmul.f32 %v470, %v465
        %v478 = vmul.f32 %v475, %v466
        %v479 = vpack.c.bf16 %v449, %v447
        %v481 = vsel %vm419, %v479, 0
        %vm483 = vcmask 1043456
        %v485 = vsel %vm483, %v350, 0
        %487 = vmatprep.subr.bf16.mxu0 0
        %488 = vmatpush1.bf16.msra.mxu0 %v485
        %489 = vmatprep.subr.bf16.mxu0 0
        %490 = vmatpush1.bf16.msra.mxu0 0
        %491 = vmatprep.subr.bf16.mxu0 0
        %492 = vmatpush1.bf16.msra.mxu0 0
        %493 = vmatprep.subr.bf16.mxu0 0
        %494 = vmatpush1.bf16.msra.mxu0 0
        %495 = vmatprep.subr.bf16.mxu0 0
        %496 = vmatpush1.bf16.msra.mxu0 0
        %497 = vmatprep.subr.bf16.mxu0 0
        %498 = vmatpush1.bf16.msra.mxu0 0
        %499 = vmatprep.subr.bf16.mxu0 0
        %500 = vmatpush1.bf16.msra.mxu0 0
        %501 = vmatprep.subr.bf16.mxu0 0
        %502 = vmatpush1.bf16.msra.mxu0 0
        %503 = vmatprep.subr.bf16.mxu0 0
        %504 = vmatpush1.bf16.msra.mxu0 0
        %505 = vmatprep.subr.bf16.mxu0 0
        %506 = vmatpush1.bf16.msra.mxu0 0
        %507 = vmatprep.subr.bf16.mxu0 0
        %508 = vmatpush1.bf16.msra.mxu0 0
        %509 = vmatprep.subr.bf16.mxu0 0
        %510 = vmatpush1.bf16.msra.mxu0 0
        %511 = vmatprep.subr.bf16.mxu0 0
        %512 = vmatpush1.bf16.msra.mxu0 0
        %513 = vmatprep.subr.bf16.mxu0 0
        %514 = vmatpush1.bf16.msra.mxu0 0
        %515 = vmatprep.subr.bf16.mxu0 0
        %516 = vmatpush1.bf16.msra.mxu0 0
        %517 = vmatprep.subr.bf16.mxu0 0
        %518 = vmatpush1.bf16.msra.mxu0 0
        %519 = vmatprep.mubr.bf16.mxu0 0
        %520 = vmatmul.mubr.bf16.gmra.mrb[0].mxu0 %v481
        %v521 = vpop.f32.mrb[0].mxu0
        %v522 = vadd.f32 0.0, %v521
        %v523 = vpop.f32.mrb[0].mxu0
        %v524 = vpop.f32.mrb[0].mxu0
        %v525 = vadd.f32 0.0, %v524
        %v526 = vpop.f32.mrb[0].mxu0
        %527 = vdwg.mxu0
        %v528 = vadd.f32 %v477, %v522
        %v529 = vadd.f32 %v478, %v525
        %530 = vst.msk [vmem:[#allocation4] sm:$0xff] %vm356, %v528
        %531 = vst.msk [vmem:[#allocation4 + $0x8] sm:$0xff] %vm356, %v529
        %532 = vst.msk [vmem:[#allocation2] sm:$0xff] %vm462, %v426
        %533 = vst.msk [vmem:[#allocation2 + $0x8] sm:$0xff] %vm462, %v427
      $region40: #{_lambda_.18} parent=31 // pred_fallthru
        _
      // Predicated region
      $region41: #{_lambda_.18} parent=31 // pred_check
        %p534 = pneg %p328
      $region42: #{_lambda_.18} parent=31 // pred_check_branch
        %536 = sbr.rel (%p534) target = $region44
      $region43: #{_lambda_.18} parent=31 // pred_region
        %v537 = vld [vmem:[#allocation3] sm:$0xff]
        %v538 = vld [vmem:[#allocation3 + $0x8] sm:$0xff]
        %v539 = vrcp.pop %v537
        %v540 = vrcp.pop %v538
        %v541 = vld [vmem:[#allocation4] sm:$0xff]
        %v542 = vld [vmem:[#allocation4 + $0x8] sm:$0xff]
        %544 = vset.pattern.permute.xlu0 0
        %545 = vperm.xlu0 %544, %v539
        %v546 = vpop.permute.xlu0 %545
        %549 = vset.pattern.permute.xlu0 0
        %550 = vperm.xlu0 %549, %v540
        %v551 = vpop.permute.xlu0 %550
        %v553 = vmul.f32 %v541, %v546
        %v554 = vmul.f32 %v542, %v551
        %v555 = vpack.c.bf16 %v554, %v553
        %v557 = vunpack.c.l.b16 %v555
        %v558 = vunpack.c.h.b16 %v555
        %v559 = vpack.c.b16 %v557, %v557
        %v560 = vpack.c.b16 %v558, %v558
        %vm563 = vcmask 125952
        %564 = vst.msk [vmem:[%s325] sm:$0xf] %vm563, %v559
        %565 = vst.msk [vmem:[%s325 + $0x4] sm:$0xf] %vm563, %v560
      $region44: #{_lambda_.18} parent=31 // pred_fallthru
        _
      %s566 = smul.u32 2, %s21
      %p567 = scmp.lt.s32.totalorder %s20, 1
      %s568 = scalar_select %p567, %s20, 1
      %p569 = scmp.lt.s32.totalorder %s566, 3
      %s570 = scalar_select %p569, %s566, 3
      %p571 = scmp.lt.s32.totalorder %s22, 0
      %s572 = scalar_select %p571, %s22, 0
      %s573 = sadd.s32 %s572, %s570
      %s574 = smul.addr %s568, 4
      %s575 = sadd.s32 %s573, %s574
      %s576 = smul.addr %s575, 4
      %s577 = scalar_lea.vmem %s3, %s576
      // Predicated region
      $region45: #{_lambda_.18} parent=31 // pred_check
        %p578 = pneg %p152
      $region46: #{_lambda_.18} parent=31 // pred_check_branch
        %580 = sbr.rel (%p578) target = $region48
      $region47: #{_lambda_.18} parent=31 // pred_region
        %s581 = smul.u32 2, %s21
      $region48: #{_lambda_.18} parent=31 // pred_fallthru
        _
    $region32: #{_lambda_.18} parent=5 // pred_fallthru
      _
    %p582 = scmp.le.s32.totalorder 2, %s9
    // Predicated region
    $region49: #{_lambda_.18} parent=5 // pred_check
      %p583 = pneg %p582
    $region50: #{_lambda_.18} parent=5 // pred_check_branch
      %585 = sbr.rel (%p583) target = $region52
    $region51: #{_lambda_.18} parent=5 // pred_region
      %s586 = ssub.s32 %s9, 2
      // Predicated region
      $region53: #{_lambda_.18} parent=51 // pred_check
        %p587 = pneg %p158
      $region54: #{_lambda_.18} parent=51 // pred_check_branch
        %589 = sbr.rel (%p587) target = $region56
      $region55: #{_lambda_.18} parent=51 // pred_region
        %s590 = smul.u32 2, %s25
        %p591 = scmp.lt.s32.totalorder %s24, 1
        %s592 = scalar_select %p591, %s24, 1
        %p593 = scmp.lt.s32.totalorder %s590, 3
        %s594 = scalar_select %p593, %s590, 3
        %p595 = scmp.lt.s32.totalorder %s26, 0
        %s596 = scalar_select %p595, %s26, 0
        %s597 = sadd.s32 %s596, %s594
        %s598 = smul.addr %s592, 4
        %s599 = sadd.s32 %s597, %s598
        %s600 = smul.addr %s599, 4
        %s601 = scalar_lea.vmem %s3, %s600
      $region56: #{_lambda_.18} parent=51 // pred_fallthru
        _
    $region52: #{_lambda_.18} parent=5 // pred_fallthru
      _
  $region6: #{_lambda_.18} parent=0 // loop_footer
    %s13 = sadd.s32 1, %s9
  $region7: #{_lambda_.18} parent=0 // loop_footer_branch
    %8 = sbr.rel target = $region3
  $region8: #{_lambda_.18} parent=0 // loop_exit
    _

</llo_original>
